<compile_context>
chip_gen: v5e
topology: v5e:2x2
jax: 0.10.0
libtpu: 0.0.40
codegen_flags: <defaults>
</compile_context>

<pallas_src>
import math

import jax
import jax.numpy as jnp
from jax import lax
from jax.experimental import pallas as pl
from jax.experimental.pallas import tpu as pltpu

# ---- model hyper-parameters (from the PyTorch source) -----------------------
D_K = D_V = 64
D_MODEL = 64
N_HEADS = 3
D_FF = 512
N_LAYERS = 3
LN_EPS = 1e-5
NEG_INF = -1.0e9

DH = 128                      # per-head width zero-padded 64 -> 128 (lane tile)
HDH = N_HEADS * DH            # 384: packed head axis, 128-lane aligned slices


# =============================================================================
# Pallas kernel: the full 3-layer encoder stack for one batch block
# =============================================================================
def encoder_stack_kernel(x_ref, bias_ref,
                         wq_ref, wk_ref, wv_ref, wo_ref, w1_ref, w2_ref,
                         y_ref, attn_ref):
    BT, L, D = x_ref.shape
    R = BT * L

    # Fold batch into the matmul M dimension: (BT, L, D) -> (BT*L, D).
    h = x_ref[...].reshape(R, D)                         # f32 master copy

    # Mask-bias broadcast hoisted out of the unrolled layer/head loops.
    biases = [jnp.broadcast_to(bias_ref[b], (L, L)) for b in range(BT)]

    def layer_norm(z):                                   # f32, EUP rsqrt
        mu = jnp.mean(z, axis=-1, keepdims=True)
        var = jnp.mean((z - mu) * (z - mu), axis=-1, keepdims=True)
        return (z - mu) * lax.rsqrt(var + LN_EPS)

    for layer in range(N_LAYERS):                        # static unroll (weights VMEM-resident)
        x = h                                            # (R, D) f32
        xb = x.astype(jnp.bfloat16)                      # bf16 MXU inputs, f32 accumulation

        # Batch-folded projections: one (R,64)@(64,384) matmul each for Q/K/V.
        # (1/sqrt(d_k) is folded into wq on the host.)
        q_all = jnp.dot(xb, wq_ref[layer], preferred_element_type=jnp.float32)
        k_all = jnp.dot(xb, wk_ref[layer], preferred_element_type=jnp.float32)
        v_all = jnp.dot(xb, wv_ref[layer], preferred_element_type=jnp.float32)

        attn_rows = []                                   # per-batch (L, H*L) probs
        ctx_rows = []                                    # per-batch (L, H*DH) context
        for b in range(BT):                              # static unroll
            r0 = b * L                                   # multiple of 8: sublane-aligned slice
            qb = q_all[r0:r0 + L].astype(jnp.bfloat16)
            kb = k_all[r0:r0 + L].astype(jnp.bfloat16)
            vb = v_all[r0:r0 + L].astype(jnp.bfloat16)
            p_heads, ctx_heads = [], []
            for hd in range(N_HEADS):
                c0 = hd * DH                             # 128-lane aligned head slice
                qh = qb[:, c0:c0 + DH]
                kh = kb[:, c0:c0 + DH]
                vh = vb[:, c0:c0 + DH]
                # q @ k.T without materializing the transpose
                scores = lax.dot_general(qh, kh, (((1,), (1,)), ((), ())),
                                         preferred_element_type=jnp.float32)
                scores = scores + biases[b]
                m = jnp.max(scores, axis=-1, keepdims=True)
                e = jnp.exp(scores - m)
                # exact softmax normalization: the probabilities are returned
                # to the caller, so no approximate reciprocal here.
                p = e / jnp.sum(e, axis=-1, keepdims=True)
                p_heads.append(p)
                ctx_heads.append(jnp.dot(p.astype(jnp.bfloat16), vh,
                                         preferred_element_type=jnp.float32))
            attn_rows.append(jnp.concatenate(p_heads, axis=-1))    # (L, H*L)
            ctx_rows.append(jnp.concatenate(ctx_heads, axis=-1))   # (L, H*DH)

        # One consolidated (lane-denser) store per layer instead of
        # BT * N_HEADS masked (8, 8) stores.
        attn_ref[layer] = jnp.concatenate(attn_rows, axis=0)       # (R, H*L)

        # Single batch-folded output projection over all heads (padded rows of
        # wo are zero, so the result is exact).
        ctx_all = jnp.concatenate(ctx_rows, axis=0).astype(jnp.bfloat16)   # (R, H*DH)
        attn_out = jnp.dot(ctx_all, wo_ref[layer], preferred_element_type=jnp.float32)
        h1 = layer_norm(attn_out + x)                    # post-attention LN + residual

        # Position-wise feed-forward, batch-folded.
        ff = jnp.maximum(jnp.dot(h1.astype(jnp.bfloat16), w1_ref[layer],
                                 preferred_element_type=jnp.float32), 0.0)
        ff = jnp.dot(ff.astype(jnp.bfloat16), w2_ref[layer],
                     preferred_element_type=jnp.float32)
        h = layer_norm(ff + h1)                          # post-FFN LN + residual

    y_ref[...] = h.reshape(BT, L, D)


def encoder_stack(x, bias, packed, *, batch_blocks=1):
    """Run all N_LAYERS encoder layers in a single pallas_call.

    `batch_blocks=1` (default) folds the whole batch into one grid step (best
    for v5e/v6e: one TensorCore). On v7x, `batch_blocks=2` keeps a size-2
    "parallel" grid axis so each TensorCore takes half the batch.
    """
    B, L, D = x.shape
    assert B % batch_blocks == 0
    BT = B // batch_blocks

    wq, wk, wv, wo, w1, w2 = (packed[k] for k in ("wq", "wk", "wv", "wo", "w1", "w2"))

    y, attn = pl.pallas_call(
        encoder_stack_kernel,
        out_shape=(jax.ShapeDtypeStruct((B, L, D), jnp.float32),
                   jax.ShapeDtypeStruct((N_LAYERS, B * L, N_HEADS * L), jnp.float32)),
        grid_spec=pltpu.PrefetchScalarGridSpec(
            num_scalar_prefetch=0,
            grid=(batch_blocks,),
            in_specs=[
                pl.BlockSpec((BT, L, D), lambda g: (g, 0, 0)),
                pl.BlockSpec((BT, 1, L), lambda g: (g, 0, 0)),
                # grid-invariant weights: with the default single grid step
                # they are DMA'd into VMEM exactly once.
                pl.BlockSpec((N_LAYERS, D_MODEL, HDH), lambda g: (0, 0, 0)),
                pl.BlockSpec((N_LAYERS, D_MODEL, HDH), lambda g: (0, 0, 0)),
                pl.BlockSpec((N_LAYERS, D_MODEL, HDH), lambda g: (0, 0, 0)),
                pl.BlockSpec((N_LAYERS, HDH, D_MODEL), lambda g: (0, 0, 0)),
                pl.BlockSpec((N_LAYERS, D_MODEL, D_FF), lambda g: (0, 0, 0)),
                pl.BlockSpec((N_LAYERS, D_FF, D_MODEL), lambda g: (0, 0, 0)),
            ],
            out_specs=[
                pl.BlockSpec((BT, L, D), lambda g: (g, 0, 0)),
                pl.BlockSpec((N_LAYERS, BT * L, N_HEADS * L), lambda g: (0, g, 0)),
            ],
        ),
        compiler_params=pltpu.CompilerParams(
            dimension_semantics=("parallel",)),
    )(x, bias, wq, wk, wv, wo, w1, w2)
    return y, attn


# =============================================================================
# One-time parameter preprocessing (hoisted out of the forward pass)
# =============================================================================
def pack_encoder_params(params):
    """Stack per-layer weights, pad heads 64->128, fold 1/sqrt(d_k) into wq,
    and cast to bfloat16 (halves the weight DMA; f32 accumulation in-kernel)."""
    scale = 1.0 / math.sqrt(D_K)

    def pack_qkv(w, apply_scale):
        w3 = w.reshape(D_MODEL, N_HEADS, D_K)
        if apply_scale:
            w3 = w3 * scale                               # exact in bf16 (power of 2)
        w3 = jnp.pad(w3, ((0, 0), (0, 0), (0, DH - D_K)))  # zero-pad head width
        return w3.reshape(D_MODEL, HDH)

    def pack_wo(w):
        w3 = w.reshape(N_HEADS, D_V, D_MODEL)
        w3 = jnp.pad(w3, ((0, 0), (0, DH - D_V), (0, 0)))  # zero rows for padded head dims
        return w3.reshape(HDH, D_MODEL)

    layers = params["layers"]
    return {
        "wq": jnp.stack([pack_qkv(lp["wq"], True) for lp in layers]).astype(jnp.bfloat16),
        "wk": jnp.stack([pack_qkv(lp["wk"], False) for lp in layers]).astype(jnp.bfloat16),
        "wv": jnp.stack([pack_qkv(lp["wv"], False) for lp in layers]).astype(jnp.bfloat16),
        "wo": jnp.stack([pack_wo(lp["wo"]) for lp in layers]).astype(jnp.bfloat16),
        "w1": jnp.stack([lp["w1"] for lp in layers]).astype(jnp.bfloat16),
        "w2": jnp.stack([lp["w2"] for lp in layers]).astype(jnp.bfloat16),
    }


# =============================================================================
# Full Encoder forward (glue in plain JAX, encoder stack in one Pallas kernel)
# =============================================================================
def encoder_forward(params, packed, x_ids, t0_ids, t1_ids, t2_ids,
                    *, type_aware=True, code_att=False, batch_blocks=1):
    if type_aware:
        enc = (params["src_emb"][x_ids]
               + params["typ0_emb"][t0_ids]
               + params["typ1_emb"][t1_ids]
               + params["typ2_emb"][t2_ids])
    else:
        enc = params["src_emb"][x_ids]
    enc = enc.astype(jnp.float32)

    # Additive attention bias: NEG_INF where the key token is padding (id == 0).
    bias = (x_ids == 0).astype(jnp.float32)[:, None, :] * NEG_INF       # (B, 1, L)

    enc_out, attn_packed = encoder_stack(enc, bias, packed, batch_blocks=batch_blocks)

    B, L = x_ids.shape
    # (N_LAYERS, B*L, H*L) -> (B, N_LAYERS, H, L, L)
    attn_all = attn_packed.reshape(N_LAYERS, B, L, N_HEADS, L).transpose(1, 0, 3, 2, 4)
    attns = [attn_all[:, l] for l in range(N_LAYERS)]                   # list of (B, H, L, L)

    if code_att:
        # tiny pooling head (batch must be 1, mirroring the PyTorch code)
        enc0 = enc_out[0]                                               # (L, D)
        logits = enc0 @ params["lin_w"] + params["lin_b"]               # (L, 1)
        alph = jax.nn.softmax(logits, axis=0).T                         # (1, L)
        enc_out = (alph @ enc0)[0]                                      # (D,)

    # TODO(synk): `visualization=True` branch (t-SNE + matplotlib) has no kernel equivalent.
    return enc_out, attns


# =============================================================================
# Deterministic parameter init + pure-JAX reference check
# =============================================================================
def init_params(key, code_num, type_num):
    ks = jax.random.split(key, 8 + N_LAYERS * 6)
    s = 0.02
    p = {
        "src_emb":  s * jax.random.normal(ks[0], (code_num + 1, D_MODEL), jnp.float32),
        "typ0_emb": s * jax.random.normal(ks[1], (type_num + 1, D_MODEL), jnp.float32),
        "typ1_emb": s * jax.random.normal(ks[2], (type_num + 1, D_MODEL), jnp.float32),
        "typ2_emb": s * jax.random.normal(ks[3], (type_num + 1, D_MODEL), jnp.float32),
        "lin_w":    s * jax.random.normal(ks[4], (D_MODEL, 1), jnp.float32),
        "lin_b":    jnp.zeros((1,), jnp.float32),
        "layers": [],
    }
    idx = 8
    for _ in range(N_LAYERS):
        lp = {
            "wq": s * jax.random.normal(ks[idx + 0], (D_MODEL, N_HEADS * D_K), jnp.float32),
            "wk": s * jax.random.normal(ks[idx + 1], (D_MODEL, N_HEADS * D_K), jnp.float32),
            "wv": s * jax.random.normal(ks[idx + 2], (D_MODEL, N_HEADS * D_V), jnp.float32),
            "wo": s * jax.random.normal(ks[idx + 3], (N_HEADS * D_V, D_MODEL), jnp.float32),
            "w1": s * jax.random.normal(ks[idx + 4], (D_MODEL, D_FF), jnp.float32),
            "w2": s * jax.random.normal(ks[idx + 5], (D_FF, D_MODEL), jnp.float32),
        }
        p["layers"].append(lp)
        idx += 6
    return p


def get_attn_pad_mask(seq_q, seq_k):
    B, Lq = seq_q.shape
    _, Lk = seq_k.shape
    pad = (seq_k == 0).astype(jnp.float32)[:, None, :]
    return jnp.broadcast_to(pad, (B, Lq, Lk))


def encoder_layer_ref(x, mask_f, lp):
    """Pure-JAX f32 reference for one EncoderLayer (correctness check)."""
    B, L, D = x.shape

    def ln(z):
        mu = jnp.mean(z, -1, keepdims=True)
        var = jnp.mean((z - mu) ** 2, -1, keepdims=True)
        return (z - mu) / jnp.sqrt(var + LN_EPS)

    q = (x @ lp["wq"]).reshape(B, L, N_HEADS, D_K).transpose(0, 2, 1, 3)
    k = (x @ lp["wk"]).reshape(B, L, N_HEADS, D_K).transpose(0, 2, 1, 3)
    v = (x @ lp["wv"]).reshape(B, L, N_HEADS, D_V).transpose(0, 2, 1, 3)
    scores = jnp.einsum("bhqd,bhkd->bhqk", q, k) / math.sqrt(D_K)
    scores = jnp.where(mask_f[:, None, :, :] > 0.5, NEG_INF, scores)
    attn = jax.nn.softmax(scores, axis=-1)
    ctx = jnp.einsum("bhqk,bhkd->bhqd", attn, v)
    ctx = ctx.transpose(0, 2, 1, 3).reshape(B, L, N_HEADS * D_V)
    h1 = ln(ctx @ lp["wo"] + x)
    ff = jnp.maximum(h1 @ lp["w1"], 0.0) @ lp["w2"]
    return ln(ff + h1), attn


# =============================================================================
if __name__ == "__main__":
    key = jax.random.PRNGKey(0)
    k_param, k_x, k_t0, k_t1, k_t2 = jax.random.split(key, 5)

    # small shapes: batch=2, seq=8, d_model=64 (fixed by the module)
    B, L = 2, 8
    code_num, type_num = 10, 5

    params = init_params(k_param, code_num, type_num)
    packed = pack_encoder_params(params)          # one-time weight preprocessing

    x_ids = jax.random.randint(k_x, (B, L), 1, code_num + 1, dtype=jnp.int32)
    x_ids = x_ids.at[:, -2:].set(0)               # add pad tokens to exercise the mask
    t0 = jax.random.randint(k_t0, (B, L), 0, type_num + 1, dtype=jnp.int32)
    t1 = jax.random.randint(k_t1, (B, L), 0, type_num + 1, dtype=jnp.int32)
    t2 = jax.random.randint(k_t2, (B, L), 0, type_num + 1, dtype=jnp.int32)

    enc_out, attns = encoder_forward(params, packed, x_ids, t0, t1, t2,
                                     type_aware=True, code_att=False,
                                     batch_blocks=1)   # set 2 on v7x (2 TCs)
    enc_out = jax.block_until_ready(enc_out)
    attns = [jax.block_until_ready(a) for a in attns]

    # Correctness check: pure-JAX f32 reference using the same bf16-quantized
    # weights the kernel consumes (remaining deltas are bf16 MXU-operand
    # rounding of the activations + rsqrt-based LayerNorm).
    ref_layers = [{k: v.astype(jnp.bfloat16).astype(jnp.float32) for k, v in lp.items()}
                  for lp in params["layers"]]
    ref = (params["src_emb"][x_ids] + params["typ0_emb"][t0]
           + params["typ1_emb"][t1] + params["typ2_emb"][t2]).astype(jnp.float32)
    mask_f = get_attn_pad_mask(x_ids, x_ids)
    ref_attns = []
    for lp in ref_layers:
        ref, a = encoder_layer_ref(ref, mask_f, lp)
        ref_attns.append(a)

    assert enc_out.shape == (B, L, D_MODEL)
    assert all(a.shape == (B, N_HEADS, L, L) for a in attns)
    # hidden states: tolerance covers bf16 matmul-operand rounding
    assert jnp.allclose(enc_out, ref, atol=1e-2, rtol=1e-2), \
        float(jnp.max(jnp.abs(enc_out - ref)))
    # attention probabilities use an exact softmax divide -> tight tolerance
    assert all(jnp.allclose(a, r, atol=2e-3, rtol=2e-3)
               for a, r in zip(attns, ref_attns))

    print("KERNEL_OK")
</pallas_src>

<mosaic_0001>
module attributes {stable_mosaic.version = 11 : i64} {
  func.func @encoder_stack_kernel(%arg0: i32, %arg1: memref<2x8x64xf32, #tpu.memory_space<vmem>>, %arg2: memref<2x1x8xf32, #tpu.memory_space<vmem>>, %arg3: memref<3x64x384xbf16, #tpu.memory_space<vmem>>, %arg4: memref<3x64x384xbf16, #tpu.memory_space<vmem>>, %arg5: memref<3x64x384xbf16, #tpu.memory_space<vmem>>, %arg6: memref<3x384x64xbf16, #tpu.memory_space<vmem>>, %arg7: memref<3x64x512xbf16, #tpu.memory_space<vmem>>, %arg8: memref<3x512x64xbf16, #tpu.memory_space<vmem>>, %arg9: memref<2x8x64xf32, #tpu.memory_space<vmem>>, %arg10: memref<3x16x24xf32, #tpu.memory_space<vmem>>) attributes {dimension_semantics = [#tpu.dimension_semantics<parallel>], iteration_bounds = array<i64: 1>, scalar_prefetch = 0 : i64, scratch_operands = 0 : i64, tpu.core_type = #tpu.core_type<tc>, window_params = [{transform_indices = @transform_0, window_bounds = array<i64: 2, 8, 64>}, {transform_indices = @transform_1, window_bounds = array<i64: 2, 1, 8>}, {pipeline_mode = #tpu.pipeline_mode<synchronous>, transform_indices = @transform_2, window_bounds = array<i64: 3, 64, 384>}, {pipeline_mode = #tpu.pipeline_mode<synchronous>, transform_indices = @transform_3, window_bounds = array<i64: 3, 64, 384>}, {pipeline_mode = #tpu.pipeline_mode<synchronous>, transform_indices = @transform_4, window_bounds = array<i64: 3, 64, 384>}, {pipeline_mode = #tpu.pipeline_mode<synchronous>, transform_indices = @transform_5, window_bounds = array<i64: 3, 384, 64>}, {pipeline_mode = #tpu.pipeline_mode<synchronous>, transform_indices = @transform_6, window_bounds = array<i64: 3, 64, 512>}, {pipeline_mode = #tpu.pipeline_mode<synchronous>, transform_indices = @transform_7, window_bounds = array<i64: 3, 512, 64>}, {transform_indices = @transform_8, window_bounds = array<i64: 2, 8, 64>}, {transform_indices = @transform_9, window_bounds = array<i64: 3, 16, 24>}]} {
    %c0 = arith.constant 0 : index
    %c0_0 = arith.constant 0 : index
    %c0_1 = arith.constant 0 : index
    %0 = vector.load %arg1[%c0, %c0_0, %c0_1] : memref<2x8x64xf32, #tpu.memory_space<vmem>>, vector<2x8x64xf32>
    %1 = vector.shape_cast %0 : vector<2x8x64xf32> to vector<16x64xf32>
    %c0_2 = arith.constant 0 : index
    %c0_3 = arith.constant 0 : index
    %c0_4 = arith.constant 0 : index
    %2 = vector.load %arg2[%c0_2, %c0_3, %c0_4] : memref<2x1x8xf32, #tpu.memory_space<vmem>>, vector<1x1x8xf32>
    %3 = vector.shape_cast %2 : vector<1x1x8xf32> to vector<1x8xf32>
    %4 = vector.shape_cast %3 : vector<1x8xf32> to vector<1x8xf32>
    %5 = vector.broadcast %4 : vector<1x8xf32> to vector<8x8xf32>
    %c1 = arith.constant 1 : index
    %c0_5 = arith.constant 0 : index
    %c0_6 = arith.constant 0 : index
    %6 = vector.load %arg2[%c1, %c0_5, %c0_6] : memref<2x1x8xf32, #tpu.memory_space<vmem>>, vector<1x1x8xf32>
    %7 = vector.shape_cast %6 : vector<1x1x8xf32> to vector<1x8xf32>
    %8 = vector.shape_cast %7 : vector<1x8xf32> to vector<1x8xf32>
    %9 = vector.broadcast %8 : vector<1x8xf32> to vector<8x8xf32>
    %10 = arith.truncf %1 : vector<16x64xf32> to vector<16x64xbf16>
    %c0_7 = arith.constant 0 : index
    %c0_8 = arith.constant 0 : index
    %c0_9 = arith.constant 0 : index
    %11 = vector.load %arg3[%c0_7, %c0_8, %c0_9] : memref<3x64x384xbf16, #tpu.memory_space<vmem>>, vector<1x64x384xbf16>
    %12 = vector.shape_cast %11 : vector<1x64x384xbf16> to vector<64x384xbf16>
    %cst = arith.constant dense<0.000000e+00> : vector<16x384xf32>
    %13 = tpu.matmul %10, %12, %cst {dimension_numbers = #tpu.dot_dimension_numbers<[1], [0], [0], [1], [0, 0, 1, 1], [], []>} : vector<16x64xbf16>, vector<64x384xbf16>, vector<16x384xf32> -> vector<16x384xf32>
    %c0_10 = arith.constant 0 : index
    %c0_11 = arith.constant 0 : index
    %c0_12 = arith.constant 0 : index
    %14 = vector.load %arg4[%c0_10, %c0_11, %c0_12] : memref<3x64x384xbf16, #tpu.memory_space<vmem>>, vector<1x64x384xbf16>
    %15 = vector.shape_cast %14 : vector<1x64x384xbf16> to vector<64x384xbf16>
    %cst_13 = arith.constant dense<0.000000e+00> : vector<16x384xf32>
    %16 = tpu.matmul %10, %15, %cst_13 {dimension_numbers = #tpu.dot_dimension_numbers<[1], [0], [0], [1], [0, 0, 1, 1], [], []>} : vector<16x64xbf16>, vector<64x384xbf16>, vector<16x384xf32> -> vector<16x384xf32>
    %c0_14 = arith.constant 0 : index
    %c0_15 = arith.constant 0 : index
    %c0_16 = arith.constant 0 : index
    %17 = vector.load %arg5[%c0_14, %c0_15, %c0_16] : memref<3x64x384xbf16, #tpu.memory_space<vmem>>, vector<1x64x384xbf16>
    %18 = vector.shape_cast %17 : vector<1x64x384xbf16> to vector<64x384xbf16>
    %cst_17 = arith.constant dense<0.000000e+00> : vector<16x384xf32>
    %19 = tpu.matmul %10, %18, %cst_17 {dimension_numbers = #tpu.dot_dimension_numbers<[1], [0], [0], [1], [0, 0, 1, 1], [], []>} : vector<16x64xbf16>, vector<64x384xbf16>, vector<16x384xf32> -> vector<16x384xf32>
    %20 = vector.extract_strided_slice %13 {offsets = [0, 0], sizes = [8, 384], strides = [1, 1]} : vector<16x384xf32> to vector<8x384xf32>
    %21 = arith.truncf %20 : vector<8x384xf32> to vector<8x384xbf16>
    %22 = vector.extract_strided_slice %16 {offsets = [0, 0], sizes = [8, 384], strides = [1, 1]} : vector<16x384xf32> to vector<8x384xf32>
    %23 = arith.truncf %22 : vector<8x384xf32> to vector<8x384xbf16>
    %24 = vector.extract_strided_slice %19 {offsets = [0, 0], sizes = [8, 384], strides = [1, 1]} : vector<16x384xf32> to vector<8x384xf32>
    %25 = arith.truncf %24 : vector<8x384xf32> to vector<8x384xbf16>
    %26 = vector.extract_strided_slice %21 {offsets = [0, 0], sizes = [8, 128], strides = [1, 1]} : vector<8x384xbf16> to vector<8x128xbf16>
    %27 = vector.extract_strided_slice %23 {offsets = [0, 0], sizes = [8, 128], strides = [1, 1]} : vector<8x384xbf16> to vector<8x128xbf16>
    %28 = vector.extract_strided_slice %25 {offsets = [0, 0], sizes = [8, 128], strides = [1, 1]} : vector<8x384xbf16> to vector<8x128xbf16>
    %cst_18 = arith.constant dense<0.000000e+00> : vector<8x8xf32>
    %29 = tpu.matmul %26, %27, %cst_18 {dimension_numbers = #tpu.dot_dimension_numbers<[1], [1], [0], [0], [0, 0, 1, 0], [], []>} : vector<8x128xbf16>, vector<8x128xbf16>, vector<8x8xf32> -> vector<8x8xf32>
    %30 = arith.addf %29, %5 : vector<8x8xf32>
    %cst_19 = arith.constant dense<0xFF800000> : vector<8xf32>
    %31 = vector.multi_reduction <maximumf>, %30, %cst_19 [1] : vector<8x8xf32> to vector<8xf32>
    %32 = vector.shape_cast %31 : vector<8xf32> to vector<8x1xf32>
    %33 = vector.broadcast %32 : vector<8x1xf32> to vector<8x8xf32>
    %34 = arith.subf %30, %33 : vector<8x8xf32>
    %35 = math.exp %34 : vector<8x8xf32>
    %cst_20 = arith.constant dense<0.000000e+00> : vector<8xf32>
    %36 = vector.multi_reduction <add>, %35, %cst_20 [1] : vector<8x8xf32> to vector<8xf32>
    %37 = vector.shape_cast %36 : vector<8xf32> to vector<8x1xf32>
    %38 = vector.broadcast %37 : vector<8x1xf32> to vector<8x8xf32>
    %39 = arith.divf %35, %38 : vector<8x8xf32>
    %40 = arith.truncf %39 : vector<8x8xf32> to vector<8x8xbf16>
    %cst_21 = arith.constant dense<0.000000e+00> : vector<8x128xf32>
    %41 = tpu.matmul %40, %28, %cst_21 {dimension_numbers = #tpu.dot_dimension_numbers<[1], [0], [0], [1], [0, 0, 1, 1], [], []>} : vector<8x8xbf16>, vector<8x128xbf16>, vector<8x128xf32> -> vector<8x128xf32>
    %42 = vector.extract_strided_slice %21 {offsets = [0, 128], sizes = [8, 128], strides = [1, 1]} : vector<8x384xbf16> to vector<8x128xbf16>
    %43 = vector.extract_strided_slice %23 {offsets = [0, 128], sizes = [8, 128], strides = [1, 1]} : vector<8x384xbf16> to vector<8x128xbf16>
    %44 = vector.extract_strided_slice %25 {offsets = [0, 128], sizes = [8, 128], strides = [1, 1]} : vector<8x384xbf16> to vector<8x128xbf16>
    %cst_22 = arith.constant dense<0.000000e+00> : vector<8x8xf32>
    %45 = tpu.matmul %42, %43, %cst_22 {dimension_numbers = #tpu.dot_dimension_numbers<[1], [1], [0], [0], [0, 0, 1, 0], [], []>} : vector<8x128xbf16>, vector<8x128xbf16>, vector<8x8xf32> -> vector<8x8xf32>
    %46 = arith.addf %45, %5 : vector<8x8xf32>
    %cst_23 = arith.constant dense<0xFF800000> : vector<8xf32>
    %47 = vector.multi_reduction <maximumf>, %46, %cst_23 [1] : vector<8x8xf32> to vector<8xf32>
    %48 = vector.shape_cast %47 : vector<8xf32> to vector<8x1xf32>
    %49 = vector.broadcast %48 : vector<8x1xf32> to vector<8x8xf32>
    %50 = arith.subf %46, %49 : vector<8x8xf32>
    %51 = math.exp %50 : vector<8x8xf32>
    %cst_24 = arith.constant dense<0.000000e+00> : vector<8xf32>
    %52 = vector.multi_reduction <add>, %51, %cst_24 [1] : vector<8x8xf32> to vector<8xf32>
    %53 = vector.shape_cast %52 : vector<8xf32> to vector<8x1xf32>
    %54 = vector.broadcast %53 : vector<8x1xf32> to vector<8x8xf32>
    %55 = arith.divf %51, %54 : vector<8x8xf32>
    %56 = arith.truncf %55 : vector<8x8xf32> to vector<8x8xbf16>
    %cst_25 = arith.constant dense<0.000000e+00> : vector<8x128xf32>
    %57 = tpu.matmul %56, %44, %cst_25 {dimension_numbers = #tpu.dot_dimension_numbers<[1], [0], [0], [1], [0, 0, 1, 1], [], []>} : vector<8x8xbf16>, vector<8x128xbf16>, vector<8x128xf32> -> vector<8x128xf32>
    %58 = vector.extract_strided_slice %21 {offsets = [0, 256], sizes = [8, 128], strides = [1, 1]} : vector<8x384xbf16> to vector<8x128xbf16>
    %59 = vector.extract_strided_slice %23 {offsets = [0, 256], sizes = [8, 128], strides = [1, 1]} : vector<8x384xbf16> to vector<8x128xbf16>
    %60 = vector.extract_strided_slice %25 {offsets = [0, 256], sizes = [8, 128], strides = [1, 1]} : vector<8x384xbf16> to vector<8x128xbf16>
    %cst_26 = arith.constant dense<0.000000e+00> : vector<8x8xf32>
    %61 = tpu.matmul %58, %59, %cst_26 {dimension_numbers = #tpu.dot_dimension_numbers<[1], [1], [0], [0], [0, 0, 1, 0], [], []>} : vector<8x128xbf16>, vector<8x128xbf16>, vector<8x8xf32> -> vector<8x8xf32>
    %62 = arith.addf %61, %5 : vector<8x8xf32>
    %cst_27 = arith.constant dense<0xFF800000> : vector<8xf32>
    %63 = vector.multi_reduction <maximumf>, %62, %cst_27 [1] : vector<8x8xf32> to vector<8xf32>
    %64 = vector.shape_cast %63 : vector<8xf32> to vector<8x1xf32>
    %65 = vector.broadcast %64 : vector<8x1xf32> to vector<8x8xf32>
    %66 = arith.subf %62, %65 : vector<8x8xf32>
    %67 = math.exp %66 : vector<8x8xf32>
    %cst_28 = arith.constant dense<0.000000e+00> : vector<8xf32>
    %68 = vector.multi_reduction <add>, %67, %cst_28 [1] : vector<8x8xf32> to vector<8xf32>
    %69 = vector.shape_cast %68 : vector<8xf32> to vector<8x1xf32>
    %70 = vector.broadcast %69 : vector<8x1xf32> to vector<8x8xf32>
    %71 = arith.divf %67, %70 : vector<8x8xf32>
    %72 = arith.truncf %71 : vector<8x8xf32> to vector<8x8xbf16>
    %cst_29 = arith.constant dense<0.000000e+00> : vector<8x128xf32>
    %73 = tpu.matmul %72, %60, %cst_29 {dimension_numbers = #tpu.dot_dimension_numbers<[1], [0], [0], [1], [0, 0, 1, 1], [], []>} : vector<8x8xbf16>, vector<8x128xbf16>, vector<8x128xf32> -> vector<8x128xf32>
    %74 = tpu.concatenate %39, %55, %71 in 1 : vector<8x8xf32>, vector<8x8xf32>, vector<8x8xf32> -> vector<8x24xf32>
    %75 = tpu.concatenate %41, %57, %73 in 1 : vector<8x128xf32>, vector<8x128xf32>, vector<8x128xf32> -> vector<8x384xf32>
    %76 = vector.extract_strided_slice %13 {offsets = [8, 0], sizes = [8, 384], strides = [1, 1]} : vector<16x384xf32> to vector<8x384xf32>
    %77 = arith.truncf %76 : vector<8x384xf32> to vector<8x384xbf16>
    %78 = vector.extract_strided_slice %16 {offsets = [8, 0], sizes = [8, 384], strides = [1, 1]} : vector<16x384xf32> to vector<8x384xf32>
    %79 = arith.truncf %78 : vector<8x384xf32> to vector<8x384xbf16>
    %80 = vector.extract_strided_slice %19 {offsets = [8, 0], sizes = [8, 384], strides = [1, 1]} : vector<16x384xf32> to vector<8x384xf32>
    %81 = arith.truncf %80 : vector<8x384xf32> to vector<8x384xbf16>
    %82 = vector.extract_strided_slice %77 {offsets = [0, 0], sizes = [8, 128], strides = [1, 1]} : vector<8x384xbf16> to vector<8x128xbf16>
    %83 = vector.extract_strided_slice %79 {offsets = [0, 0], sizes = [8, 128], strides = [1, 1]} : vector<8x384xbf16> to vector<8x128xbf16>
    %84 = vector.extract_strided_slice %81 {offsets = [0, 0], sizes = [8, 128], strides = [1, 1]} : vector<8x384xbf16> to vector<8x128xbf16>
    %cst_30 = arith.constant dense<0.000000e+00> : vector<8x8xf32>
    %85 = tpu.matmul %82, %83, %cst_30 {dimension_numbers = #tpu.dot_dimension_numbers<[1], [1], [0], [0], [0, 0, 1, 0], [], []>} : vector<8x128xbf16>, vector<8x128xbf16>, vector<8x8xf32> -> vector<8x8xf32>
    %86 = arith.addf %85, %9 : vector<8x8xf32>
    %cst_31 = arith.constant dense<0xFF800000> : vector<8xf32>
    %87 = vector.multi_reduction <maximumf>, %86, %cst_31 [1] : vector<8x8xf32> to vector<8xf32>
    %88 = vector.shape_cast %87 : vector<8xf32> to vector<8x1xf32>
    %89 = vector.broadcast %88 : vector<8x1xf32> to vector<8x8xf32>
    %90 = arith.subf %86, %89 : vector<8x8xf32>
    %91 = math.exp %90 : vector<8x8xf32>
    %cst_32 = arith.constant dense<0.000000e+00> : vector<8xf32>
    %92 = vector.multi_reduction <add>, %91, %cst_32 [1] : vector<8x8xf32> to vector<8xf32>
    %93 = vector.shape_cast %92 : vector<8xf32> to vector<8x1xf32>
    %94 = vector.broadcast %93 : vector<8x1xf32> to vector<8x8xf32>
    %95 = arith.divf %91, %94 : vector<8x8xf32>
    %96 = arith.truncf %95 : vector<8x8xf32> to vector<8x8xbf16>
    %cst_33 = arith.constant dense<0.000000e+00> : vector<8x128xf32>
    %97 = tpu.matmul %96, %84, %cst_33 {dimension_numbers = #tpu.dot_dimension_numbers<[1], [0], [0], [1], [0, 0, 1, 1], [], []>} : vector<8x8xbf16>, vector<8x128xbf16>, vector<8x128xf32> -> vector<8x128xf32>
    %98 = vector.extract_strided_slice %77 {offsets = [0, 128], sizes = [8, 128], strides = [1, 1]} : vector<8x384xbf16> to vector<8x128xbf16>
    %99 = vector.extract_strided_slice %79 {offsets = [0, 128], sizes = [8, 128], strides = [1, 1]} : vector<8x384xbf16> to vector<8x128xbf16>
    %100 = vector.extract_strided_slice %81 {offsets = [0, 128], sizes = [8, 128], strides = [1, 1]} : vector<8x384xbf16> to vector<8x128xbf16>
    %cst_34 = arith.constant dense<0.000000e+00> : vector<8x8xf32>
    %101 = tpu.matmul %98, %99, %cst_34 {dimension_numbers = #tpu.dot_dimension_numbers<[1], [1], [0], [0], [0, 0, 1, 0], [], []>} : vector<8x128xbf16>, vector<8x128xbf16>, vector<8x8xf32> -> vector<8x8xf32>
    %102 = arith.addf %101, %9 : vector<8x8xf32>
    %cst_35 = arith.constant dense<0xFF800000> : vector<8xf32>
    %103 = vector.multi_reduction <maximumf>, %102, %cst_35 [1] : vector<8x8xf32> to vector<8xf32>
    %104 = vector.shape_cast %103 : vector<8xf32> to vector<8x1xf32>
    %105 = vector.broadcast %104 : vector<8x1xf32> to vector<8x8xf32>
    %106 = arith.subf %102, %105 : vector<8x8xf32>
    %107 = math.exp %106 : vector<8x8xf32>
    %cst_36 = arith.constant dense<0.000000e+00> : vector<8xf32>
    %108 = vector.multi_reduction <add>, %107, %cst_36 [1] : vector<8x8xf32> to vector<8xf32>
    %109 = vector.shape_cast %108 : vector<8xf32> to vector<8x1xf32>
    %110 = vector.broadcast %109 : vector<8x1xf32> to vector<8x8xf32>
    %111 = arith.divf %107, %110 : vector<8x8xf32>
    %112 = arith.truncf %111 : vector<8x8xf32> to vector<8x8xbf16>
    %cst_37 = arith.constant dense<0.000000e+00> : vector<8x128xf32>
    %113 = tpu.matmul %112, %100, %cst_37 {dimension_numbers = #tpu.dot_dimension_numbers<[1], [0], [0], [1], [0, 0, 1, 1], [], []>} : vector<8x8xbf16>, vector<8x128xbf16>, vector<8x128xf32> -> vector<8x128xf32>
    %114 = vector.extract_strided_slice %77 {offsets = [0, 256], sizes = [8, 128], strides = [1, 1]} : vector<8x384xbf16> to vector<8x128xbf16>
    %115 = vector.extract_strided_slice %79 {offsets = [0, 256], sizes = [8, 128], strides = [1, 1]} : vector<8x384xbf16> to vector<8x128xbf16>
    %116 = vector.extract_strided_slice %81 {offsets = [0, 256], sizes = [8, 128], strides = [1, 1]} : vector<8x384xbf16> to vector<8x128xbf16>
    %cst_38 = arith.constant dense<0.000000e+00> : vector<8x8xf32>
    %117 = tpu.matmul %114, %115, %cst_38 {dimension_numbers = #tpu.dot_dimension_numbers<[1], [1], [0], [0], [0, 0, 1, 0], [], []>} : vector<8x128xbf16>, vector<8x128xbf16>, vector<8x8xf32> -> vector<8x8xf32>
    %118 = arith.addf %117, %9 : vector<8x8xf32>
    %cst_39 = arith.constant dense<0xFF800000> : vector<8xf32>
    %119 = vector.multi_reduction <maximumf>, %118, %cst_39 [1] : vector<8x8xf32> to vector<8xf32>
    %120 = vector.shape_cast %119 : vector<8xf32> to vector<8x1xf32>
    %121 = vector.broadcast %120 : vector<8x1xf32> to vector<8x8xf32>
    %122 = arith.subf %118, %121 : vector<8x8xf32>
    %123 = math.exp %122 : vector<8x8xf32>
    %cst_40 = arith.constant dense<0.000000e+00> : vector<8xf32>
    %124 = vector.multi_reduction <add>, %123, %cst_40 [1] : vector<8x8xf32> to vector<8xf32>
    %125 = vector.shape_cast %124 : vector<8xf32> to vector<8x1xf32>
    %126 = vector.broadcast %125 : vector<8x1xf32> to vector<8x8xf32>
    %127 = arith.divf %123, %126 : vector<8x8xf32>
    %128 = arith.truncf %127 : vector<8x8xf32> to vector<8x8xbf16>
    %cst_41 = arith.constant dense<0.000000e+00> : vector<8x128xf32>
    %129 = tpu.matmul %128, %116, %cst_41 {dimension_numbers = #tpu.dot_dimension_numbers<[1], [0], [0], [1], [0, 0, 1, 1], [], []>} : vector<8x8xbf16>, vector<8x128xbf16>, vector<8x128xf32> -> vector<8x128xf32>
    %130 = tpu.concatenate %95, %111, %127 in 1 : vector<8x8xf32>, vector<8x8xf32>, vector<8x8xf32> -> vector<8x24xf32>
    %131 = tpu.concatenate %97, %113, %129 in 1 : vector<8x128xf32>, vector<8x128xf32>, vector<8x128xf32> -> vector<8x384xf32>
    %132 = tpu.concatenate %74, %130 in 0 : vector<8x24xf32>, vector<8x24xf32> -> vector<16x24xf32>
    %c0_42 = arith.constant 0 : index
    %c0_43 = arith.constant 0 : index
    %c0_44 = arith.constant 0 : index
    %133 = vector.load %arg10[%c0_42, %c0_43, %c0_44] : memref<3x16x24xf32, #tpu.memory_space<vmem>>, vector<1x16x24xf32>
    %134 = vector.shape_cast %133 : vector<1x16x24xf32> to vector<16x24xf32>
    %135 = vector.shape_cast %132 : vector<16x24xf32> to vector<1x16x24xf32>
    tpu.vector_store %arg10[%c0_42, %c0_43, %c0_44], %135 {strides = array<i32>} : memref<3x16x24xf32, #tpu.memory_space<vmem>>, vector<1x16x24xf32>,
    %136 = tpu.concatenate %75, %131 in 0 : vector<8x384xf32>, vector<8x384xf32> -> vector<16x384xf32>
    %137 = arith.truncf %136 : vector<16x384xf32> to vector<16x384xbf16>
    %c0_45 = arith.constant 0 : index
    %c0_46 = arith.constant 0 : index
    %c0_47 = arith.constant 0 : index
    %138 = vector.load %arg6[%c0_45, %c0_46, %c0_47] : memref<3x384x64xbf16, #tpu.memory_space<vmem>>, vector<1x384x64xbf16>
    %139 = vector.shape_cast %138 : vector<1x384x64xbf16> to vector<384x64xbf16>
    %cst_48 = arith.constant dense<0.000000e+00> : vector<16x64xf32>
    %140 = tpu.matmul %137, %139, %cst_48 {dimension_numbers = #tpu.dot_dimension_numbers<[1], [0], [0], [1], [0, 0, 1, 1], [], []>} : vector<16x384xbf16>, vector<384x64xbf16>, vector<16x64xf32> -> vector<16x64xf32>
    %141 = arith.addf %140, %1 : vector<16x64xf32>
    %cst_49 = arith.constant dense<0.000000e+00> : vector<16xf32>
    %142 = vector.multi_reduction <add>, %141, %cst_49 [1] : vector<16x64xf32> to vector<16xf32>
    %143 = vector.shape_cast %142 : vector<16xf32> to vector<16x1xf32>
    %cst_50 = arith.constant 6.400000e+01 : f32
    %144 = vector.broadcast %cst_50 : f32 to vector<16x1xf32>
    %145 = arith.divf %143, %144 : vector<16x1xf32>
    %146 = vector.broadcast %145 : vector<16x1xf32> to vector<16x64xf32>
    %147 = arith.subf %141, %146 : vector<16x64xf32>
    %148 = vector.broadcast %145 : vector<16x1xf32> to vector<16x64xf32>
    %149 = arith.subf %141, %148 : vector<16x64xf32>
    %150 = arith.mulf %147, %149 : vector<16x64xf32>
    %cst_51 = arith.constant dense<0.000000e+00> : vector<16xf32>
    %151 = vector.multi_reduction <add>, %150, %cst_51 [1] : vector<16x64xf32> to vector<16xf32>
    %152 = vector.shape_cast %151 : vector<16xf32> to vector<16x1xf32>
    %cst_52 = arith.constant 6.400000e+01 : f32
    %153 = vector.broadcast %cst_52 : f32 to vector<16x1xf32>
    %154 = arith.divf %152, %153 : vector<16x1xf32>
    %155 = vector.broadcast %145 : vector<16x1xf32> to vector<16x64xf32>
    %156 = arith.subf %141, %155 : vector<16x64xf32>
    %cst_53 = arith.constant 9.99999974E-6 : f32
    %157 = vector.broadcast %cst_53 : f32 to vector<16x1xf32>
    %158 = arith.addf %154, %157 : vector<16x1xf32>
    %159 = math.rsqrt %158 : vector<16x1xf32>
    %160 = vector.broadcast %159 : vector<16x1xf32> to vector<16x64xf32>
    %161 = arith.mulf %156, %160 : vector<16x64xf32>
    %162 = arith.truncf %161 : vector<16x64xf32> to vector<16x64xbf16>
    %c0_54 = arith.constant 0 : index
    %c0_55 = arith.constant 0 : index
    %c0_56 = arith.constant 0 : index
    %163 = vector.load %arg7[%c0_54, %c0_55, %c0_56] : memref<3x64x512xbf16, #tpu.memory_space<vmem>>, vector<1x64x512xbf16>
    %164 = vector.shape_cast %163 : vector<1x64x512xbf16> to vector<64x512xbf16>
    %cst_57 = arith.constant dense<0.000000e+00> : vector<16x512xf32>
    %165 = tpu.matmul %162, %164, %cst_57 {dimension_numbers = #tpu.dot_dimension_numbers<[1], [0], [0], [1], [0, 0, 1, 1], [], []>} : vector<16x64xbf16>, vector<64x512xbf16>, vector<16x512xf32> -> vector<16x512xf32>
    %cst_58 = arith.constant 0.000000e+00 : f32
    %166 = vector.broadcast %cst_58 : f32 to vector<16x512xf32>
    %167 = arith.maximumf %165, %166 : vector<16x512xf32>
    %168 = arith.truncf %167 : vector<16x512xf32> to vector<16x512xbf16>
    %c0_59 = arith.constant 0 : index
    %c0_60 = arith.constant 0 : index
    %c0_61 = arith.constant 0 : index
    %169 = vector.load %arg8[%c0_59, %c0_60, %c0_61] : memref<3x512x64xbf16, #tpu.memory_space<vmem>>, vector<1x512x64xbf16>
    %170 = vector.shape_cast %169 : vector<1x512x64xbf16> to vector<512x64xbf16>
    %cst_62 = arith.constant dense<0.000000e+00> : vector<16x64xf32>
    %171 = tpu.matmul %168, %170, %cst_62 {dimension_numbers = #tpu.dot_dimension_numbers<[1], [0], [0], [1], [0, 0, 1, 1], [], []>} : vector<16x512xbf16>, vector<512x64xbf16>, vector<16x64xf32> -> vector<16x64xf32>
    %172 = arith.addf %171, %161 : vector<16x64xf32>
    %cst_63 = arith.constant dense<0.000000e+00> : vector<16xf32>
    %173 = vector.multi_reduction <add>, %172, %cst_63 [1] : vector<16x64xf32> to vector<16xf32>
    %174 = vector.shape_cast %173 : vector<16xf32> to vector<16x1xf32>
    %cst_64 = arith.constant 6.400000e+01 : f32
    %175 = vector.broadcast %cst_64 : f32 to vector<16x1xf32>
    %176 = arith.divf %174, %175 : vector<16x1xf32>
    %177 = vector.broadcast %176 : vector<16x1xf32> to vector<16x64xf32>
    %178 = arith.subf %172, %177 : vector<16x64xf32>
    %179 = vector.broadcast %176 : vector<16x1xf32> to vector<16x64xf32>
    %180 = arith.subf %172, %179 : vector<16x64xf32>
    %181 = arith.mulf %178, %180 : vector<16x64xf32>
    %cst_65 = arith.constant dense<0.000000e+00> : vector<16xf32>
    %182 = vector.multi_reduction <add>, %181, %cst_65 [1] : vector<16x64xf32> to vector<16xf32>
    %183 = vector.shape_cast %182 : vector<16xf32> to vector<16x1xf32>
    %cst_66 = arith.constant 6.400000e+01 : f32
    %184 = vector.broadcast %cst_66 : f32 to vector<16x1xf32>
    %185 = arith.divf %183, %184 : vector<16x1xf32>
    %186 = vector.broadcast %176 : vector<16x1xf32> to vector<16x64xf32>
    %187 = arith.subf %172, %186 : vector<16x64xf32>
    %cst_67 = arith.constant 9.99999974E-6 : f32
    %188 = vector.broadcast %cst_67 : f32 to vector<16x1xf32>
    %189 = arith.addf %185, %188 : vector<16x1xf32>
    %190 = math.rsqrt %189 : vector<16x1xf32>
    %191 = vector.broadcast %190 : vector<16x1xf32> to vector<16x64xf32>
    %192 = arith.mulf %187, %191 : vector<16x64xf32>
    %193 = arith.truncf %192 : vector<16x64xf32> to vector<16x64xbf16>
    %c1_68 = arith.constant 1 : index
    %c0_69 = arith.constant 0 : index
    %c0_70 = arith.constant 0 : index
    %194 = vector.load %arg3[%c1_68, %c0_69, %c0_70] : memref<3x64x384xbf16, #tpu.memory_space<vmem>>, vector<1x64x384xbf16>
    %195 = vector.shape_cast %194 : vector<1x64x384xbf16> to vector<64x384xbf16>
    %cst_71 = arith.constant dense<0.000000e+00> : vector<16x384xf32>
    %196 = tpu.matmul %193, %195, %cst_71 {dimension_numbers = #tpu.dot_dimension_numbers<[1], [0], [0], [1], [0, 0, 1, 1], [], []>} : vector<16x64xbf16>, vector<64x384xbf16>, vector<16x384xf32> -> vector<16x384xf32>
    %c1_72 = arith.constant 1 : index
    %c0_73 = arith.constant 0 : index
    %c0_74 = arith.constant 0 : index
    %197 = vector.load %arg4[%c1_72, %c0_73, %c0_74] : memref<3x64x384xbf16, #tpu.memory_space<vmem>>, vector<1x64x384xbf16>
    %198 = vector.shape_cast %197 : vector<1x64x384xbf16> to vector<64x384xbf16>
    %cst_75 = arith.constant dense<0.000000e+00> : vector<16x384xf32>
    %199 = tpu.matmul %193, %198, %cst_75 {dimension_numbers = #tpu.dot_dimension_numbers<[1], [0], [0], [1], [0, 0, 1, 1], [], []>} : vector<16x64xbf16>, vector<64x384xbf16>, vector<16x384xf32> -> vector<16x384xf32>
    %c1_76 = arith.constant 1 : index
    %c0_77 = arith.constant 0 : index
    %c0_78 = arith.constant 0 : index
    %200 = vector.load %arg5[%c1_76, %c0_77, %c0_78] : memref<3x64x384xbf16, #tpu.memory_space<vmem>>, vector<1x64x384xbf16>
    %201 = vector.shape_cast %200 : vector<1x64x384xbf16> to vector<64x384xbf16>
    %cst_79 = arith.constant dense<0.000000e+00> : vector<16x384xf32>
    %202 = tpu.matmul %193, %201, %cst_79 {dimension_numbers = #tpu.dot_dimension_numbers<[1], [0], [0], [1], [0, 0, 1, 1], [], []>} : vector<16x64xbf16>, vector<64x384xbf16>, vector<16x384xf32> -> vector<16x384xf32>
    %203 = vector.extract_strided_slice %196 {offsets = [0, 0], sizes = [8, 384], strides = [1, 1]} : vector<16x384xf32> to vector<8x384xf32>
    %204 = arith.truncf %203 : vector<8x384xf32> to vector<8x384xbf16>
    %205 = vector.extract_strided_slice %199 {offsets = [0, 0], sizes = [8, 384], strides = [1, 1]} : vector<16x384xf32> to vector<8x384xf32>
    %206 = arith.truncf %205 : vector<8x384xf32> to vector<8x384xbf16>
    %207 = vector.extract_strided_slice %202 {offsets = [0, 0], sizes = [8, 384], strides = [1, 1]} : vector<16x384xf32> to vector<8x384xf32>
    %208 = arith.truncf %207 : vector<8x384xf32> to vector<8x384xbf16>
    %209 = vector.extract_strided_slice %204 {offsets = [0, 0], sizes = [8, 128], strides = [1, 1]} : vector<8x384xbf16> to vector<8x128xbf16>
    %210 = vector.extract_strided_slice %206 {offsets = [0, 0], sizes = [8, 128], strides = [1, 1]} : vector<8x384xbf16> to vector<8x128xbf16>
    %211 = vector.extract_strided_slice %208 {offsets = [0, 0], sizes = [8, 128], strides = [1, 1]} : vector<8x384xbf16> to vector<8x128xbf16>
    %cst_80 = arith.constant dense<0.000000e+00> : vector<8x8xf32>
    %212 = tpu.matmul %209, %210, %cst_80 {dimension_numbers = #tpu.dot_dimension_numbers<[1], [1], [0], [0], [0, 0, 1, 0], [], []>} : vector<8x128xbf16>, vector<8x128xbf16>, vector<8x8xf32> -> vector<8x8xf32>
    %213 = arith.addf %212, %5 : vector<8x8xf32>
    %cst_81 = arith.constant dense<0xFF800000> : vector<8xf32>
    %214 = vector.multi_reduction <maximumf>, %213, %cst_81 [1] : vector<8x8xf32> to vector<8xf32>
    %215 = vector.shape_cast %214 : vector<8xf32> to vector<8x1xf32>
    %216 = vector.broadcast %215 : vector<8x1xf32> to vector<8x8xf32>
    %217 = arith.subf %213, %216 : vector<8x8xf32>
    %218 = math.exp %217 : vector<8x8xf32>
    %cst_82 = arith.constant dense<0.000000e+00> : vector<8xf32>
    %219 = vector.multi_reduction <add>, %218, %cst_82 [1] : vector<8x8xf32> to vector<8xf32>
    %220 = vector.shape_cast %219 : vector<8xf32> to vector<8x1xf32>
    %221 = vector.broadcast %220 : vector<8x1xf32> to vector<8x8xf32>
    %222 = arith.divf %218, %221 : vector<8x8xf32>
    %223 = arith.truncf %222 : vector<8x8xf32> to vector<8x8xbf16>
    %cst_83 = arith.constant dense<0.000000e+00> : vector<8x128xf32>
    %224 = tpu.matmul %223, %211, %cst_83 {dimension_numbers = #tpu.dot_dimension_numbers<[1], [0], [0], [1], [0, 0, 1, 1], [], []>} : vector<8x8xbf16>, vector<8x128xbf16>, vector<8x128xf32> -> vector<8x128xf32>
    %225 = vector.extract_strided_slice %204 {offsets = [0, 128], sizes = [8, 128], strides = [1, 1]} : vector<8x384xbf16> to vector<8x128xbf16>
    %226 = vector.extract_strided_slice %206 {offsets = [0, 128], sizes = [8, 128], strides = [1, 1]} : vector<8x384xbf16> to vector<8x128xbf16>
    %227 = vector.extract_strided_slice %208 {offsets = [0, 128], sizes = [8, 128], strides = [1, 1]} : vector<8x384xbf16> to vector<8x128xbf16>
    %cst_84 = arith.constant dense<0.000000e+00> : vector<8x8xf32>
    %228 = tpu.matmul %225, %226, %cst_84 {dimension_numbers = #tpu.dot_dimension_numbers<[1], [1], [0], [0], [0, 0, 1, 0], [], []>} : vector<8x128xbf16>, vector<8x128xbf16>, vector<8x8xf32> -> vector<8x8xf32>
    %229 = arith.addf %228, %5 : vector<8x8xf32>
    %cst_85 = arith.constant dense<0xFF800000> : vector<8xf32>
    %230 = vector.multi_reduction <maximumf>, %229, %cst_85 [1] : vector<8x8xf32> to vector<8xf32>
    %231 = vector.shape_cast %230 : vector<8xf32> to vector<8x1xf32>
    %232 = vector.broadcast %231 : vector<8x1xf32> to vector<8x8xf32>
    %233 = arith.subf %229, %232 : vector<8x8xf32>
    %234 = math.exp %233 : vector<8x8xf32>
    %cst_86 = arith.constant dense<0.000000e+00> : vector<8xf32>
    %235 = vector.multi_reduction <add>, %234, %cst_86 [1] : vector<8x8xf32> to vector<8xf32>
    %236 = vector.shape_cast %235 : vector<8xf32> to vector<8x1xf32>
    %237 = vector.broadcast %236 : vector<8x1xf32> to vector<8x8xf32>
    %238 = arith.divf %234, %237 : vector<8x8xf32>
    %239 = arith.truncf %238 : vector<8x8xf32> to vector<8x8xbf16>
    %cst_87 = arith.constant dense<0.000000e+00> : vector<8x128xf32>
    %240 = tpu.matmul %239, %227, %cst_87 {dimension_numbers = #tpu.dot_dimension_numbers<[1], [0], [0], [1], [0, 0, 1, 1], [], []>} : vector<8x8xbf16>, vector<8x128xbf16>, vector<8x128xf32> -> vector<8x128xf32>
    %241 = vector.extract_strided_slice %204 {offsets = [0, 256], sizes = [8, 128], strides = [1, 1]} : vector<8x384xbf16> to vector<8x128xbf16>
    %242 = vector.extract_strided_slice %206 {offsets = [0, 256], sizes = [8, 128], strides = [1, 1]} : vector<8x384xbf16> to vector<8x128xbf16>
    %243 = vector.extract_strided_slice %208 {offsets = [0, 256], sizes = [8, 128], strides = [1, 1]} : vector<8x384xbf16> to vector<8x128xbf16>
    %cst_88 = arith.constant dense<0.000000e+00> : vector<8x8xf32>
    %244 = tpu.matmul %241, %242, %cst_88 {dimension_numbers = #tpu.dot_dimension_numbers<[1], [1], [0], [0], [0, 0, 1, 0], [], []>} : vector<8x128xbf16>, vector<8x128xbf16>, vector<8x8xf32> -> vector<8x8xf32>
    %245 = arith.addf %244, %5 : vector<8x8xf32>
    %cst_89 = arith.constant dense<0xFF800000> : vector<8xf32>
    %246 = vector.multi_reduction <maximumf>, %245, %cst_89 [1] : vector<8x8xf32> to vector<8xf32>
    %247 = vector.shape_cast %246 : vector<8xf32> to vector<8x1xf32>
    %248 = vector.broadcast %247 : vector<8x1xf32> to vector<8x8xf32>
    %249 = arith.subf %245, %248 : vector<8x8xf32>
    %250 = math.exp %249 : vector<8x8xf32>
    %cst_90 = arith.constant dense<0.000000e+00> : vector<8xf32>
    %251 = vector.multi_reduction <add>, %250, %cst_90 [1] : vector<8x8xf32> to vector<8xf32>
    %252 = vector.shape_cast %251 : vector<8xf32> to vector<8x1xf32>
    %253 = vector.broadcast %252 : vector<8x1xf32> to vector<8x8xf32>
    %254 = arith.divf %250, %253 : vector<8x8xf32>
    %255 = arith.truncf %254 : vector<8x8xf32> to vector<8x8xbf16>
    %cst_91 = arith.constant dense<0.000000e+00> : vector<8x128xf32>
    %256 = tpu.matmul %255, %243, %cst_91 {dimension_numbers = #tpu.dot_dimension_numbers<[1], [0], [0], [1], [0, 0, 1, 1], [], []>} : vector<8x8xbf16>, vector<8x128xbf16>, vector<8x128xf32> -> vector<8x128xf32>
    %257 = tpu.concatenate %222, %238, %254 in 1 : vector<8x8xf32>, vector<8x8xf32>, vector<8x8xf32> -> vector<8x24xf32>
    %258 = tpu.concatenate %224, %240, %256 in 1 : vector<8x128xf32>, vector<8x128xf32>, vector<8x128xf32> -> vector<8x384xf32>
    %259 = vector.extract_strided_slice %196 {offsets = [8, 0], sizes = [8, 384], strides = [1, 1]} : vector<16x384xf32> to vector<8x384xf32>
    %260 = arith.truncf %259 : vector<8x384xf32> to vector<8x384xbf16>
    %261 = vector.extract_strided_slice %199 {offsets = [8, 0], sizes = [8, 384], strides = [1, 1]} : vector<16x384xf32> to vector<8x384xf32>
    %262 = arith.truncf %261 : vector<8x384xf32> to vector<8x384xbf16>
    %263 = vector.extract_strided_slice %202 {offsets = [8, 0], sizes = [8, 384], strides = [1, 1]} : vector<16x384xf32> to vector<8x384xf32>
    %264 = arith.truncf %263 : vector<8x384xf32> to vector<8x384xbf16>
    %265 = vector.extract_strided_slice %260 {offsets = [0, 0], sizes = [8, 128], strides = [1, 1]} : vector<8x384xbf16> to vector<8x128xbf16>
    %266 = vector.extract_strided_slice %262 {offsets = [0, 0], sizes = [8, 128], strides = [1, 1]} : vector<8x384xbf16> to vector<8x128xbf16>
    %267 = vector.extract_strided_slice %264 {offsets = [0, 0], sizes = [8, 128], strides = [1, 1]} : vector<8x384xbf16> to vector<8x128xbf16>
    %cst_92 = arith.constant dense<0.000000e+00> : vector<8x8xf32>
    %268 = tpu.matmul %265, %266, %cst_92 {dimension_numbers = #tpu.dot_dimension_numbers<[1], [1], [0], [0], [0, 0, 1, 0], [], []>} : vector<8x128xbf16>, vector<8x128xbf16>, vector<8x8xf32> -> vector<8x8xf32>
    %269 = arith.addf %268, %9 : vector<8x8xf32>
    %cst_93 = arith.constant dense<0xFF800000> : vector<8xf32>
    %270 = vector.multi_reduction <maximumf>, %269, %cst_93 [1] : vector<8x8xf32> to vector<8xf32>
    %271 = vector.shape_cast %270 : vector<8xf32> to vector<8x1xf32>
    %272 = vector.broadcast %271 : vector<8x1xf32> to vector<8x8xf32>
    %273 = arith.subf %269, %272 : vector<8x8xf32>
    %274 = math.exp %273 : vector<8x8xf32>
    %cst_94 = arith.constant dense<0.000000e+00> : vector<8xf32>
    %275 = vector.multi_reduction <add>, %274, %cst_94 [1] : vector<8x8xf32> to vector<8xf32>
    %276 = vector.shape_cast %275 : vector<8xf32> to vector<8x1xf32>
    %277 = vector.broadcast %276 : vector<8x1xf32> to vector<8x8xf32>
    %278 = arith.divf %274, %277 : vector<8x8xf32>
    %279 = arith.truncf %278 : vector<8x8xf32> to vector<8x8xbf16>
    %cst_95 = arith.constant dense<0.000000e+00> : vector<8x128xf32>
    %280 = tpu.matmul %279, %267, %cst_95 {dimension_numbers = #tpu.dot_dimension_numbers<[1], [0], [0], [1], [0, 0, 1, 1], [], []>} : vector<8x8xbf16>, vector<8x128xbf16>, vector<8x128xf32> -> vector<8x128xf32>
    %281 = vector.extract_strided_slice %260 {offsets = [0, 128], sizes = [8, 128], strides = [1, 1]} : vector<8x384xbf16> to vector<8x128xbf16>
    %282 = vector.extract_strided_slice %262 {offsets = [0, 128], sizes = [8, 128], strides = [1, 1]} : vector<8x384xbf16> to vector<8x128xbf16>
    %283 = vector.extract_strided_slice %264 {offsets = [0, 128], sizes = [8, 128], strides = [1, 1]} : vector<8x384xbf16> to vector<8x128xbf16>
    %cst_96 = arith.constant dense<0.000000e+00> : vector<8x8xf32>
    %284 = tpu.matmul %281, %282, %cst_96 {dimension_numbers = #tpu.dot_dimension_numbers<[1], [1], [0], [0], [0, 0, 1, 0], [], []>} : vector<8x128xbf16>, vector<8x128xbf16>, vector<8x8xf32> -> vector<8x8xf32>
    %285 = arith.addf %284, %9 : vector<8x8xf32>
    %cst_97 = arith.constant dense<0xFF800000> : vector<8xf32>
    %286 = vector.multi_reduction <maximumf>, %285, %cst_97 [1] : vector<8x8xf32> to vector<8xf32>
    %287 = vector.shape_cast %286 : vector<8xf32> to vector<8x1xf32>
    %288 = vector.broadcast %287 : vector<8x1xf32> to vector<8x8xf32>
    %289 = arith.subf %285, %288 : vector<8x8xf32>
    %290 = math.exp %289 : vector<8x8xf32>
    %cst_98 = arith.constant dense<0.000000e+00> : vector<8xf32>
    %291 = vector.multi_reduction <add>, %290, %cst_98 [1] : vector<8x8xf32> to vector<8xf32>
    %292 = vector.shape_cast %291 : vector<8xf32> to vector<8x1xf32>
    %293 = vector.broadcast %292 : vector<8x1xf32> to vector<8x8xf32>
    %294 = arith.divf %290, %293 : vector<8x8xf32>
    %295 = arith.truncf %294 : vector<8x8xf32> to vector<8x8xbf16>
    %cst_99 = arith.constant dense<0.000000e+00> : vector<8x128xf32>
    %296 = tpu.matmul %295, %283, %cst_99 {dimension_numbers = #tpu.dot_dimension_numbers<[1], [0], [0], [1], [0, 0, 1, 1], [], []>} : vector<8x8xbf16>, vector<8x128xbf16>, vector<8x128xf32> -> vector<8x128xf32>
    %297 = vector.extract_strided_slice %260 {offsets = [0, 256], sizes = [8, 128], strides = [1, 1]} : vector<8x384xbf16> to vector<8x128xbf16>
    %298 = vector.extract_strided_slice %262 {offsets = [0, 256], sizes = [8, 128], strides = [1, 1]} : vector<8x384xbf16> to vector<8x128xbf16>
    %299 = vector.extract_strided_slice %264 {offsets = [0, 256], sizes = [8, 128], strides = [1, 1]} : vector<8x384xbf16> to vector<8x128xbf16>
    %cst_100 = arith.constant dense<0.000000e+00> : vector<8x8xf32>
    %300 = tpu.matmul %297, %298, %cst_100 {dimension_numbers = #tpu.dot_dimension_numbers<[1], [1], [0], [0], [0, 0, 1, 0], [], []>} : vector<8x128xbf16>, vector<8x128xbf16>, vector<8x8xf32> -> vector<8x8xf32>
    %301 = arith.addf %300, %9 : vector<8x8xf32>
    %cst_101 = arith.constant dense<0xFF800000> : vector<8xf32>
    %302 = vector.multi_reduction <maximumf>, %301, %cst_101 [1] : vector<8x8xf32> to vector<8xf32>
    %303 = vector.shape_cast %302 : vector<8xf32> to vector<8x1xf32>
    %304 = vector.broadcast %303 : vector<8x1xf32> to vector<8x8xf32>
    %305 = arith.subf %301, %304 : vector<8x8xf32>
    %306 = math.exp %305 : vector<8x8xf32>
    %cst_102 = arith.constant dense<0.000000e+00> : vector<8xf32>
    %307 = vector.multi_reduction <add>, %306, %cst_102 [1] : vector<8x8xf32> to vector<8xf32>
    %308 = vector.shape_cast %307 : vector<8xf32> to vector<8x1xf32>
    %309 = vector.broadcast %308 : vector<8x1xf32> to vector<8x8xf32>
    %310 = arith.divf %306, %309 : vector<8x8xf32>
    %311 = arith.truncf %310 : vector<8x8xf32> to vector<8x8xbf16>
    %cst_103 = arith.constant dense<0.000000e+00> : vector<8x128xf32>
    %312 = tpu.matmul %311, %299, %cst_103 {dimension_numbers = #tpu.dot_dimension_numbers<[1], [0], [0], [1], [0, 0, 1, 1], [], []>} : vector<8x8xbf16>, vector<8x128xbf16>, vector<8x128xf32> -> vector<8x128xf32>
    %313 = tpu.concatenate %278, %294, %310 in 1 : vector<8x8xf32>, vector<8x8xf32>, vector<8x8xf32> -> vector<8x24xf32>
    %314 = tpu.concatenate %280, %296, %312 in 1 : vector<8x128xf32>, vector<8x128xf32>, vector<8x128xf32> -> vector<8x384xf32>
    %315 = tpu.concatenate %257, %313 in 0 : vector<8x24xf32>, vector<8x24xf32> -> vector<16x24xf32>
    %c1_104 = arith.constant 1 : index
    %c0_105 = arith.constant 0 : index
    %c0_106 = arith.constant 0 : index
    %316 = vector.load %arg10[%c1_104, %c0_105, %c0_106] : memref<3x16x24xf32, #tpu.memory_space<vmem>>, vector<1x16x24xf32>
    %317 = vector.shape_cast %316 : vector<1x16x24xf32> to vector<16x24xf32>
    %318 = vector.shape_cast %315 : vector<16x24xf32> to vector<1x16x24xf32>
    tpu.vector_store %arg10[%c1_104, %c0_105, %c0_106], %318 {strides = array<i32>} : memref<3x16x24xf32, #tpu.memory_space<vmem>>, vector<1x16x24xf32>,
    %319 = tpu.concatenate %258, %314 in 0 : vector<8x384xf32>, vector<8x384xf32> -> vector<16x384xf32>
    %320 = arith.truncf %319 : vector<16x384xf32> to vector<16x384xbf16>
    %c1_107 = arith.constant 1 : index
    %c0_108 = arith.constant 0 : index
    %c0_109 = arith.constant 0 : index
    %321 = vector.load %arg6[%c1_107, %c0_108, %c0_109] : memref<3x384x64xbf16, #tpu.memory_space<vmem>>, vector<1x384x64xbf16>
    %322 = vector.shape_cast %321 : vector<1x384x64xbf16> to vector<384x64xbf16>
    %cst_110 = arith.constant dense<0.000000e+00> : vector<16x64xf32>
    %323 = tpu.matmul %320, %322, %cst_110 {dimension_numbers = #tpu.dot_dimension_numbers<[1], [0], [0], [1], [0, 0, 1, 1], [], []>} : vector<16x384xbf16>, vector<384x64xbf16>, vector<16x64xf32> -> vector<16x64xf32>
    %324 = arith.addf %323, %192 : vector<16x64xf32>
    %cst_111 = arith.constant dense<0.000000e+00> : vector<16xf32>
    %325 = vector.multi_reduction <add>, %324, %cst_111 [1] : vector<16x64xf32> to vector<16xf32>
    %326 = vector.shape_cast %325 : vector<16xf32> to vector<16x1xf32>
    %cst_112 = arith.constant 6.400000e+01 : f32
    %327 = vector.broadcast %cst_112 : f32 to vector<16x1xf32>
    %328 = arith.divf %326, %327 : vector<16x1xf32>
    %329 = vector.broadcast %328 : vector<16x1xf32> to vector<16x64xf32>
    %330 = arith.subf %324, %329 : vector<16x64xf32>
    %331 = vector.broadcast %328 : vector<16x1xf32> to vector<16x64xf32>
    %332 = arith.subf %324, %331 : vector<16x64xf32>
    %333 = arith.mulf %330, %332 : vector<16x64xf32>
    %cst_113 = arith.constant dense<0.000000e+00> : vector<16xf32>
    %334 = vector.multi_reduction <add>, %333, %cst_113 [1] : vector<16x64xf32> to vector<16xf32>
    %335 = vector.shape_cast %334 : vector<16xf32> to vector<16x1xf32>
    %cst_114 = arith.constant 6.400000e+01 : f32
    %336 = vector.broadcast %cst_114 : f32 to vector<16x1xf32>
    %337 = arith.divf %335, %336 : vector<16x1xf32>
    %338 = vector.broadcast %328 : vector<16x1xf32> to vector<16x64xf32>
    %339 = arith.subf %324, %338 : vector<16x64xf32>
    %cst_115 = arith.constant 9.99999974E-6 : f32
    %340 = vector.broadcast %cst_115 : f32 to vector<16x1xf32>
    %341 = arith.addf %337, %340 : vector<16x1xf32>
    %342 = math.rsqrt %341 : vector<16x1xf32>
    %343 = vector.broadcast %342 : vector<16x1xf32> to vector<16x64xf32>
    %344 = arith.mulf %339, %343 : vector<16x64xf32>
    %345 = arith.truncf %344 : vector<16x64xf32> to vector<16x64xbf16>
    %c1_116 = arith.constant 1 : index
    %c0_117 = arith.constant 0 : index
    %c0_118 = arith.constant 0 : index
    %346 = vector.load %arg7[%c1_116, %c0_117, %c0_118] : memref<3x64x512xbf16, #tpu.memory_space<vmem>>, vector<1x64x512xbf16>
    %347 = vector.shape_cast %346 : vector<1x64x512xbf16> to vector<64x512xbf16>
    %cst_119 = arith.constant dense<0.000000e+00> : vector<16x512xf32>
    %348 = tpu.matmul %345, %347, %cst_119 {dimension_numbers = #tpu.dot_dimension_numbers<[1], [0], [0], [1], [0, 0, 1, 1], [], []>} : vector<16x64xbf16>, vector<64x512xbf16>, vector<16x512xf32> -> vector<16x512xf32>
    %cst_120 = arith.constant 0.000000e+00 : f32
    %349 = vector.broadcast %cst_120 : f32 to vector<16x512xf32>
    %350 = arith.maximumf %348, %349 : vector<16x512xf32>
    %351 = arith.truncf %350 : vector<16x512xf32> to vector<16x512xbf16>
    %c1_121 = arith.constant 1 : index
    %c0_122 = arith.constant 0 : index
    %c0_123 = arith.constant 0 : index
    %352 = vector.load %arg8[%c1_121, %c0_122, %c0_123] : memref<3x512x64xbf16, #tpu.memory_space<vmem>>, vector<1x512x64xbf16>
    %353 = vector.shape_cast %352 : vector<1x512x64xbf16> to vector<512x64xbf16>
    %cst_124 = arith.constant dense<0.000000e+00> : vector<16x64xf32>
    %354 = tpu.matmul %351, %353, %cst_124 {dimension_numbers = #tpu.dot_dimension_numbers<[1], [0], [0], [1], [0, 0, 1, 1], [], []>} : vector<16x512xbf16>, vector<512x64xbf16>, vector<16x64xf32> -> vector<16x64xf32>
    %355 = arith.addf %354, %344 : vector<16x64xf32>
    %cst_125 = arith.constant dense<0.000000e+00> : vector<16xf32>
    %356 = vector.multi_reduction <add>, %355, %cst_125 [1] : vector<16x64xf32> to vector<16xf32>
    %357 = vector.shape_cast %356 : vector<16xf32> to vector<16x1xf32>
    %cst_126 = arith.constant 6.400000e+01 : f32
    %358 = vector.broadcast %cst_126 : f32 to vector<16x1xf32>
    %359 = arith.divf %357, %358 : vector<16x1xf32>
    %360 = vector.broadcast %359 : vector<16x1xf32> to vector<16x64xf32>
    %361 = arith.subf %355, %360 : vector<16x64xf32>
    %362 = vector.broadcast %359 : vector<16x1xf32> to vector<16x64xf32>
    %363 = arith.subf %355, %362 : vector<16x64xf32>
    %364 = arith.mulf %361, %363 : vector<16x64xf32>
    %cst_127 = arith.constant dense<0.000000e+00> : vector<16xf32>
    %365 = vector.multi_reduction <add>, %364, %cst_127 [1] : vector<16x64xf32> to vector<16xf32>
    %366 = vector.shape_cast %365 : vector<16xf32> to vector<16x1xf32>
    %cst_128 = arith.constant 6.400000e+01 : f32
    %367 = vector.broadcast %cst_128 : f32 to vector<16x1xf32>
    %368 = arith.divf %366, %367 : vector<16x1xf32>
    %369 = vector.broadcast %359 : vector<16x1xf32> to vector<16x64xf32>
    %370 = arith.subf %355, %369 : vector<16x64xf32>
    %cst_129 = arith.constant 9.99999974E-6 : f32
    %371 = vector.broadcast %cst_129 : f32 to vector<16x1xf32>
    %372 = arith.addf %368, %371 : vector<16x1xf32>
    %373 = math.rsqrt %372 : vector<16x1xf32>
    %374 = vector.broadcast %373 : vector<16x1xf32> to vector<16x64xf32>
    %375 = arith.mulf %370, %374 : vector<16x64xf32>
    %376 = arith.truncf %375 : vector<16x64xf32> to vector<16x64xbf16>
    %c2 = arith.constant 2 : index
    %c0_130 = arith.constant 0 : index
    %c0_131 = arith.constant 0 : index
    %377 = vector.load %arg3[%c2, %c0_130, %c0_131] : memref<3x64x384xbf16, #tpu.memory_space<vmem>>, vector<1x64x384xbf16>
    %378 = vector.shape_cast %377 : vector<1x64x384xbf16> to vector<64x384xbf16>
    %cst_132 = arith.constant dense<0.000000e+00> : vector<16x384xf32>
    %379 = tpu.matmul %376, %378, %cst_132 {dimension_numbers = #tpu.dot_dimension_numbers<[1], [0], [0], [1], [0, 0, 1, 1], [], []>} : vector<16x64xbf16>, vector<64x384xbf16>, vector<16x384xf32> -> vector<16x384xf32>
    %c2_133 = arith.constant 2 : index
    %c0_134 = arith.constant 0 : index
    %c0_135 = arith.constant 0 : index
    %380 = vector.load %arg4[%c2_133, %c0_134, %c0_135] : memref<3x64x384xbf16, #tpu.memory_space<vmem>>, vector<1x64x384xbf16>
    %381 = vector.shape_cast %380 : vector<1x64x384xbf16> to vector<64x384xbf16>
    %cst_136 = arith.constant dense<0.000000e+00> : vector<16x384xf32>
    %382 = tpu.matmul %376, %381, %cst_136 {dimension_numbers = #tpu.dot_dimension_numbers<[1], [0], [0], [1], [0, 0, 1, 1], [], []>} : vector<16x64xbf16>, vector<64x384xbf16>, vector<16x384xf32> -> vector<16x384xf32>
    %c2_137 = arith.constant 2 : index
    %c0_138 = arith.constant 0 : index
    %c0_139 = arith.constant 0 : index
    %383 = vector.load %arg5[%c2_137, %c0_138, %c0_139] : memref<3x64x384xbf16, #tpu.memory_space<vmem>>, vector<1x64x384xbf16>
    %384 = vector.shape_cast %383 : vector<1x64x384xbf16> to vector<64x384xbf16>
    %cst_140 = arith.constant dense<0.000000e+00> : vector<16x384xf32>
    %385 = tpu.matmul %376, %384, %cst_140 {dimension_numbers = #tpu.dot_dimension_numbers<[1], [0], [0], [1], [0, 0, 1, 1], [], []>} : vector<16x64xbf16>, vector<64x384xbf16>, vector<16x384xf32> -> vector<16x384xf32>
    %386 = vector.extract_strided_slice %379 {offsets = [0, 0], sizes = [8, 384], strides = [1, 1]} : vector<16x384xf32> to vector<8x384xf32>
    %387 = arith.truncf %386 : vector<8x384xf32> to vector<8x384xbf16>
    %388 = vector.extract_strided_slice %382 {offsets = [0, 0], sizes = [8, 384], strides = [1, 1]} : vector<16x384xf32> to vector<8x384xf32>
    %389 = arith.truncf %388 : vector<8x384xf32> to vector<8x384xbf16>
    %390 = vector.extract_strided_slice %385 {offsets = [0, 0], sizes = [8, 384], strides = [1, 1]} : vector<16x384xf32> to vector<8x384xf32>
    %391 = arith.truncf %390 : vector<8x384xf32> to vector<8x384xbf16>
    %392 = vector.extract_strided_slice %387 {offsets = [0, 0], sizes = [8, 128], strides = [1, 1]} : vector<8x384xbf16> to vector<8x128xbf16>
    %393 = vector.extract_strided_slice %389 {offsets = [0, 0], sizes = [8, 128], strides = [1, 1]} : vector<8x384xbf16> to vector<8x128xbf16>
    %394 = vector.extract_strided_slice %391 {offsets = [0, 0], sizes = [8, 128], strides = [1, 1]} : vector<8x384xbf16> to vector<8x128xbf16>
    %cst_141 = arith.constant dense<0.000000e+00> : vector<8x8xf32>
    %395 = tpu.matmul %392, %393, %cst_141 {dimension_numbers = #tpu.dot_dimension_numbers<[1], [1], [0], [0], [0, 0, 1, 0], [], []>} : vector<8x128xbf16>, vector<8x128xbf16>, vector<8x8xf32> -> vector<8x8xf32>
    %396 = arith.addf %395, %5 : vector<8x8xf32>
    %cst_142 = arith.constant dense<0xFF800000> : vector<8xf32>
    %397 = vector.multi_reduction <maximumf>, %396, %cst_142 [1] : vector<8x8xf32> to vector<8xf32>
    %398 = vector.shape_cast %397 : vector<8xf32> to vector<8x1xf32>
    %399 = vector.broadcast %398 : vector<8x1xf32> to vector<8x8xf32>
    %400 = arith.subf %396, %399 : vector<8x8xf32>
    %401 = math.exp %400 : vector<8x8xf32>
    %cst_143 = arith.constant dense<0.000000e+00> : vector<8xf32>
    %402 = vector.multi_reduction <add>, %401, %cst_143 [1] : vector<8x8xf32> to vector<8xf32>
    %403 = vector.shape_cast %402 : vector<8xf32> to vector<8x1xf32>
    %404 = vector.broadcast %403 : vector<8x1xf32> to vector<8x8xf32>
    %405 = arith.divf %401, %404 : vector<8x8xf32>
    %406 = arith.truncf %405 : vector<8x8xf32> to vector<8x8xbf16>
    %cst_144 = arith.constant dense<0.000000e+00> : vector<8x128xf32>
    %407 = tpu.matmul %406, %394, %cst_144 {dimension_numbers = #tpu.dot_dimension_numbers<[1], [0], [0], [1], [0, 0, 1, 1], [], []>} : vector<8x8xbf16>, vector<8x128xbf16>, vector<8x128xf32> -> vector<8x128xf32>
    %408 = vector.extract_strided_slice %387 {offsets = [0, 128], sizes = [8, 128], strides = [1, 1]} : vector<8x384xbf16> to vector<8x128xbf16>
    %409 = vector.extract_strided_slice %389 {offsets = [0, 128], sizes = [8, 128], strides = [1, 1]} : vector<8x384xbf16> to vector<8x128xbf16>
    %410 = vector.extract_strided_slice %391 {offsets = [0, 128], sizes = [8, 128], strides = [1, 1]} : vector<8x384xbf16> to vector<8x128xbf16>
    %cst_145 = arith.constant dense<0.000000e+00> : vector<8x8xf32>
    %411 = tpu.matmul %408, %409, %cst_145 {dimension_numbers = #tpu.dot_dimension_numbers<[1], [1], [0], [0], [0, 0, 1, 0], [], []>} : vector<8x128xbf16>, vector<8x128xbf16>, vector<8x8xf32> -> vector<8x8xf32>
    %412 = arith.addf %411, %5 : vector<8x8xf32>
    %cst_146 = arith.constant dense<0xFF800000> : vector<8xf32>
    %413 = vector.multi_reduction <maximumf>, %412, %cst_146 [1] : vector<8x8xf32> to vector<8xf32>
    %414 = vector.shape_cast %413 : vector<8xf32> to vector<8x1xf32>
    %415 = vector.broadcast %414 : vector<8x1xf32> to vector<8x8xf32>
    %416 = arith.subf %412, %415 : vector<8x8xf32>
    %417 = math.exp %416 : vector<8x8xf32>
    %cst_147 = arith.constant dense<0.000000e+00> : vector<8xf32>
    %418 = vector.multi_reduction <add>, %417, %cst_147 [1] : vector<8x8xf32> to vector<8xf32>
    %419 = vector.shape_cast %418 : vector<8xf32> to vector<8x1xf32>
    %420 = vector.broadcast %419 : vector<8x1xf32> to vector<8x8xf32>
    %421 = arith.divf %417, %420 : vector<8x8xf32>
    %422 = arith.truncf %421 : vector<8x8xf32> to vector<8x8xbf16>
    %cst_148 = arith.constant dense<0.000000e+00> : vector<8x128xf32>
    %423 = tpu.matmul %422, %410, %cst_148 {dimension_numbers = #tpu.dot_dimension_numbers<[1], [0], [0], [1], [0, 0, 1, 1], [], []>} : vector<8x8xbf16>, vector<8x128xbf16>, vector<8x128xf32> -> vector<8x128xf32>
    %424 = vector.extract_strided_slice %387 {offsets = [0, 256], sizes = [8, 128], strides = [1, 1]} : vector<8x384xbf16> to vector<8x128xbf16>
    %425 = vector.extract_strided_slice %389 {offsets = [0, 256], sizes = [8, 128], strides = [1, 1]} : vector<8x384xbf16> to vector<8x128xbf16>
    %426 = vector.extract_strided_slice %391 {offsets = [0, 256], sizes = [8, 128], strides = [1, 1]} : vector<8x384xbf16> to vector<8x128xbf16>
    %cst_149 = arith.constant dense<0.000000e+00> : vector<8x8xf32>
    %427 = tpu.matmul %424, %425, %cst_149 {dimension_numbers = #tpu.dot_dimension_numbers<[1], [1], [0], [0], [0, 0, 1, 0], [], []>} : vector<8x128xbf16>, vector<8x128xbf16>, vector<8x8xf32> -> vector<8x8xf32>
    %428 = arith.addf %427, %5 : vector<8x8xf32>
    %cst_150 = arith.constant dense<0xFF800000> : vector<8xf32>
    %429 = vector.multi_reduction <maximumf>, %428, %cst_150 [1] : vector<8x8xf32> to vector<8xf32>
    %430 = vector.shape_cast %429 : vector<8xf32> to vector<8x1xf32>
    %431 = vector.broadcast %430 : vector<8x1xf32> to vector<8x8xf32>
    %432 = arith.subf %428, %431 : vector<8x8xf32>
    %433 = math.exp %432 : vector<8x8xf32>
    %cst_151 = arith.constant dense<0.000000e+00> : vector<8xf32>
    %434 = vector.multi_reduction <add>, %433, %cst_151 [1] : vector<8x8xf32> to vector<8xf32>
    %435 = vector.shape_cast %434 : vector<8xf32> to vector<8x1xf32>
    %436 = vector.broadcast %435 : vector<8x1xf32> to vector<8x8xf32>
    %437 = arith.divf %433, %436 : vector<8x8xf32>
    %438 = arith.truncf %437 : vector<8x8xf32> to vector<8x8xbf16>
    %cst_152 = arith.constant dense<0.000000e+00> : vector<8x128xf32>
    %439 = tpu.matmul %438, %426, %cst_152 {dimension_numbers = #tpu.dot_dimension_numbers<[1], [0], [0], [1], [0, 0, 1, 1], [], []>} : vector<8x8xbf16>, vector<8x128xbf16>, vector<8x128xf32> -> vector<8x128xf32>
    %440 = tpu.concatenate %405, %421, %437 in 1 : vector<8x8xf32>, vector<8x8xf32>, vector<8x8xf32> -> vector<8x24xf32>
    %441 = tpu.concatenate %407, %423, %439 in 1 : vector<8x128xf32>, vector<8x128xf32>, vector<8x128xf32> -> vector<8x384xf32>
    %442 = vector.extract_strided_slice %379 {offsets = [8, 0], sizes = [8, 384], strides = [1, 1]} : vector<16x384xf32> to vector<8x384xf32>
    %443 = arith.truncf %442 : vector<8x384xf32> to vector<8x384xbf16>
    %444 = vector.extract_strided_slice %382 {offsets = [8, 0], sizes = [8, 384], strides = [1, 1]} : vector<16x384xf32> to vector<8x384xf32>
    %445 = arith.truncf %444 : vector<8x384xf32> to vector<8x384xbf16>
    %446 = vector.extract_strided_slice %385 {offsets = [8, 0], sizes = [8, 384], strides = [1, 1]} : vector<16x384xf32> to vector<8x384xf32>
    %447 = arith.truncf %446 : vector<8x384xf32> to vector<8x384xbf16>
    %448 = vector.extract_strided_slice %443 {offsets = [0, 0], sizes = [8, 128], strides = [1, 1]} : vector<8x384xbf16> to vector<8x128xbf16>
    %449 = vector.extract_strided_slice %445 {offsets = [0, 0], sizes = [8, 128], strides = [1, 1]} : vector<8x384xbf16> to vector<8x128xbf16>
    %450 = vector.extract_strided_slice %447 {offsets = [0, 0], sizes = [8, 128], strides = [1, 1]} : vector<8x384xbf16> to vector<8x128xbf16>
    %cst_153 = arith.constant dense<0.000000e+00> : vector<8x8xf32>
    %451 = tpu.matmul %448, %449, %cst_153 {dimension_numbers = #tpu.dot_dimension_numbers<[1], [1], [0], [0], [0, 0, 1, 0], [], []>} : vector<8x128xbf16>, vector<8x128xbf16>, vector<8x8xf32> -> vector<8x8xf32>
    %452 = arith.addf %451, %9 : vector<8x8xf32>
    %cst_154 = arith.constant dense<0xFF800000> : vector<8xf32>
    %453 = vector.multi_reduction <maximumf>, %452, %cst_154 [1] : vector<8x8xf32> to vector<8xf32>
    %454 = vector.shape_cast %453 : vector<8xf32> to vector<8x1xf32>
    %455 = vector.broadcast %454 : vector<8x1xf32> to vector<8x8xf32>
    %456 = arith.subf %452, %455 : vector<8x8xf32>
    %457 = math.exp %456 : vector<8x8xf32>
    %cst_155 = arith.constant dense<0.000000e+00> : vector<8xf32>
    %458 = vector.multi_reduction <add>, %457, %cst_155 [1] : vector<8x8xf32> to vector<8xf32>
    %459 = vector.shape_cast %458 : vector<8xf32> to vector<8x1xf32>
    %460 = vector.broadcast %459 : vector<8x1xf32> to vector<8x8xf32>
    %461 = arith.divf %457, %460 : vector<8x8xf32>
    %462 = arith.truncf %461 : vector<8x8xf32> to vector<8x8xbf16>
    %cst_156 = arith.constant dense<0.000000e+00> : vector<8x128xf32>
    %463 = tpu.matmul %462, %450, %cst_156 {dimension_numbers = #tpu.dot_dimension_numbers<[1], [0], [0], [1], [0, 0, 1, 1], [], []>} : vector<8x8xbf16>, vector<8x128xbf16>, vector<8x128xf32> -> vector<8x128xf32>
    %464 = vector.extract_strided_slice %443 {offsets = [0, 128], sizes = [8, 128], strides = [1, 1]} : vector<8x384xbf16> to vector<8x128xbf16>
    %465 = vector.extract_strided_slice %445 {offsets = [0, 128], sizes = [8, 128], strides = [1, 1]} : vector<8x384xbf16> to vector<8x128xbf16>
    %466 = vector.extract_strided_slice %447 {offsets = [0, 128], sizes = [8, 128], strides = [1, 1]} : vector<8x384xbf16> to vector<8x128xbf16>
    %cst_157 = arith.constant dense<0.000000e+00> : vector<8x8xf32>
    %467 = tpu.matmul %464, %465, %cst_157 {dimension_numbers = #tpu.dot_dimension_numbers<[1], [1], [0], [0], [0, 0, 1, 0], [], []>} : vector<8x128xbf16>, vector<8x128xbf16>, vector<8x8xf32> -> vector<8x8xf32>
    %468 = arith.addf %467, %9 : vector<8x8xf32>
    %cst_158 = arith.constant dense<0xFF800000> : vector<8xf32>
    %469 = vector.multi_reduction <maximumf>, %468, %cst_158 [1] : vector<8x8xf32> to vector<8xf32>
    %470 = vector.shape_cast %469 : vector<8xf32> to vector<8x1xf32>
    %471 = vector.broadcast %470 : vector<8x1xf32> to vector<8x8xf32>
    %472 = arith.subf %468, %471 : vector<8x8xf32>
    %473 = math.exp %472 : vector<8x8xf32>
    %cst_159 = arith.constant dense<0.000000e+00> : vector<8xf32>
    %474 = vector.multi_reduction <add>, %473, %cst_159 [1] : vector<8x8xf32> to vector<8xf32>
    %475 = vector.shape_cast %474 : vector<8xf32> to vector<8x1xf32>
    %476 = vector.broadcast %475 : vector<8x1xf32> to vector<8x8xf32>
    %477 = arith.divf %473, %476 : vector<8x8xf32>
    %478 = arith.truncf %477 : vector<8x8xf32> to vector<8x8xbf16>
    %cst_160 = arith.constant dense<0.000000e+00> : vector<8x128xf32>
    %479 = tpu.matmul %478, %466, %cst_160 {dimension_numbers = #tpu.dot_dimension_numbers<[1], [0], [0], [1], [0, 0, 1, 1], [], []>} : vector<8x8xbf16>, vector<8x128xbf16>, vector<8x128xf32> -> vector<8x128xf32>
    %480 = vector.extract_strided_slice %443 {offsets = [0, 256], sizes = [8, 128], strides = [1, 1]} : vector<8x384xbf16> to vector<8x128xbf16>
    %481 = vector.extract_strided_slice %445 {offsets = [0, 256], sizes = [8, 128], strides = [1, 1]} : vector<8x384xbf16> to vector<8x128xbf16>
    %482 = vector.extract_strided_slice %447 {offsets = [0, 256], sizes = [8, 128], strides = [1, 1]} : vector<8x384xbf16> to vector<8x128xbf16>
    %cst_161 = arith.constant dense<0.000000e+00> : vector<8x8xf32>
    %483 = tpu.matmul %480, %481, %cst_161 {dimension_numbers = #tpu.dot_dimension_numbers<[1], [1], [0], [0], [0, 0, 1, 0], [], []>} : vector<8x128xbf16>, vector<8x128xbf16>, vector<8x8xf32> -> vector<8x8xf32>
    %484 = arith.addf %483, %9 : vector<8x8xf32>
    %cst_162 = arith.constant dense<0xFF800000> : vector<8xf32>
    %485 = vector.multi_reduction <maximumf>, %484, %cst_162 [1] : vector<8x8xf32> to vector<8xf32>
    %486 = vector.shape_cast %485 : vector<8xf32> to vector<8x1xf32>
    %487 = vector.broadcast %486 : vector<8x1xf32> to vector<8x8xf32>
    %488 = arith.subf %484, %487 : vector<8x8xf32>
    %489 = math.exp %488 : vector<8x8xf32>
    %cst_163 = arith.constant dense<0.000000e+00> : vector<8xf32>
    %490 = vector.multi_reduction <add>, %489, %cst_163 [1] : vector<8x8xf32> to vector<8xf32>
    %491 = vector.shape_cast %490 : vector<8xf32> to vector<8x1xf32>
    %492 = vector.broadcast %491 : vector<8x1xf32> to vector<8x8xf32>
    %493 = arith.divf %489, %492 : vector<8x8xf32>
    %494 = arith.truncf %493 : vector<8x8xf32> to vector<8x8xbf16>
    %cst_164 = arith.constant dense<0.000000e+00> : vector<8x128xf32>
    %495 = tpu.matmul %494, %482, %cst_164 {dimension_numbers = #tpu.dot_dimension_numbers<[1], [0], [0], [1], [0, 0, 1, 1], [], []>} : vector<8x8xbf16>, vector<8x128xbf16>, vector<8x128xf32> -> vector<8x128xf32>
    %496 = tpu.concatenate %461, %477, %493 in 1 : vector<8x8xf32>, vector<8x8xf32>, vector<8x8xf32> -> vector<8x24xf32>
    %497 = tpu.concatenate %463, %479, %495 in 1 : vector<8x128xf32>, vector<8x128xf32>, vector<8x128xf32> -> vector<8x384xf32>
    %498 = tpu.concatenate %440, %496 in 0 : vector<8x24xf32>, vector<8x24xf32> -> vector<16x24xf32>
    %c2_165 = arith.constant 2 : index
    %c0_166 = arith.constant 0 : index
    %c0_167 = arith.constant 0 : index
    %499 = vector.load %arg10[%c2_165, %c0_166, %c0_167] : memref<3x16x24xf32, #tpu.memory_space<vmem>>, vector<1x16x24xf32>
    %500 = vector.shape_cast %499 : vector<1x16x24xf32> to vector<16x24xf32>
    %501 = vector.shape_cast %498 : vector<16x24xf32> to vector<1x16x24xf32>
    tpu.vector_store %arg10[%c2_165, %c0_166, %c0_167], %501 {strides = array<i32>} : memref<3x16x24xf32, #tpu.memory_space<vmem>>, vector<1x16x24xf32>,
    %502 = tpu.concatenate %441, %497 in 0 : vector<8x384xf32>, vector<8x384xf32> -> vector<16x384xf32>
    %503 = arith.truncf %502 : vector<16x384xf32> to vector<16x384xbf16>
    %c2_168 = arith.constant 2 : index
    %c0_169 = arith.constant 0 : index
    %c0_170 = arith.constant 0 : index
    %504 = vector.load %arg6[%c2_168, %c0_169, %c0_170] : memref<3x384x64xbf16, #tpu.memory_space<vmem>>, vector<1x384x64xbf16>
    %505 = vector.shape_cast %504 : vector<1x384x64xbf16> to vector<384x64xbf16>
    %cst_171 = arith.constant dense<0.000000e+00> : vector<16x64xf32>
    %506 = tpu.matmul %503, %505, %cst_171 {dimension_numbers = #tpu.dot_dimension_numbers<[1], [0], [0], [1], [0, 0, 1, 1], [], []>} : vector<16x384xbf16>, vector<384x64xbf16>, vector<16x64xf32> -> vector<16x64xf32>
    %507 = arith.addf %506, %375 : vector<16x64xf32>
    %cst_172 = arith.constant dense<0.000000e+00> : vector<16xf32>
    %508 = vector.multi_reduction <add>, %507, %cst_172 [1] : vector<16x64xf32> to vector<16xf32>
    %509 = vector.shape_cast %508 : vector<16xf32> to vector<16x1xf32>
    %cst_173 = arith.constant 6.400000e+01 : f32
    %510 = vector.broadcast %cst_173 : f32 to vector<16x1xf32>
    %511 = arith.divf %509, %510 : vector<16x1xf32>
    %512 = vector.broadcast %511 : vector<16x1xf32> to vector<16x64xf32>
    %513 = arith.subf %507, %512 : vector<16x64xf32>
    %514 = vector.broadcast %511 : vector<16x1xf32> to vector<16x64xf32>
    %515 = arith.subf %507, %514 : vector<16x64xf32>
    %516 = arith.mulf %513, %515 : vector<16x64xf32>
    %cst_174 = arith.constant dense<0.000000e+00> : vector<16xf32>
    %517 = vector.multi_reduction <add>, %516, %cst_174 [1] : vector<16x64xf32> to vector<16xf32>
    %518 = vector.shape_cast %517 : vector<16xf32> to vector<16x1xf32>
    %cst_175 = arith.constant 6.400000e+01 : f32
    %519 = vector.broadcast %cst_175 : f32 to vector<16x1xf32>
    %520 = arith.divf %518, %519 : vector<16x1xf32>
    %521 = vector.broadcast %511 : vector<16x1xf32> to vector<16x64xf32>
    %522 = arith.subf %507, %521 : vector<16x64xf32>
    %cst_176 = arith.constant 9.99999974E-6 : f32
    %523 = vector.broadcast %cst_176 : f32 to vector<16x1xf32>
    %524 = arith.addf %520, %523 : vector<16x1xf32>
    %525 = math.rsqrt %524 : vector<16x1xf32>
    %526 = vector.broadcast %525 : vector<16x1xf32> to vector<16x64xf32>
    %527 = arith.mulf %522, %526 : vector<16x64xf32>
    %528 = arith.truncf %527 : vector<16x64xf32> to vector<16x64xbf16>
    %c2_177 = arith.constant 2 : index
    %c0_178 = arith.constant 0 : index
    %c0_179 = arith.constant 0 : index
    %529 = vector.load %arg7[%c2_177, %c0_178, %c0_179] : memref<3x64x512xbf16, #tpu.memory_space<vmem>>, vector<1x64x512xbf16>
    %530 = vector.shape_cast %529 : vector<1x64x512xbf16> to vector<64x512xbf16>
    %cst_180 = arith.constant dense<0.000000e+00> : vector<16x512xf32>
    %531 = tpu.matmul %528, %530, %cst_180 {dimension_numbers = #tpu.dot_dimension_numbers<[1], [0], [0], [1], [0, 0, 1, 1], [], []>} : vector<16x64xbf16>, vector<64x512xbf16>, vector<16x512xf32> -> vector<16x512xf32>
    %cst_181 = arith.constant 0.000000e+00 : f32
    %532 = vector.broadcast %cst_181 : f32 to vector<16x512xf32>
    %533 = arith.maximumf %531, %532 : vector<16x512xf32>
    %534 = arith.truncf %533 : vector<16x512xf32> to vector<16x512xbf16>
    %c2_182 = arith.constant 2 : index
    %c0_183 = arith.constant 0 : index
    %c0_184 = arith.constant 0 : index
    %535 = vector.load %arg8[%c2_182, %c0_183, %c0_184] : memref<3x512x64xbf16, #tpu.memory_space<vmem>>, vector<1x512x64xbf16>
    %536 = vector.shape_cast %535 : vector<1x512x64xbf16> to vector<512x64xbf16>
    %cst_185 = arith.constant dense<0.000000e+00> : vector<16x64xf32>
    %537 = tpu.matmul %534, %536, %cst_185 {dimension_numbers = #tpu.dot_dimension_numbers<[1], [0], [0], [1], [0, 0, 1, 1], [], []>} : vector<16x512xbf16>, vector<512x64xbf16>, vector<16x64xf32> -> vector<16x64xf32>
    %538 = arith.addf %537, %527 : vector<16x64xf32>
    %cst_186 = arith.constant dense<0.000000e+00> : vector<16xf32>
    %539 = vector.multi_reduction <add>, %538, %cst_186 [1] : vector<16x64xf32> to vector<16xf32>
    %540 = vector.shape_cast %539 : vector<16xf32> to vector<16x1xf32>
    %cst_187 = arith.constant 6.400000e+01 : f32
    %541 = vector.broadcast %cst_187 : f32 to vector<16x1xf32>
    %542 = arith.divf %540, %541 : vector<16x1xf32>
    %543 = vector.broadcast %542 : vector<16x1xf32> to vector<16x64xf32>
    %544 = arith.subf %538, %543 : vector<16x64xf32>
    %545 = vector.broadcast %542 : vector<16x1xf32> to vector<16x64xf32>
    %546 = arith.subf %538, %545 : vector<16x64xf32>
    %547 = arith.mulf %544, %546 : vector<16x64xf32>
    %cst_188 = arith.constant dense<0.000000e+00> : vector<16xf32>
    %548 = vector.multi_reduction <add>, %547, %cst_188 [1] : vector<16x64xf32> to vector<16xf32>
    %549 = vector.shape_cast %548 : vector<16xf32> to vector<16x1xf32>
    %cst_189 = arith.constant 6.400000e+01 : f32
    %550 = vector.broadcast %cst_189 : f32 to vector<16x1xf32>
    %551 = arith.divf %549, %550 : vector<16x1xf32>
    %552 = vector.broadcast %542 : vector<16x1xf32> to vector<16x64xf32>
    %553 = arith.subf %538, %552 : vector<16x64xf32>
    %cst_190 = arith.constant 9.99999974E-6 : f32
    %554 = vector.broadcast %cst_190 : f32 to vector<16x1xf32>
    %555 = arith.addf %551, %554 : vector<16x1xf32>
    %556 = math.rsqrt %555 : vector<16x1xf32>
    %557 = vector.broadcast %556 : vector<16x1xf32> to vector<16x64xf32>
    %558 = arith.mulf %553, %557 : vector<16x64xf32>
    %559 = vector.shape_cast %558 : vector<16x64xf32> to vector<2x8x64xf32>
    %c0_191 = arith.constant 0 : index
    %c0_192 = arith.constant 0 : index
    %c0_193 = arith.constant 0 : index
    %560 = vector.load %arg9[%c0_191, %c0_192, %c0_193] : memref<2x8x64xf32, #tpu.memory_space<vmem>>, vector<2x8x64xf32>
    tpu.vector_store %arg9[%c0_191, %c0_192, %c0_193], %559 {strides = array<i32>} : memref<2x8x64xf32, #tpu.memory_space<vmem>>, vector<2x8x64xf32>,
    return
  }
  func.func @transform_0(%arg0: i32) -> (i32, i32, i32) {
    %c0_i32 = arith.constant 0 : i32
    %c0_i32_0 = arith.constant 0 : i32
    %c0_i32_1 = arith.constant 0 : i32
    return %arg0, %c0_i32, %c0_i32_0 : i32, i32, i32
  }
  func.func @transform_1(%arg0: i32) -> (i32, i32, i32) {
    %c0_i32 = arith.constant 0 : i32
    %c0_i32_0 = arith.constant 0 : i32
    %c0_i32_1 = arith.constant 0 : i32
    return %arg0, %c0_i32, %c0_i32_0 : i32, i32, i32
  }
  func.func @transform_2(%arg0: i32) -> (i32, i32, i32) {
    %c0_i32 = arith.constant 0 : i32
    %c0_i32_0 = arith.constant 0 : i32
    %c0_i32_1 = arith.constant 0 : i32
    %c0_i32_2 = arith.constant 0 : i32
    return %c0_i32, %c0_i32_0, %c0_i32_1 : i32, i32, i32
  }
  func.func @transform_3(%arg0: i32) -> (i32, i32, i32) {
    %c0_i32 = arith.constant 0 : i32
    %c0_i32_0 = arith.constant 0 : i32
    %c0_i32_1 = arith.constant 0 : i32
    %c0_i32_2 = arith.constant 0 : i32
    return %c0_i32, %c0_i32_0, %c0_i32_1 : i32, i32, i32
  }
  func.func @transform_4(%arg0: i32) -> (i32, i32, i32) {
    %c0_i32 = arith.constant 0 : i32
    %c0_i32_0 = arith.constant 0 : i32
    %c0_i32_1 = arith.constant 0 : i32
    %c0_i32_2 = arith.constant 0 : i32
    return %c0_i32, %c0_i32_0, %c0_i32_1 : i32, i32, i32
  }
  func.func @transform_5(%arg0: i32) -> (i32, i32, i32) {
    %c0_i32 = arith.constant 0 : i32
    %c0_i32_0 = arith.constant 0 : i32
    %c0_i32_1 = arith.constant 0 : i32
    %c0_i32_2 = arith.constant 0 : i32
    return %c0_i32, %c0_i32_0, %c0_i32_1 : i32, i32, i32
  }
  func.func @transform_6(%arg0: i32) -> (i32, i32, i32) {
    %c0_i32 = arith.constant 0 : i32
    %c0_i32_0 = arith.constant 0 : i32
    %c0_i32_1 = arith.constant 0 : i32
    %c0_i32_2 = arith.constant 0 : i32
    return %c0_i32, %c0_i32_0, %c0_i32_1 : i32, i32, i32
  }
  func.func @transform_7(%arg0: i32) -> (i32, i32, i32) {
    %c0_i32 = arith.constant 0 : i32
    %c0_i32_0 = arith.constant 0 : i32
    %c0_i32_1 = arith.constant 0 : i32
    %c0_i32_2 = arith.constant 0 : i32
    return %c0_i32, %c0_i32_0, %c0_i32_1 : i32, i32, i32
  }
  func.func @transform_8(%arg0: i32) -> (i32, i32, i32) {
    %c0_i32 = arith.constant 0 : i32
    %c0_i32_0 = arith.constant 0 : i32
    %c0_i32_1 = arith.constant 0 : i32
    return %arg0, %c0_i32, %c0_i32_0 : i32, i32, i32
  }
  func.func @transform_9(%arg0: i32) -> (i32, i32, i32) {
    %c0_i32 = arith.constant 0 : i32
    %c0_i32_0 = arith.constant 0 : i32
    %c0_i32_1 = arith.constant 0 : i32
    return %c0_i32, %arg0, %c0_i32_0 : i32, i32, i32
  }
}

</mosaic_0001>

<llo_original>
// kernel: tpu_custom_call.1
$region0: #{tpu_custom_call.1}
  #allocation0 [shape = 'u32[]', space=smem, size = 0x4, offset = 0x4, fixed_abs, tag = 'smem constant byte address 0x4 - core index']
  #allocation1 [shape = 'u32[72,128]{1,0:T(1,128)}', space=vmem, size = 0x9000, scoped, tag = 'internal scratch']
  %s0 = inlined_call_operand.vmem [shape: f32[2,8,64], index: 0, kind: input, shape index: {}]
  %s1 = inlined_call_operand.vmem [shape: f32[2,1,8], index: 1, kind: input, shape index: {}]
  %s2 = inlined_call_operand.vmem [shape: bf16[3,64,384], index: 2, kind: input, shape index: {}]
  %s3 = inlined_call_operand.vmem [shape: bf16[3,64,384], index: 3, kind: input, shape index: {}]
  %s4 = inlined_call_operand.vmem [shape: bf16[3,64,384], index: 4, kind: input, shape index: {}]
  %s5 = inlined_call_operand.vmem [shape: bf16[3,384,64], index: 5, kind: input, shape index: {}]
  %s6 = inlined_call_operand.vmem [shape: bf16[3,64,512], index: 6, kind: input, shape index: {}]
  %s7 = inlined_call_operand.vmem [shape: bf16[3,512,64], index: 7, kind: input, shape index: {}]
  %s8 = inlined_call_operand.hbm [shape: f32[2,8,64], index: 8, kind: output, shape index: {0}]
  %s9 = inlined_call_operand.hbm [shape: f32[3,16,24], index: 9, kind: output, shape index: {1}]
  %10 = xla_tuple %s8, %s9
  %s11 = sld [smem:[#allocation0]]
  $region50: #{tpu_custom_call.1} parent=0
    _
  %s13 = ssub.s32 1, %s11
  %s14 = scalar_select 0, %s13, %s11
  $region1: #{tpu_custom_call.1} parent=0
    #allocation2 [shape = 'u8[8192]{0}', space=vmem, size = 0x2000, scoped, tag = 'output window, operand 0, single buffered']
    #allocation3 [shape = 's32[1]{0}', space=sflag, size = 0x4, scoped, tag = 'scoped memory for tpu_custom_call.1']
    #allocation4 [shape = 'u8[24576]{0}', space=vmem, size = 0x6000, scoped, tag = 'output window, operand 1, single buffered']
    #allocation5 [shape = 's32[1]{0}', space=sflag, size = 0x4, scoped, tag = 'scoped memory for tpu_custom_call.1']
    %15 = vsyncpa [#allocation3], 0
    %16 = vsyncpa [#allocation5], 0
    // Predicated region
    $region2: #{tpu_custom_call.1} parent=1 // pred_check
      _
    $region3: #{tpu_custom_call.1} parent=1 // pred_check_branch
      %18 = sbr.rel (0) target = $region5
    $region4: #{tpu_custom_call.1} parent=1 // pred_region
      _
    $region5: #{tpu_custom_call.1} parent=1 // pred_fallthru
      _
    // Predicated region
    $region6: #{tpu_custom_call.1} parent=1 // pred_check
      _
    $region7: #{tpu_custom_call.1} parent=1 // pred_check_branch
      %20 = sbr.rel (0) target = $region9
    $region8: #{tpu_custom_call.1} parent=1 // pred_region
      _
    $region9: #{tpu_custom_call.1} parent=1 // pred_fallthru
      _
    // Predicated region
    $region10: #{tpu_custom_call.1} parent=1 // pred_check
      _
    $region11: #{tpu_custom_call.1} parent=1 // pred_check_branch
      %22 = sbr.rel (0) target = $region13
    $region12: #{tpu_custom_call.1} parent=1 // pred_region
      _
    $region13: #{tpu_custom_call.1} parent=1 // pred_fallthru
      _
    // Predicated region
    $region14: #{tpu_custom_call.1} parent=1 // pred_check
      _
    $region15: #{tpu_custom_call.1} parent=1 // pred_check_branch
      %24 = sbr.rel (0) target = $region17
    $region16: #{tpu_custom_call.1} parent=1 // pred_region
      _
    $region17: #{tpu_custom_call.1} parent=1 // pred_fallthru
      _
    // Predicated region
    $region18: #{tpu_custom_call.1} parent=1 // pred_check
      _
    $region19: #{tpu_custom_call.1} parent=1 // pred_check_branch
      %26 = sbr.rel (0) target = $region21
    $region20: #{tpu_custom_call.1} parent=1 // pred_region
      _
    $region21: #{tpu_custom_call.1} parent=1 // pred_fallthru
      _
    // Predicated region
    $region22: #{tpu_custom_call.1} parent=1 // pred_check
      _
    $region23: #{tpu_custom_call.1} parent=1 // pred_check_branch
      %28 = sbr.rel (0) target = $region25
    $region24: #{tpu_custom_call.1} parent=1 // pred_region
      _
    $region25: #{tpu_custom_call.1} parent=1 // pred_fallthru
      _
    // Predicated region
    $region26: #{tpu_custom_call.1} parent=1 // pred_check
      _
    $region27: #{tpu_custom_call.1} parent=1 // pred_check_branch
      %30 = sbr.rel (0) target = $region29
    $region28: #{tpu_custom_call.1} parent=1 // pred_region
      _
    $region29: #{tpu_custom_call.1} parent=1 // pred_fallthru
      _
    // Predicated region
    $region30: #{tpu_custom_call.1} parent=1 // pred_check
      _
    $region31: #{tpu_custom_call.1} parent=1 // pred_check_branch
      %32 = sbr.rel (0) target = $region33
    $region32: #{tpu_custom_call.1} parent=1 // pred_region
      _
    $region33: #{tpu_custom_call.1} parent=1 // pred_fallthru
      _
    %v34 = vld [vmem:[%s0] sm:$0xff]
    %v35 = vld [vmem:[%s0 + $0x8] sm:$0xff]
    %v36 = vld [vmem:[%s1] sm:$0x1]
    %v38 = vperm.slane %v36, 0
    %s40 = scalar_lea.vmem %s1, 1
    %v41 = vld [vmem:[%s40] sm:$0x1]
    %v43 = vperm.slane %v41, 0
    %v45 = vpack.c.bf16 %v35, %v34
    %v46 = vld [vmem:[%s2] sm:$0xff]
    %v47 = vld [vmem:[%s2 + $0x8] sm:$0xf]
    %v48 = vld [vmem:[%s2 + $0xc] sm:$0xff]
    %v49 = vld [vmem:[%s2 + $0x14] sm:$0xf]
    %v50 = vld [vmem:[%s2 + $0x18] sm:$0xff]
    %v51 = vld [vmem:[%s2 + $0x20] sm:$0xf]
    %v52 = vld [vmem:[%s2 + $0x24] sm:$0xff]
    %v53 = vld [vmem:[%s2 + $0x2c] sm:$0xf]
    %v54 = vld [vmem:[%s2 + $0x30] sm:$0xff]
    %v55 = vld [vmem:[%s2 + $0x38] sm:$0xf]
    %v56 = vld [vmem:[%s2 + $0x3c] sm:$0xff]
    %v57 = vld [vmem:[%s2 + $0x44] sm:$0xf]
    %v58 = vld [vmem:[%s2 + $0x48] sm:$0xff]
    %v59 = vld [vmem:[%s2 + $0x50] sm:$0xf]
    %v60 = vld [vmem:[%s2 + $0x54] sm:$0xff]
    %v61 = vld [vmem:[%s2 + $0x5c] sm:$0xf]
    %v78 = vunpack.c.l.b16 %v46
    %v79 = vunpack.c.h.b16 %v46
    %v80 = vunpack.c.l.b16 %v47
    %v81 = vunpack.c.l.b16 %v48
    %v82 = vunpack.c.h.b16 %v48
    %v83 = vunpack.c.l.b16 %v49
    %v84 = vunpack.c.l.b16 %v50
    %v85 = vunpack.c.h.b16 %v50
    %v86 = vunpack.c.l.b16 %v51
    %v87 = vunpack.c.l.b16 %v52
    %v88 = vunpack.c.h.b16 %v52
    %v89 = vunpack.c.l.b16 %v53
    %v90 = vunpack.c.l.b16 %v54
    %v91 = vunpack.c.h.b16 %v54
    %v92 = vunpack.c.l.b16 %v55
    %v93 = vunpack.c.l.b16 %v56
    %v94 = vunpack.c.h.b16 %v56
    %v95 = vunpack.c.l.b16 %v57
    %v96 = vunpack.c.l.b16 %v58
    %v97 = vunpack.c.h.b16 %v58
    %v98 = vunpack.c.l.b16 %v59
    %v99 = vunpack.c.l.b16 %v60
    %v100 = vunpack.c.h.b16 %v60
    %v101 = vunpack.c.l.b16 %v61
    %v102 = vpack.c.b16 %v81, %v78
    %v103 = vpack.c.b16 %v82, %v79
    %v104 = vpack.c.b16 %v83, %v80
    %v105 = vpack.c.b16 %v87, %v84
    %v106 = vpack.c.b16 %v88, %v85
    %v107 = vpack.c.b16 %v89, %v86
    %v108 = vpack.c.b16 %v93, %v90
    %v109 = vpack.c.b16 %v94, %v91
    %v110 = vpack.c.b16 %v95, %v92
    %v111 = vpack.c.b16 %v99, %v96
    %v112 = vpack.c.b16 %v100, %v97
    %v113 = vpack.c.b16 %v101, %v98
    %vm126 = vcmask 523264
    %v128 = vsel %vm126, %v45, 0
    %130 = vmatpush.bf16.msra.mxu0 0
    %131 = vmatpush.bf16.msra.mxu0 0
    %132 = vmatpush.bf16.msra.mxu0 0
    %133 = vmatpush.bf16.msra.mxu0 0
    %134 = vmatpush.bf16.msra.mxu0 %v111
    %135 = vmatpush.bf16.msra.mxu0 %v108
    %136 = vmatpush.bf16.msra.mxu0 %v105
    %137 = vmatpush.bf16.msra.mxu0 %v102
    %138 = vmatmul.bf16.gmra.mxu0 %v128
    %v139 = vpop.f32.mrf.mxu0
    %v140 = vadd.f32 0.0, %v139
    %v141 = vpop.f32.mrf.mxu0
    %v142 = vadd.f32 0.0, %v141
    %143 = vdwg.mxu0
    %144 = vmatpush.bf16.msra.mxu0 0
    %145 = vmatpush.bf16.msra.mxu0 0
    %146 = vmatpush.bf16.msra.mxu0 0
    %147 = vmatpush.bf16.msra.mxu0 0
    %148 = vmatpush.bf16.msra.mxu0 %v112
    %149 = vmatpush.bf16.msra.mxu0 %v109
    %150 = vmatpush.bf16.msra.mxu0 %v106
    %151 = vmatpush.bf16.msra.mxu0 %v103
    %152 = vmatmul.bf16.gmra.mxu0 %v128
    %v153 = vpop.f32.mrf.mxu0
    %v154 = vadd.f32 0.0, %v153
    %v155 = vpop.f32.mrf.mxu0
    %v156 = vadd.f32 0.0, %v155
    %157 = vdwg.mxu0
    %158 = vmatpush.bf16.msra.mxu0 0
    %159 = vmatpush.bf16.msra.mxu0 0
    %160 = vmatpush.bf16.msra.mxu0 0
    %161 = vmatpush.bf16.msra.mxu0 0
    %162 = vmatpush.bf16.msra.mxu0 %v113
    %163 = vmatpush.bf16.msra.mxu0 %v110
    %164 = vmatpush.bf16.msra.mxu0 %v107
    %165 = vmatpush.bf16.msra.mxu0 %v104
    %166 = vmatmul.bf16.gmra.mxu0 %v128
    %v167 = vpop.f32.mrf.mxu0
    %v168 = vadd.f32 0.0, %v167
    %v169 = vpop.f32.mrf.mxu0
    %v170 = vadd.f32 0.0, %v169
    %171 = vdwg.mxu0
    %v172 = vld [vmem:[%s3] sm:$0xff]
    %v173 = vld [vmem:[%s3 + $0x8] sm:$0xf]
    %v174 = vld [vmem:[%s3 + $0xc] sm:$0xff]
    %v175 = vld [vmem:[%s3 + $0x14] sm:$0xf]
    %v176 = vld [vmem:[%s3 + $0x18] sm:$0xff]
    %v177 = vld [vmem:[%s3 + $0x20] sm:$0xf]
    %v178 = vld [vmem:[%s3 + $0x24] sm:$0xff]
    %v179 = vld [vmem:[%s3 + $0x2c] sm:$0xf]
    %v180 = vld [vmem:[%s3 + $0x30] sm:$0xff]
    %v181 = vld [vmem:[%s3 + $0x38] sm:$0xf]
    %v182 = vld [vmem:[%s3 + $0x3c] sm:$0xff]
    %v183 = vld [vmem:[%s3 + $0x44] sm:$0xf]
    %v184 = vld [vmem:[%s3 + $0x48] sm:$0xff]
    %v185 = vld [vmem:[%s3 + $0x50] sm:$0xf]
    %v186 = vld [vmem:[%s3 + $0x54] sm:$0xff]
    %v187 = vld [vmem:[%s3 + $0x5c] sm:$0xf]
    %v204 = vunpack.c.l.b16 %v172
    %v205 = vunpack.c.h.b16 %v172
    %v206 = vunpack.c.l.b16 %v173
    %v207 = vunpack.c.l.b16 %v174
    %v208 = vunpack.c.h.b16 %v174
    %v209 = vunpack.c.l.b16 %v175
    %v210 = vunpack.c.l.b16 %v176
    %v211 = vunpack.c.h.b16 %v176
    %v212 = vunpack.c.l.b16 %v177
    %v213 = vunpack.c.l.b16 %v178
    %v214 = vunpack.c.h.b16 %v178
    %v215 = vunpack.c.l.b16 %v179
    %v216 = vunpack.c.l.b16 %v180
    %v217 = vunpack.c.h.b16 %v180
    %v218 = vunpack.c.l.b16 %v181
    %v219 = vunpack.c.l.b16 %v182
    %v220 = vunpack.c.h.b16 %v182
    %v221 = vunpack.c.l.b16 %v183
    %v222 = vunpack.c.l.b16 %v184
    %v223 = vunpack.c.h.b16 %v184
    %v224 = vunpack.c.l.b16 %v185
    %v225 = vunpack.c.l.b16 %v186
    %v226 = vunpack.c.h.b16 %v186
    %v227 = vunpack.c.l.b16 %v187
    %v228 = vpack.c.b16 %v207, %v204
    %v229 = vpack.c.b16 %v208, %v205
    %v230 = vpack.c.b16 %v209, %v206
    %v231 = vpack.c.b16 %v213, %v210
    %v232 = vpack.c.b16 %v214, %v211
    %v233 = vpack.c.b16 %v215, %v212
    %v234 = vpack.c.b16 %v219, %v216
    %v235 = vpack.c.b16 %v220, %v217
    %v236 = vpack.c.b16 %v221, %v218
    %v237 = vpack.c.b16 %v225, %v222
    %v238 = vpack.c.b16 %v226, %v223
    %v239 = vpack.c.b16 %v227, %v224
    %252 = vmatpush.bf16.msra.mxu0 0
    %253 = vmatpush.bf16.msra.mxu0 0
    %254 = vmatpush.bf16.msra.mxu0 0
    %255 = vmatpush.bf16.msra.mxu0 0
    %256 = vmatpush.bf16.msra.mxu0 %v237
    %257 = vmatpush.bf16.msra.mxu0 %v234
    %258 = vmatpush.bf16.msra.mxu0 %v231
    %259 = vmatpush.bf16.msra.mxu0 %v228
    %260 = vmatmul.bf16.gmra.mxu0 %v128
    %v261 = vpop.f32.mrf.mxu0
    %v262 = vadd.f32 0.0, %v261
    %v263 = vpop.f32.mrf.mxu0
    %v264 = vadd.f32 0.0, %v263
    %265 = vdwg.mxu0
    %266 = vmatpush.bf16.msra.mxu0 0
    %267 = vmatpush.bf16.msra.mxu0 0
    %268 = vmatpush.bf16.msra.mxu0 0
    %269 = vmatpush.bf16.msra.mxu0 0
    %270 = vmatpush.bf16.msra.mxu0 %v238
    %271 = vmatpush.bf16.msra.mxu0 %v235
    %272 = vmatpush.bf16.msra.mxu0 %v232
    %273 = vmatpush.bf16.msra.mxu0 %v229
    %274 = vmatmul.bf16.gmra.mxu0 %v128
    %v275 = vpop.f32.mrf.mxu0
    %v276 = vadd.f32 0.0, %v275
    %v277 = vpop.f32.mrf.mxu0
    %v278 = vadd.f32 0.0, %v277
    %279 = vdwg.mxu0
    %280 = vmatpush.bf16.msra.mxu0 0
    %281 = vmatpush.bf16.msra.mxu0 0
    %282 = vmatpush.bf16.msra.mxu0 0
    %283 = vmatpush.bf16.msra.mxu0 0
    %284 = vmatpush.bf16.msra.mxu0 %v239
    %285 = vmatpush.bf16.msra.mxu0 %v236
    %286 = vmatpush.bf16.msra.mxu0 %v233
    %287 = vmatpush.bf16.msra.mxu0 %v230
    %288 = vmatmul.bf16.gmra.mxu0 %v128
    %v289 = vpop.f32.mrf.mxu0
    %v290 = vadd.f32 0.0, %v289
    %v291 = vpop.f32.mrf.mxu0
    %v292 = vadd.f32 0.0, %v291
    %293 = vdwg.mxu0
    %v294 = vld [vmem:[%s4] sm:$0xff]
    %v295 = vld [vmem:[%s4 + $0x8] sm:$0xf]
    %v296 = vld [vmem:[%s4 + $0xc] sm:$0xff]
    %v297 = vld [vmem:[%s4 + $0x14] sm:$0xf]
    %v298 = vld [vmem:[%s4 + $0x18] sm:$0xff]
    %v299 = vld [vmem:[%s4 + $0x20] sm:$0xf]
    %v300 = vld [vmem:[%s4 + $0x24] sm:$0xff]
    %v301 = vld [vmem:[%s4 + $0x2c] sm:$0xf]
    %v302 = vld [vmem:[%s4 + $0x30] sm:$0xff]
    %v303 = vld [vmem:[%s4 + $0x38] sm:$0xf]
    %v304 = vld [vmem:[%s4 + $0x3c] sm:$0xff]
    %v305 = vld [vmem:[%s4 + $0x44] sm:$0xf]
    %v306 = vld [vmem:[%s4 + $0x48] sm:$0xff]
    %v307 = vld [vmem:[%s4 + $0x50] sm:$0xf]
    %v308 = vld [vmem:[%s4 + $0x54] sm:$0xff]
    %v309 = vld [vmem:[%s4 + $0x5c] sm:$0xf]
    %v326 = vunpack.c.l.b16 %v294
    %v327 = vunpack.c.h.b16 %v294
    %v328 = vunpack.c.l.b16 %v295
    %v329 = vunpack.c.l.b16 %v296
    %v330 = vunpack.c.h.b16 %v296
    %v331 = vunpack.c.l.b16 %v297
    %v332 = vunpack.c.l.b16 %v298
    %v333 = vunpack.c.h.b16 %v298
    %v334 = vunpack.c.l.b16 %v299
    %v335 = vunpack.c.l.b16 %v300
    %v336 = vunpack.c.h.b16 %v300
    %v337 = vunpack.c.l.b16 %v301
    %v338 = vunpack.c.l.b16 %v302
    %v339 = vunpack.c.h.b16 %v302
    %v340 = vunpack.c.l.b16 %v303
    %v341 = vunpack.c.l.b16 %v304
    %v342 = vunpack.c.h.b16 %v304
    %v343 = vunpack.c.l.b16 %v305
    %v344 = vunpack.c.l.b16 %v306
    %v345 = vunpack.c.h.b16 %v306
    %v346 = vunpack.c.l.b16 %v307
    %v347 = vunpack.c.l.b16 %v308
    %v348 = vunpack.c.h.b16 %v308
    %v349 = vunpack.c.l.b16 %v309
    %v350 = vpack.c.b16 %v329, %v326
    %v351 = vpack.c.b16 %v330, %v327
    %v352 = vpack.c.b16 %v331, %v328
    %v353 = vpack.c.b16 %v335, %v332
    %v354 = vpack.c.b16 %v336, %v333
    %v355 = vpack.c.b16 %v337, %v334
    %v356 = vpack.c.b16 %v341, %v338
    %v357 = vpack.c.b16 %v342, %v339
    %v358 = vpack.c.b16 %v343, %v340
    %v359 = vpack.c.b16 %v347, %v344
    %v360 = vpack.c.b16 %v348, %v345
    %v361 = vpack.c.b16 %v349, %v346
    %374 = vmatpush.bf16.msra.mxu0 0
    %375 = vmatpush.bf16.msra.mxu0 0
    %376 = vmatpush.bf16.msra.mxu0 0
    %377 = vmatpush.bf16.msra.mxu0 0
    %378 = vmatpush.bf16.msra.mxu0 %v359
    %379 = vmatpush.bf16.msra.mxu0 %v356
    %380 = vmatpush.bf16.msra.mxu0 %v353
    %381 = vmatpush.bf16.msra.mxu0 %v350
    %382 = vmatmul.bf16.gmra.mxu0 %v128
    %v383 = vpop.f32.mrf.mxu0
    %v384 = vadd.f32 0.0, %v383
    %v385 = vpop.f32.mrf.mxu0
    %v386 = vadd.f32 0.0, %v385
    %387 = vdwg.mxu0
    %388 = vmatpush.bf16.msra.mxu0 0
    %389 = vmatpush.bf16.msra.mxu0 0
    %390 = vmatpush.bf16.msra.mxu0 0
    %391 = vmatpush.bf16.msra.mxu0 0
    %392 = vmatpush.bf16.msra.mxu0 %v360
    %393 = vmatpush.bf16.msra.mxu0 %v357
    %394 = vmatpush.bf16.msra.mxu0 %v354
    %395 = vmatpush.bf16.msra.mxu0 %v351
    %396 = vmatmul.bf16.gmra.mxu0 %v128
    %v397 = vpop.f32.mrf.mxu0
    %v398 = vadd.f32 0.0, %v397
    %v399 = vpop.f32.mrf.mxu0
    %v400 = vadd.f32 0.0, %v399
    %401 = vdwg.mxu0
    %402 = vmatpush.bf16.msra.mxu0 0
    %403 = vmatpush.bf16.msra.mxu0 0
    %404 = vmatpush.bf16.msra.mxu0 0
    %405 = vmatpush.bf16.msra.mxu0 0
    %406 = vmatpush.bf16.msra.mxu0 %v361
    %407 = vmatpush.bf16.msra.mxu0 %v358
    %408 = vmatpush.bf16.msra.mxu0 %v355
    %409 = vmatpush.bf16.msra.mxu0 %v352
    %410 = vmatmul.bf16.gmra.mxu0 %v128
    %v411 = vpop.f32.mrf.mxu0
    %v412 = vadd.f32 0.0, %v411
    %v413 = vpop.f32.mrf.mxu0
    %v414 = vadd.f32 0.0, %v413
    %415 = vdwg.mxu0
    %v416 = vpack.c.bf16 %v154, %v140
    %v417 = vpack.c.bf16 %v168, %v168
    %v418 = vpack.c.bf16 %v276, %v262
    %v419 = vpack.c.bf16 %v290, %v290
    %v420 = vpack.c.bf16 %v398, %v384
    %v421 = vpack.c.bf16 %v412, %v412
    %422 = vmatpush.bf16.xpose.msra.mxu0 0
    %423 = vmatpush.bf16.xpose.msra.mxu0 0
    %424 = vmatpush.bf16.xpose.msra.mxu0 0
    %425 = vmatpush.bf16.xpose.msra.mxu0 0
    %426 = vmatpush.bf16.xpose.msra.mxu0 0
    %427 = vmatpush.bf16.xpose.msra.mxu0 0
    %428 = vmatpush.bf16.xpose.msra.mxu0 0
    %429 = vmatpush.bf16.xpose.msra.mxu0 %v418
    %430 = vmatmul.bf16.gmra.mxu0 %v416
    %v431 = vpop.f32.mrf.mxu0
    %v432 = vadd.f32 %v38, %v431
    %v433 = vpop.f32.mrf.mxu0
    %434 = vdwg.mxu0
    %vm435 = vcmask 64512
    %v436 = vsel %vm435, %v432, -inf
    %437 = vmax.xlane.f32.xlu0 %v436
    %v438 = vpop.xlane.xlu0 %437
    %v439 = vsub.f32 %v432, %v438
    %v440 = vmul.f32 %v439, 1.442695
    %v441 = vpow.pop %v440
    %v442 = vsel %vm435, %v441, 0.0
    %443 = vadd.xlane.f32.xlu0 %v442
    %v444 = vpop.xlane.xlu0 %443
    %v445 = vrcp.pop %v444
    %v446 = vmul.f32 %v444, %v445
    %v447 = vsub.f32 1.0, %v446
    %v448 = vmul.f32 %v445, %v447
    %v449 = vadd.f32 %v445, %v448
    %vm450 = vweird.f32 %v444
    %vm451 = vweird.f32 %v445
    %vm452 = vmor %vm450, %vm451
    %v453 = vsel %vm452, %v445, %v449
    %v454 = vand.u32 2147483647, %v444
    %vm455 = vcmp.eq.f32.partialorder %v454, 8.507059e+37
    %v456 = vand.u32 %v444, 2147483648
    %v457 = vor.u32 1.1754944e-38, %v456
    %v458 = vsel %vm455, %v457, %v453
    %v459 = vmul.f32 %v441, %v458
    %v460 = vpack.c.bf16 %v459, %v459
    %v462 = vsel %vm435, %v460, 0
    %vm464 = vcmask 1043456
    %v466 = vsel %vm464, %v420, 0
    %468 = vmatpush.bf16.msra.mxu0 0
    %469 = vmatpush.bf16.msra.mxu0 0
    %470 = vmatpush.bf16.msra.mxu0 0
    %471 = vmatpush.bf16.msra.mxu0 0
    %472 = vmatpush.bf16.msra.mxu0 0
    %473 = vmatpush.bf16.msra.mxu0 0
    %474 = vmatpush.bf16.msra.mxu0 0
    %475 = vmatpush.bf16.msra.mxu0 %v466
    %476 = vmatmul.bf16.gmra.mxu0 %v462
    %v477 = vpop.f32.mrf.mxu0
    %v478 = vadd.f32 0.0, %v477
    %v479 = vpop.f32.mrf.mxu0
    %480 = vdwg.mxu0
    %v482 = vunpack.c.h.b16 %v416
    %v483 = vpack.c.b16 %v482, %v482
    %v486 = vunpack.c.h.b16 %v418
    %v487 = vpack.c.b16 %v486, %v486
    %489 = vmatpush.bf16.xpose.msra.mxu0 0
    %490 = vmatpush.bf16.xpose.msra.mxu0 0
    %491 = vmatpush.bf16.xpose.msra.mxu0 0
    %492 = vmatpush.bf16.xpose.msra.mxu0 0
    %493 = vmatpush.bf16.xpose.msra.mxu0 0
    %494 = vmatpush.bf16.xpose.msra.mxu0 0
    %495 = vmatpush.bf16.xpose.msra.mxu0 0
    %496 = vmatpush.bf16.xpose.msra.mxu0 %v487
    %497 = vmatmul.bf16.gmra.mxu0 %v483
    %v498 = vpop.f32.mrf.mxu0
    %v499 = vadd.f32 %v38, %v498
    %v500 = vpop.f32.mrf.mxu0
    %501 = vdwg.mxu0
    %v502 = vsel %vm435, %v499, -inf
    %503 = vmax.xlane.f32.xlu0 %v502
    %v504 = vpop.xlane.xlu0 %503
    %v505 = vsub.f32 %v499, %v504
    %v506 = vmul.f32 %v505, 1.442695
    %v507 = vpow.pop %v506
    %v508 = vsel %vm435, %v507, 0.0
    %509 = vadd.xlane.f32.xlu0 %v508
    %v510 = vpop.xlane.xlu0 %509
    %v511 = vrcp.pop %v510
    %v512 = vmul.f32 %v510, %v511
    %v513 = vsub.f32 1.0, %v512
    %v514 = vmul.f32 %v511, %v513
    %v515 = vadd.f32 %v511, %v514
    %vm516 = vweird.f32 %v510
    %vm517 = vweird.f32 %v511
    %vm518 = vmor %vm516, %vm517
    %v519 = vsel %vm518, %v511, %v515
    %v520 = vand.u32 2147483647, %v510
    %vm521 = vcmp.eq.f32.partialorder %v520, 8.507059e+37
    %v522 = vand.u32 %v510, 2147483648
    %v523 = vor.u32 1.1754944e-38, %v522
    %v524 = vsel %vm521, %v523, %v519
    %v525 = vmul.f32 %v507, %v524
    %v526 = vpack.c.bf16 %v525, %v525
    %v528 = vunpack.c.h.b16 %v420
    %v529 = vpack.c.b16 %v528, %v528
    %v531 = vsel %vm435, %v526, 0
    %v534 = vsel %vm464, %v529, 0
    %536 = vmatpush.bf16.msra.mxu0 0
    %537 = vmatpush.bf16.msra.mxu0 0
    %538 = vmatpush.bf16.msra.mxu0 0
    %539 = vmatpush.bf16.msra.mxu0 0
    %540 = vmatpush.bf16.msra.mxu0 0
    %541 = vmatpush.bf16.msra.mxu0 0
    %542 = vmatpush.bf16.msra.mxu0 0
    %543 = vmatpush.bf16.msra.mxu0 %v534
    %544 = vmatmul.bf16.gmra.mxu0 %v531
    %v545 = vpop.f32.mrf.mxu0
    %v546 = vadd.f32 0.0, %v545
    %v547 = vpop.f32.mrf.mxu0
    %548 = vdwg.mxu0
    %549 = vmatpush.bf16.xpose.msra.mxu0 0
    %550 = vmatpush.bf16.xpose.msra.mxu0 0
    %551 = vmatpush.bf16.xpose.msra.mxu0 0
    %552 = vmatpush.bf16.xpose.msra.mxu0 0
    %553 = vmatpush.bf16.xpose.msra.mxu0 0
    %554 = vmatpush.bf16.xpose.msra.mxu0 0
    %555 = vmatpush.bf16.xpose.msra.mxu0 0
    %556 = vmatpush.bf16.xpose.msra.mxu0 %v419
    %557 = vmatmul.bf16.gmra.mxu0 %v417
    %v558 = vpop.f32.mrf.mxu0
    %v559 = vadd.f32 %v38, %v558
    %v560 = vpop.f32.mrf.mxu0
    %561 = vdwg.mxu0
    %v562 = vsel %vm435, %v559, -inf
    %563 = vmax.xlane.f32.xlu0 %v562
    %v564 = vpop.xlane.xlu0 %563
    %v565 = vsub.f32 %v559, %v564
    %v566 = vmul.f32 %v565, 1.442695
    %v567 = vpow.pop %v566
    %v568 = vsel %vm435, %v567, 0.0
    %569 = vadd.xlane.f32.xlu0 %v568
    %v570 = vpop.xlane.xlu0 %569
    %v571 = vrcp.pop %v570
    %v572 = vmul.f32 %v570, %v571
    %v573 = vsub.f32 1.0, %v572
    %v574 = vmul.f32 %v571, %v573
    %v575 = vadd.f32 %v571, %v574
    %vm576 = vweird.f32 %v570
    %vm577 = vweird.f32 %v571
    %vm578 = vmor %vm576, %vm577
    %v579 = vsel %vm578, %v571, %v575
    %v580 = vand.u32 2147483647, %v570
    %vm581 = vcmp.eq.f32.partialorder %v580, 8.507059e+37
    %v582 = vand.u32 %v570, 2147483648
    %v583 = vor.u32 1.1754944e-38, %v582
    %v584 = vsel %vm581, %v583, %v579
    %v585 = vmul.f32 %v567, %v584
    %v586 = vpack.c.bf16 %v585, %v585
    %v588 = vsel %vm435, %v586, 0
    %v591 = vsel %vm464, %v421, 0
    %593 = vmatpush.bf16.msra.mxu0 0
    %594 = vmatpush.bf16.msra.mxu0 0
    %595 = vmatpush.bf16.msra.mxu0 0
    %596 = vmatpush.bf16.msra.mxu0 0
    %597 = vmatpush.bf16.msra.mxu0 0
    %598 = vmatpush.bf16.msra.mxu0 0
    %599 = vmatpush.bf16.msra.mxu0 0
    %600 = vmatpush.bf16.msra.mxu0 %v591
    %601 = vmatmul.bf16.gmra.mxu0 %v588
    %v602 = vpop.f32.mrf.mxu0
    %v603 = vadd.f32 0.0, %v602
    %v604 = vpop.f32.mrf.mxu0
    %605 = vdwg.mxu0
    %607 = vrot.lane.b32.xlu0 %v525, 8
    %v608 = vpop.permute.xlu0 %607
    %611 = vrot.lane.b32.xlu0 %v585, 16
    %v612 = vpop.permute.xlu0 %611
    %v614 = vsel %vm435, %v459, %v608
    %vm615 = vcmask 130048
    %v616 = vsel %vm615, %v614, %v612
    %v617 = vpack.c.bf16 %v156, %v142
    %v618 = vpack.c.bf16 %v170, %v170
    %v619 = vpack.c.bf16 %v278, %v264
    %v620 = vpack.c.bf16 %v292, %v292
    %v621 = vpack.c.bf16 %v400, %v386
    %v622 = vpack.c.bf16 %v414, %v414
    %623 = vmatpush.bf16.xpose.msra.mxu0 0
    %624 = vmatpush.bf16.xpose.msra.mxu0 0
    %625 = vmatpush.bf16.xpose.msra.mxu0 0
    %626 = vmatpush.bf16.xpose.msra.mxu0 0
    %627 = vmatpush.bf16.xpose.msra.mxu0 0
    %628 = vmatpush.bf16.xpose.msra.mxu0 0
    %629 = vmatpush.bf16.xpose.msra.mxu0 0
    %630 = vmatpush.bf16.xpose.msra.mxu0 %v619
    %631 = vmatmul.bf16.gmra.mxu0 %v617
    %v632 = vpop.f32.mrf.mxu0
    %v633 = vadd.f32 %v43, %v632
    %v634 = vpop.f32.mrf.mxu0
    %635 = vdwg.mxu0
    %v636 = vsel %vm435, %v633, -inf
    %637 = vmax.xlane.f32.xlu0 %v636
    %v638 = vpop.xlane.xlu0 %637
    %v639 = vsub.f32 %v633, %v638
    %v640 = vmul.f32 %v639, 1.442695
    %v641 = vpow.pop %v640
    %v642 = vsel %vm435, %v641, 0.0
    %643 = vadd.xlane.f32.xlu0 %v642
    %v644 = vpop.xlane.xlu0 %643
    %v645 = vrcp.pop %v644
    %v646 = vmul.f32 %v644, %v645
    %v647 = vsub.f32 1.0, %v646
    %v648 = vmul.f32 %v645, %v647
    %v649 = vadd.f32 %v645, %v648
    %vm650 = vweird.f32 %v644
    %vm651 = vweird.f32 %v645
    %vm652 = vmor %vm650, %vm651
    %v653 = vsel %vm652, %v645, %v649
    %v654 = vand.u32 2147483647, %v644
    %vm655 = vcmp.eq.f32.partialorder %v654, 8.507059e+37
    %v656 = vand.u32 %v644, 2147483648
    %v657 = vor.u32 1.1754944e-38, %v656
    %v658 = vsel %vm655, %v657, %v653
    %v659 = vmul.f32 %v641, %v658
    %v660 = vpack.c.bf16 %v659, %v659
    %v662 = vsel %vm435, %v660, 0
    %v665 = vsel %vm464, %v621, 0
    %667 = vmatpush.bf16.msra.mxu0 0
    %668 = vmatpush.bf16.msra.mxu0 0
    %669 = vmatpush.bf16.msra.mxu0 0
    %670 = vmatpush.bf16.msra.mxu0 0
    %671 = vmatpush.bf16.msra.mxu0 0
    %672 = vmatpush.bf16.msra.mxu0 0
    %673 = vmatpush.bf16.msra.mxu0 0
    %674 = vmatpush.bf16.msra.mxu0 %v665
    %675 = vmatmul.bf16.gmra.mxu0 %v662
    %v676 = vpop.f32.mrf.mxu0
    %v677 = vadd.f32 0.0, %v676
    %v678 = vpop.f32.mrf.mxu0
    %679 = vdwg.mxu0
    %v681 = vunpack.c.h.b16 %v617
    %v682 = vpack.c.b16 %v681, %v681
    %v685 = vunpack.c.h.b16 %v619
    %v686 = vpack.c.b16 %v685, %v685
    %688 = vmatpush.bf16.xpose.msra.mxu0 0
    %689 = vmatpush.bf16.xpose.msra.mxu0 0
    %690 = vmatpush.bf16.xpose.msra.mxu0 0
    %691 = vmatpush.bf16.xpose.msra.mxu0 0
    %692 = vmatpush.bf16.xpose.msra.mxu0 0
    %693 = vmatpush.bf16.xpose.msra.mxu0 0
    %694 = vmatpush.bf16.xpose.msra.mxu0 0
    %695 = vmatpush.bf16.xpose.msra.mxu0 %v686
    %696 = vmatmul.bf16.gmra.mxu0 %v682
    %v697 = vpop.f32.mrf.mxu0
    %v698 = vadd.f32 %v43, %v697
    %v699 = vpop.f32.mrf.mxu0
    %700 = vdwg.mxu0
    %v701 = vsel %vm435, %v698, -inf
    %702 = vmax.xlane.f32.xlu0 %v701
    %v703 = vpop.xlane.xlu0 %702
    %v704 = vsub.f32 %v698, %v703
    %v705 = vmul.f32 %v704, 1.442695
    %v706 = vpow.pop %v705
    %v707 = vsel %vm435, %v706, 0.0
    %708 = vadd.xlane.f32.xlu0 %v707
    %v709 = vpop.xlane.xlu0 %708
    %v710 = vrcp.pop %v709
    %v711 = vmul.f32 %v709, %v710
    %v712 = vsub.f32 1.0, %v711
    %v713 = vmul.f32 %v710, %v712
    %v714 = vadd.f32 %v710, %v713
    %vm715 = vweird.f32 %v709
    %vm716 = vweird.f32 %v710
    %vm717 = vmor %vm715, %vm716
    %v718 = vsel %vm717, %v710, %v714
    %v719 = vand.u32 2147483647, %v709
    %vm720 = vcmp.eq.f32.partialorder %v719, 8.507059e+37
    %v721 = vand.u32 %v709, 2147483648
    %v722 = vor.u32 1.1754944e-38, %v721
    %v723 = vsel %vm720, %v722, %v718
    %v724 = vmul.f32 %v706, %v723
    %v725 = vpack.c.bf16 %v724, %v724
    %v727 = vunpack.c.h.b16 %v621
    %v728 = vpack.c.b16 %v727, %v727
    %v730 = vsel %vm435, %v725, 0
    %v733 = vsel %vm464, %v728, 0
    %735 = vmatpush.bf16.msra.mxu0 0
    %736 = vmatpush.bf16.msra.mxu0 0
    %737 = vmatpush.bf16.msra.mxu0 0
    %738 = vmatpush.bf16.msra.mxu0 0
    %739 = vmatpush.bf16.msra.mxu0 0
    %740 = vmatpush.bf16.msra.mxu0 0
    %741 = vmatpush.bf16.msra.mxu0 0
    %742 = vmatpush.bf16.msra.mxu0 %v733
    %743 = vmatmul.bf16.gmra.mxu0 %v730
    %v744 = vpop.f32.mrf.mxu0
    %v745 = vadd.f32 0.0, %v744
    %v746 = vpop.f32.mrf.mxu0
    %747 = vdwg.mxu0
    %748 = vmatpush.bf16.xpose.msra.mxu0 0
    %749 = vmatpush.bf16.xpose.msra.mxu0 0
    %750 = vmatpush.bf16.xpose.msra.mxu0 0
    %751 = vmatpush.bf16.xpose.msra.mxu0 0
    %752 = vmatpush.bf16.xpose.msra.mxu0 0
    %753 = vmatpush.bf16.xpose.msra.mxu0 0
    %754 = vmatpush.bf16.xpose.msra.mxu0 0
    %755 = vmatpush.bf16.xpose.msra.mxu0 %v620
    %756 = vmatmul.bf16.gmra.mxu0 %v618
    %v757 = vpop.f32.mrf.mxu0
    %v758 = vadd.f32 %v43, %v757
    %v759 = vpop.f32.mrf.mxu0
    %760 = vdwg.mxu0
    %v761 = vsel %vm435, %v758, -inf
    %762 = vmax.xlane.f32.xlu0 %v761
    %v763 = vpop.xlane.xlu0 %762
    %v764 = vsub.f32 %v758, %v763
    %v765 = vmul.f32 %v764, 1.442695
    %v766 = vpow.pop %v765
    %v767 = vsel %vm435, %v766, 0.0
    %768 = vadd.xlane.f32.xlu0 %v767
    %v769 = vpop.xlane.xlu0 %768
    %v770 = vrcp.pop %v769
    %v771 = vmul.f32 %v769, %v770
    %v772 = vsub.f32 1.0, %v771
    %v773 = vmul.f32 %v770, %v772
    %v774 = vadd.f32 %v770, %v773
    %vm775 = vweird.f32 %v769
    %vm776 = vweird.f32 %v770
    %vm777 = vmor %vm775, %vm776
    %v778 = vsel %vm777, %v770, %v774
    %v779 = vand.u32 2147483647, %v769
    %vm780 = vcmp.eq.f32.partialorder %v779, 8.507059e+37
    %v781 = vand.u32 %v769, 2147483648
    %v782 = vor.u32 1.1754944e-38, %v781
    %v783 = vsel %vm780, %v782, %v778
    %v784 = vmul.f32 %v766, %v783
    %v785 = vpack.c.bf16 %v784, %v784
    %v787 = vsel %vm435, %v785, 0
    %v790 = vsel %vm464, %v622, 0
    %792 = vmatpush.bf16.msra.mxu0 0
    %793 = vmatpush.bf16.msra.mxu0 0
    %794 = vmatpush.bf16.msra.mxu0 0
    %795 = vmatpush.bf16.msra.mxu0 0
    %796 = vmatpush.bf16.msra.mxu0 0
    %797 = vmatpush.bf16.msra.mxu0 0
    %798 = vmatpush.bf16.msra.mxu0 0
    %799 = vmatpush.bf16.msra.mxu0 %v790
    %800 = vmatmul.bf16.gmra.mxu0 %v787
    %v801 = vpop.f32.mrf.mxu0
    %v802 = vadd.f32 0.0, %v801
    %v803 = vpop.f32.mrf.mxu0
    %804 = vdwg.mxu0
    %806 = vrot.lane.b32.xlu0 %v724, 8
    %v807 = vpop.permute.xlu0 %806
    %810 = vrot.lane.b32.xlu0 %v784, 16
    %v811 = vpop.permute.xlu0 %810
    %v813 = vsel %vm435, %v659, %v807
    %v814 = vsel %vm615, %v813, %v811
    %vm815 = vcmask 195584
    %816 = vst.msk [vmem:[#allocation4] sm:$0xff] %vm815, %v616
    %817 = vst.msk [vmem:[#allocation4 + $0x8] sm:$0xff] %vm815, %v814
    %v818 = vpack.c.bf16 %v677, %v478
    %v819 = vpack.c.bf16 %v745, %v546
    %v820 = vpack.c.bf16 %v802, %v603
    %v821 = vld [vmem:[%s5] sm:$0xf]
    %v822 = vld [vmem:[%s5 + $0x4] sm:$0xf]
    %v823 = vld [vmem:[%s5 + $0x8] sm:$0xf]
    %v824 = vld [vmem:[%s5 + $0xc] sm:$0xf]
    %v825 = vld [vmem:[%s5 + $0x10] sm:$0xf]
    %v826 = vld [vmem:[%s5 + $0x14] sm:$0xf]
    %v827 = vld [vmem:[%s5 + $0x18] sm:$0xf]
    %v828 = vld [vmem:[%s5 + $0x1c] sm:$0xf]
    %v829 = vld [vmem:[%s5 + $0x20] sm:$0xf]
    %v830 = vld [vmem:[%s5 + $0x24] sm:$0xf]
    %v831 = vld [vmem:[%s5 + $0x28] sm:$0xf]
    %v832 = vld [vmem:[%s5 + $0x2c] sm:$0xf]
    %v833 = vld [vmem:[%s5 + $0x30] sm:$0xf]
    %v834 = vld [vmem:[%s5 + $0x34] sm:$0xf]
    %v835 = vld [vmem:[%s5 + $0x38] sm:$0xf]
    %v836 = vld [vmem:[%s5 + $0x3c] sm:$0xf]
    %v837 = vld [vmem:[%s5 + $0x40] sm:$0xf]
    %v838 = vld [vmem:[%s5 + $0x44] sm:$0xf]
    %v839 = vld [vmem:[%s5 + $0x48] sm:$0xf]
    %v840 = vld [vmem:[%s5 + $0x4c] sm:$0xf]
    %v841 = vld [vmem:[%s5 + $0x50] sm:$0xf]
    %v842 = vld [vmem:[%s5 + $0x54] sm:$0xf]
    %v843 = vld [vmem:[%s5 + $0x58] sm:$0xf]
    %v844 = vld [vmem:[%s5 + $0x5c] sm:$0xf]
    %v845 = vld [vmem:[%s5 + $0x60] sm:$0xf]
    %v846 = vld [vmem:[%s5 + $0x64] sm:$0xf]
    %v847 = vld [vmem:[%s5 + $0x68] sm:$0xf]
    %v848 = vld [vmem:[%s5 + $0x6c] sm:$0xf]
    %v849 = vld [vmem:[%s5 + $0x70] sm:$0xf]
    %v850 = vld [vmem:[%s5 + $0x74] sm:$0xf]
    %v851 = vld [vmem:[%s5 + $0x78] sm:$0xf]
    %v852 = vld [vmem:[%s5 + $0x7c] sm:$0xf]
    %v853 = vld [vmem:[%s5 + $0x80] sm:$0xf]
    %v854 = vld [vmem:[%s5 + $0x84] sm:$0xf]
    %v855 = vld [vmem:[%s5 + $0x88] sm:$0xf]
    %v856 = vld [vmem:[%s5 + $0x8c] sm:$0xf]
    %v857 = vld [vmem:[%s5 + $0x90] sm:$0xf]
    %v858 = vld [vmem:[%s5 + $0x94] sm:$0xf]
    %v859 = vld [vmem:[%s5 + $0x98] sm:$0xf]
    %v860 = vld [vmem:[%s5 + $0x9c] sm:$0xf]
    %v861 = vld [vmem:[%s5 + $0xa0] sm:$0xf]
    %v862 = vld [vmem:[%s5 + $0xa4] sm:$0xf]
    %v863 = vld [vmem:[%s5 + $0xa8] sm:$0xf]
    %v864 = vld [vmem:[%s5 + $0xac] sm:$0xf]
    %v865 = vld [vmem:[%s5 + $0xb0] sm:$0xf]
    %v866 = vld [vmem:[%s5 + $0xb4] sm:$0xf]
    %v867 = vld [vmem:[%s5 + $0xb8] sm:$0xf]
    %v868 = vld [vmem:[%s5 + $0xbc] sm:$0xf]
    %v917 = vunpack.c.l.b16 %v821
    %v918 = vunpack.c.l.b16 %v822
    %v919 = vunpack.c.l.b16 %v823
    %v920 = vunpack.c.l.b16 %v824
    %v921 = vunpack.c.l.b16 %v825
    %v922 = vunpack.c.l.b16 %v826
    %v923 = vunpack.c.l.b16 %v827
    %v924 = vunpack.c.l.b16 %v828
    %v925 = vunpack.c.l.b16 %v829
    %v926 = vunpack.c.l.b16 %v830
    %v927 = vunpack.c.l.b16 %v831
    %v928 = vunpack.c.l.b16 %v832
    %v929 = vunpack.c.l.b16 %v833
    %v930 = vunpack.c.l.b16 %v834
    %v931 = vunpack.c.l.b16 %v835
    %v932 = vunpack.c.l.b16 %v836
    %v933 = vunpack.c.l.b16 %v837
    %v934 = vunpack.c.l.b16 %v838
    %v935 = vunpack.c.l.b16 %v839
    %v936 = vunpack.c.l.b16 %v840
    %v937 = vunpack.c.l.b16 %v841
    %v938 = vunpack.c.l.b16 %v842
    %v939 = vunpack.c.l.b16 %v843
    %v940 = vunpack.c.l.b16 %v844
    %v941 = vunpack.c.l.b16 %v845
    %v942 = vunpack.c.l.b16 %v846
    %v943 = vunpack.c.l.b16 %v847
    %v944 = vunpack.c.l.b16 %v848
    %v945 = vunpack.c.l.b16 %v849
    %v946 = vunpack.c.l.b16 %v850
    %v947 = vunpack.c.l.b16 %v851
    %v948 = vunpack.c.l.b16 %v852
    %v949 = vunpack.c.l.b16 %v853
    %v950 = vunpack.c.l.b16 %v854
    %v951 = vunpack.c.l.b16 %v855
    %v952 = vunpack.c.l.b16 %v856
    %v953 = vunpack.c.l.b16 %v857
    %v954 = vunpack.c.l.b16 %v858
    %v955 = vunpack.c.l.b16 %v859
    %v956 = vunpack.c.l.b16 %v860
    %v957 = vunpack.c.l.b16 %v861
    %v958 = vunpack.c.l.b16 %v862
    %v959 = vunpack.c.l.b16 %v863
    %v960 = vunpack.c.l.b16 %v864
    %v961 = vunpack.c.l.b16 %v865
    %v962 = vunpack.c.l.b16 %v866
    %v963 = vunpack.c.l.b16 %v867
    %v964 = vunpack.c.l.b16 %v868
    %v965 = vpack.c.b16 %v918, %v917
    %v966 = vpack.c.b16 %v920, %v919
    %v967 = vpack.c.b16 %v922, %v921
    %v968 = vpack.c.b16 %v924, %v923
    %v969 = vpack.c.b16 %v926, %v925
    %v970 = vpack.c.b16 %v928, %v927
    %v971 = vpack.c.b16 %v930, %v929
    %v972 = vpack.c.b16 %v932, %v931
    %v973 = vpack.c.b16 %v934, %v933
    %v974 = vpack.c.b16 %v936, %v935
    %v975 = vpack.c.b16 %v938, %v937
    %v976 = vpack.c.b16 %v940, %v939
    %v977 = vpack.c.b16 %v942, %v941
    %v978 = vpack.c.b16 %v944, %v943
    %v979 = vpack.c.b16 %v946, %v945
    %v980 = vpack.c.b16 %v948, %v947
    %v981 = vpack.c.b16 %v950, %v949
    %v982 = vpack.c.b16 %v952, %v951
    %v983 = vpack.c.b16 %v954, %v953
    %v984 = vpack.c.b16 %v956, %v955
    %v985 = vpack.c.b16 %v958, %v957
    %v986 = vpack.c.b16 %v960, %v959
    %v987 = vpack.c.b16 %v962, %v961
    %v988 = vpack.c.b16 %v964, %v963
    %1013 = vmatpush.bf16.msra.mxu0 %v972
    %1014 = vmatpush.bf16.msra.mxu0 %v971
    %1015 = vmatpush.bf16.msra.mxu0 %v970
    %1016 = vmatpush.bf16.msra.mxu0 %v969
    %1017 = vmatpush.bf16.msra.mxu0 %v968
    %1018 = vmatpush.bf16.msra.mxu0 %v967
    %1019 = vmatpush.bf16.msra.mxu0 %v966
    %1020 = vmatpush.bf16.msra.mxu0 %v965
    %1021 = vmatmul.bf16.gmra.mxu0 %v818
    %v1022 = vpop.f32.mrf.mxu0
    %v1023 = vadd.f32 %v34, %v1022
    %v1024 = vpop.f32.mrf.mxu0
    %v1025 = vadd.f32 %v35, %v1024
    %1026 = vdwg.mxu0
    %1027 = vmatpush.bf16.msra.mxu0 %v980
    %1028 = vmatpush.bf16.msra.mxu0 %v979
    %1029 = vmatpush.bf16.msra.mxu0 %v978
    %1030 = vmatpush.bf16.msra.mxu0 %v977
    %1031 = vmatpush.bf16.msra.mxu0 %v976
    %1032 = vmatpush.bf16.msra.mxu0 %v975
    %1033 = vmatpush.bf16.msra.mxu0 %v974
    %1034 = vmatpush.bf16.msra.mxu0 %v973
    %1035 = vmatmul.bf16.gmra.mxu0 %v819
    %v1036 = vpop.f32.mrf.mxu0
    %v1037 = vadd.f32 %v1023, %v1036
    %v1038 = vpop.f32.mrf.mxu0
    %v1039 = vadd.f32 %v1025, %v1038
    %1040 = vdwg.mxu0
    %1041 = vmatpush.bf16.msra.mxu0 %v988
    %1042 = vmatpush.bf16.msra.mxu0 %v987
    %1043 = vmatpush.bf16.msra.mxu0 %v986
    %1044 = vmatpush.bf16.msra.mxu0 %v985
    %1045 = vmatpush.bf16.msra.mxu0 %v984
    %1046 = vmatpush.bf16.msra.mxu0 %v983
    %1047 = vmatpush.bf16.msra.mxu0 %v982
    %1048 = vmatpush.bf16.msra.mxu0 %v981
    %1049 = vmatmul.bf16.gmra.mxu0 %v820
    %v1050 = vpop.f32.mrf.mxu0
    %v1051 = vadd.f32 %v1037, %v1050
    %v1052 = vpop.f32.mrf.mxu0
    %v1053 = vadd.f32 %v1039, %v1052
    %1054 = vdwg.mxu0
    %v1055 = vsel %vm126, %v1051, 0.0
    %1056 = vadd.xlane.f32.xlu0 %v1055
    %v1057 = vpop.xlane.xlu0 %1056
    %v1058 = vsel %vm126, %v1053, 0.0
    %1059 = vadd.xlane.f32.xlu0 %v1058
    %v1060 = vpop.xlane.xlu0 %1059
    %v1061 = vrcp.pop 64.0
    %v1062 = vmul.f32 64.0, %v1061
    %v1063 = vsub.f32 1.0, %v1062
    %v1064 = vmul.f32 %v1061, %v1063
    %v1065 = vadd.f32 %v1061, %v1064
    %vm1066 = vweird.f32 %v1061
    %v1067 = vsel %vm1066, %v1061, %v1065
    %v1068 = vmul.f32 %v1057, %v1067
    %v1069 = vmul.f32 %v1060, %v1067
    %v1070 = vsub.f32 %v1051, %v1068
    %v1071 = vsub.f32 %v1053, %v1069
    %v1072 = vmul.f32 %v1070, %v1070
    %v1073 = vmul.f32 %v1071, %v1071
    %v1074 = vsel %vm126, %v1072, 0.0
    %1075 = vadd.xlane.f32.xlu0 %v1074
    %v1076 = vpop.xlane.xlu0 %1075
    %v1077 = vsel %vm126, %v1073, 0.0
    %1078 = vadd.xlane.f32.xlu0 %v1077
    %v1079 = vpop.xlane.xlu0 %1078
    %v1080 = vmul.f32 %v1076, %v1067
    %v1081 = vmul.f32 %v1079, %v1067
    %v1082 = vadd.f32 %v1080, 1e-05
    %v1083 = vadd.f32 %v1081, 1e-05
    %v1084 = vrsqrt.pop %v1082
    %v1085 = vmul.f32 %v1084, %v1082
    %v1086 = vmul.f32 %v1085, %v1084
    %v1087 = vmul.f32 0.5, %v1086
    %v1088 = vsub.f32 1.5, %v1087
    %v1089 = vmul.f32 %v1084, %v1088
    %vm1090 = vweird.f32 %v1082
    %vm1091 = vweird.f32 %v1084
    %vm1092 = vmor %vm1090, %vm1091
    %v1093 = vsel %vm1092, %v1084, %v1089
    %v1094 = vrsqrt.pop %v1083
    %v1095 = vmul.f32 %v1094, %v1083
    %v1096 = vmul.f32 %v1095, %v1094
    %v1097 = vmul.f32 0.5, %v1096
    %v1098 = vsub.f32 1.5, %v1097
    %v1099 = vmul.f32 %v1094, %v1098
    %vm1100 = vweird.f32 %v1083
    %vm1101 = vweird.f32 %v1094
    %vm1102 = vmor %vm1100, %vm1101
    %v1103 = vsel %vm1102, %v1094, %v1099
    %v1104 = vmul.f32 %v1070, %v1093
    %v1105 = vmul.f32 %v1071, %v1103
    %v1106 = vpack.c.bf16 %v1105, %v1104
    %v1107 = vld [vmem:[%s6] sm:$0xff]
    %v1108 = vld [vmem:[%s6 + $0x8] sm:$0xff]
    %v1109 = vld [vmem:[%s6 + $0x10] sm:$0xff]
    %v1110 = vld [vmem:[%s6 + $0x18] sm:$0xff]
    %v1111 = vld [vmem:[%s6 + $0x20] sm:$0xff]
    %v1112 = vld [vmem:[%s6 + $0x28] sm:$0xff]
    %v1113 = vld [vmem:[%s6 + $0x30] sm:$0xff]
    %v1114 = vld [vmem:[%s6 + $0x38] sm:$0xff]
    %v1115 = vld [vmem:[%s6 + $0x40] sm:$0xff]
    %v1116 = vld [vmem:[%s6 + $0x48] sm:$0xff]
    %v1117 = vld [vmem:[%s6 + $0x50] sm:$0xff]
    %v1118 = vld [vmem:[%s6 + $0x58] sm:$0xff]
    %v1119 = vld [vmem:[%s6 + $0x60] sm:$0xff]
    %v1120 = vld [vmem:[%s6 + $0x68] sm:$0xff]
    %v1121 = vld [vmem:[%s6 + $0x70] sm:$0xff]
    %v1122 = vld [vmem:[%s6 + $0x78] sm:$0xff]
    %v1139 = vunpack.c.l.b16 %v1107
    %v1140 = vunpack.c.h.b16 %v1107
    %v1141 = vunpack.c.l.b16 %v1108
    %v1142 = vunpack.c.h.b16 %v1108
    %v1143 = vunpack.c.l.b16 %v1109
    %v1144 = vunpack.c.h.b16 %v1109
    %v1145 = vunpack.c.l.b16 %v1110
    %v1146 = vunpack.c.h.b16 %v1110
    %v1147 = vunpack.c.l.b16 %v1111
    %v1148 = vunpack.c.h.b16 %v1111
    %v1149 = vunpack.c.l.b16 %v1112
    %v1150 = vunpack.c.h.b16 %v1112
    %v1151 = vunpack.c.l.b16 %v1113
    %v1152 = vunpack.c.h.b16 %v1113
    %v1153 = vunpack.c.l.b16 %v1114
    %v1154 = vunpack.c.h.b16 %v1114
    %v1155 = vunpack.c.l.b16 %v1115
    %v1156 = vunpack.c.h.b16 %v1115
    %v1157 = vunpack.c.l.b16 %v1116
    %v1158 = vunpack.c.h.b16 %v1116
    %v1159 = vunpack.c.l.b16 %v1117
    %v1160 = vunpack.c.h.b16 %v1117
    %v1161 = vunpack.c.l.b16 %v1118
    %v1162 = vunpack.c.h.b16 %v1118
    %v1163 = vunpack.c.l.b16 %v1119
    %v1164 = vunpack.c.h.b16 %v1119
    %v1165 = vunpack.c.l.b16 %v1120
    %v1166 = vunpack.c.h.b16 %v1120
    %v1167 = vunpack.c.l.b16 %v1121
    %v1168 = vunpack.c.h.b16 %v1121
    %v1169 = vunpack.c.l.b16 %v1122
    %v1170 = vunpack.c.h.b16 %v1122
    %v1171 = vpack.c.b16 %v1143, %v1139
    %v1172 = vpack.c.b16 %v1144, %v1140
    %v1173 = vpack.c.b16 %v1145, %v1141
    %v1174 = vpack.c.b16 %v1146, %v1142
    %v1175 = vpack.c.b16 %v1151, %v1147
    %v1176 = vpack.c.b16 %v1152, %v1148
    %v1177 = vpack.c.b16 %v1153, %v1149
    %v1178 = vpack.c.b16 %v1154, %v1150
    %v1179 = vpack.c.b16 %v1159, %v1155
    %v1180 = vpack.c.b16 %v1160, %v1156
    %v1181 = vpack.c.b16 %v1161, %v1157
    %v1182 = vpack.c.b16 %v1162, %v1158
    %v1183 = vpack.c.b16 %v1167, %v1163
    %v1184 = vpack.c.b16 %v1168, %v1164
    %v1185 = vpack.c.b16 %v1169, %v1165
    %v1186 = vpack.c.b16 %v1170, %v1166
    %v1204 = vsel %vm126, %v1106, 0
    %1206 = vmatpush.bf16.msra.mxu0 0
    %1207 = vmatpush.bf16.msra.mxu0 0
    %1208 = vmatpush.bf16.msra.mxu0 0
    %1209 = vmatpush.bf16.msra.mxu0 0
    %1210 = vmatpush.bf16.msra.mxu0 %v1183
    %1211 = vmatpush.bf16.msra.mxu0 %v1179
    %1212 = vmatpush.bf16.msra.mxu0 %v1175
    %1213 = vmatpush.bf16.msra.mxu0 %v1171
    %1214 = vmatmul.bf16.gmra.mxu0 %v1204
    %v1215 = vpop.f32.mrf.mxu0
    %v1216 = vadd.f32 0.0, %v1215
    %v1217 = vpop.f32.mrf.mxu0
    %v1218 = vadd.f32 0.0, %v1217
    %1219 = vdwg.mxu0
    %1220 = vmatpush.bf16.msra.mxu0 0
    %1221 = vmatpush.bf16.msra.mxu0 0
    %1222 = vmatpush.bf16.msra.mxu0 0
    %1223 = vmatpush.bf16.msra.mxu0 0
    %1224 = vmatpush.bf16.msra.mxu0 %v1184
    %1225 = vmatpush.bf16.msra.mxu0 %v1180
    %1226 = vmatpush.bf16.msra.mxu0 %v1176
    %1227 = vmatpush.bf16.msra.mxu0 %v1172
    %1228 = vmatmul.bf16.gmra.mxu0 %v1204
    %v1229 = vpop.f32.mrf.mxu0
    %v1230 = vadd.f32 0.0, %v1229
    %v1231 = vpop.f32.mrf.mxu0
    %v1232 = vadd.f32 0.0, %v1231
    %1233 = vdwg.mxu0
    %1234 = vmatpush.bf16.msra.mxu0 0
    %1235 = vmatpush.bf16.msra.mxu0 0
    %1236 = vmatpush.bf16.msra.mxu0 0
    %1237 = vmatpush.bf16.msra.mxu0 0
    %1238 = vmatpush.bf16.msra.mxu0 %v1185
    %1239 = vmatpush.bf16.msra.mxu0 %v1181
    %1240 = vmatpush.bf16.msra.mxu0 %v1177
    %1241 = vmatpush.bf16.msra.mxu0 %v1173
    %1242 = vmatmul.bf16.gmra.mxu0 %v1204
    %v1243 = vpop.f32.mrf.mxu0
    %v1244 = vadd.f32 0.0, %v1243
    %v1245 = vpop.f32.mrf.mxu0
    %v1246 = vadd.f32 0.0, %v1245
    %1247 = vdwg.mxu0
    %1248 = vmatpush.bf16.msra.mxu0 0
    %1249 = vmatpush.bf16.msra.mxu0 0
    %1250 = vmatpush.bf16.msra.mxu0 0
    %1251 = vmatpush.bf16.msra.mxu0 0
    %1252 = vmatpush.bf16.msra.mxu0 %v1186
    %1253 = vmatpush.bf16.msra.mxu0 %v1182
    %1254 = vmatpush.bf16.msra.mxu0 %v1178
    %1255 = vmatpush.bf16.msra.mxu0 %v1174
    %1256 = vmatmul.bf16.gmra.mxu0 %v1204
    %v1257 = vpop.f32.mrf.mxu0
    %v1258 = vadd.f32 0.0, %v1257
    %v1259 = vpop.f32.mrf.mxu0
    %v1260 = vadd.f32 0.0, %v1259
    %1261 = vdwg.mxu0
    %v1262 = vmax.f32 %v1216, 0.0
    %v1263 = vmax.f32 %v1230, 0.0
    %v1264 = vmax.f32 %v1244, 0.0
    %v1265 = vmax.f32 %v1258, 0.0
    %v1266 = vmax.f32 %v1218, 0.0
    %v1267 = vmax.f32 %v1232, 0.0
    %v1268 = vmax.f32 %v1246, 0.0
    %v1269 = vmax.f32 %v1260, 0.0
    %v1270 = vpack.c.bf16 %v1266, %v1262
    %v1271 = vpack.c.bf16 %v1267, %v1263
    %v1272 = vpack.c.bf16 %v1268, %v1264
    %v1273 = vpack.c.bf16 %v1269, %v1265
    %v1274 = vld [vmem:[%s7] sm:$0xf]
    %v1275 = vld [vmem:[%s7 + $0x4] sm:$0xf]
    %v1276 = vld [vmem:[%s7 + $0x8] sm:$0xf]
    %v1277 = vld [vmem:[%s7 + $0xc] sm:$0xf]
    %v1278 = vld [vmem:[%s7 + $0x10] sm:$0xf]
    %v1279 = vld [vmem:[%s7 + $0x14] sm:$0xf]
    %v1280 = vld [vmem:[%s7 + $0x18] sm:$0xf]
    %v1281 = vld [vmem:[%s7 + $0x1c] sm:$0xf]
    %v1282 = vld [vmem:[%s7 + $0x20] sm:$0xf]
    %v1283 = vld [vmem:[%s7 + $0x24] sm:$0xf]
    %v1284 = vld [vmem:[%s7 + $0x28] sm:$0xf]
    %v1285 = vld [vmem:[%s7 + $0x2c] sm:$0xf]
    %v1286 = vld [vmem:[%s7 + $0x30] sm:$0xf]
    %v1287 = vld [vmem:[%s7 + $0x34] sm:$0xf]
    %v1288 = vld [vmem:[%s7 + $0x38] sm:$0xf]
    %v1289 = vld [vmem:[%s7 + $0x3c] sm:$0xf]
    %v1290 = vld [vmem:[%s7 + $0x40] sm:$0xf]
    %v1291 = vld [vmem:[%s7 + $0x44] sm:$0xf]
    %v1292 = vld [vmem:[%s7 + $0x48] sm:$0xf]
    %v1293 = vld [vmem:[%s7 + $0x4c] sm:$0xf]
    %v1294 = vld [vmem:[%s7 + $0x50] sm:$0xf]
    %v1295 = vld [vmem:[%s7 + $0x54] sm:$0xf]
    %v1296 = vld [vmem:[%s7 + $0x58] sm:$0xf]
    %v1297 = vld [vmem:[%s7 + $0x5c] sm:$0xf]
    %v1298 = vld [vmem:[%s7 + $0x60] sm:$0xf]
    %v1299 = vld [vmem:[%s7 + $0x64] sm:$0xf]
    %v1300 = vld [vmem:[%s7 + $0x68] sm:$0xf]
    %v1301 = vld [vmem:[%s7 + $0x6c] sm:$0xf]
    %v1302 = vld [vmem:[%s7 + $0x70] sm:$0xf]
    %v1303 = vld [vmem:[%s7 + $0x74] sm:$0xf]
    %v1304 = vld [vmem:[%s7 + $0x78] sm:$0xf]
    %v1305 = vld [vmem:[%s7 + $0x7c] sm:$0xf]
    %v1306 = vld [vmem:[%s7 + $0x80] sm:$0xf]
    %v1307 = vld [vmem:[%s7 + $0x84] sm:$0xf]
    %v1308 = vld [vmem:[%s7 + $0x88] sm:$0xf]
    %v1309 = vld [vmem:[%s7 + $0x8c] sm:$0xf]
    %v1310 = vld [vmem:[%s7 + $0x90] sm:$0xf]
    %v1311 = vld [vmem:[%s7 + $0x94] sm:$0xf]
    %v1312 = vld [vmem:[%s7 + $0x98] sm:$0xf]
    %v1313 = vld [vmem:[%s7 + $0x9c] sm:$0xf]
    %v1314 = vld [vmem:[%s7 + $0xa0] sm:$0xf]
    %v1315 = vld [vmem:[%s7 + $0xa4] sm:$0xf]
    %v1316 = vld [vmem:[%s7 + $0xa8] sm:$0xf]
    %v1317 = vld [vmem:[%s7 + $0xac] sm:$0xf]
    %v1318 = vld [vmem:[%s7 + $0xb0] sm:$0xf]
    %v1319 = vld [vmem:[%s7 + $0xb4] sm:$0xf]
    %v1320 = vld [vmem:[%s7 + $0xb8] sm:$0xf]
    %v1321 = vld [vmem:[%s7 + $0xbc] sm:$0xf]
    %v1322 = vld [vmem:[%s7 + $0xc0] sm:$0xf]
    %v1323 = vld [vmem:[%s7 + $0xc4] sm:$0xf]
    %v1324 = vld [vmem:[%s7 + $0xc8] sm:$0xf]
    %v1325 = vld [vmem:[%s7 + $0xcc] sm:$0xf]
    %v1326 = vld [vmem:[%s7 + $0xd0] sm:$0xf]
    %v1327 = vld [vmem:[%s7 + $0xd4] sm:$0xf]
    %v1328 = vld [vmem:[%s7 + $0xd8] sm:$0xf]
    %v1329 = vld [vmem:[%s7 + $0xdc] sm:$0xf]
    %v1330 = vld [vmem:[%s7 + $0xe0] sm:$0xf]
    %v1331 = vld [vmem:[%s7 + $0xe4] sm:$0xf]
    %v1332 = vld [vmem:[%s7 + $0xe8] sm:$0xf]
    %v1333 = vld [vmem:[%s7 + $0xec] sm:$0xf]
    %v1334 = vld [vmem:[%s7 + $0xf0] sm:$0xf]
    %v1335 = vld [vmem:[%s7 + $0xf4] sm:$0xf]
    %v1336 = vld [vmem:[%s7 + $0xf8] sm:$0xf]
    %v1337 = vld [vmem:[%s7 + $0xfc] sm:$0xf]
    %v1402 = vunpack.c.l.b16 %v1274
    %v1403 = vunpack.c.l.b16 %v1275
    %v1404 = vunpack.c.l.b16 %v1276
    %v1405 = vunpack.c.l.b16 %v1277
    %v1406 = vunpack.c.l.b16 %v1278
    %v1407 = vunpack.c.l.b16 %v1279
    %v1408 = vunpack.c.l.b16 %v1280
    %v1409 = vunpack.c.l.b16 %v1281
    %v1410 = vunpack.c.l.b16 %v1282
    %v1411 = vunpack.c.l.b16 %v1283
    %v1412 = vunpack.c.l.b16 %v1284
    %v1413 = vunpack.c.l.b16 %v1285
    %v1414 = vunpack.c.l.b16 %v1286
    %v1415 = vunpack.c.l.b16 %v1287
    %v1416 = vunpack.c.l.b16 %v1288
    %v1417 = vunpack.c.l.b16 %v1289
    %v1418 = vunpack.c.l.b16 %v1290
    %v1419 = vunpack.c.l.b16 %v1291
    %v1420 = vunpack.c.l.b16 %v1292
    %v1421 = vunpack.c.l.b16 %v1293
    %v1422 = vunpack.c.l.b16 %v1294
    %v1423 = vunpack.c.l.b16 %v1295
    %v1424 = vunpack.c.l.b16 %v1296
    %v1425 = vunpack.c.l.b16 %v1297
    %v1426 = vunpack.c.l.b16 %v1298
    %v1427 = vunpack.c.l.b16 %v1299
    %v1428 = vunpack.c.l.b16 %v1300
    %v1429 = vunpack.c.l.b16 %v1301
    %v1430 = vunpack.c.l.b16 %v1302
    %v1431 = vunpack.c.l.b16 %v1303
    %v1432 = vunpack.c.l.b16 %v1304
    %v1433 = vunpack.c.l.b16 %v1305
    %v1434 = vunpack.c.l.b16 %v1306
    %v1435 = vunpack.c.l.b16 %v1307
    %v1436 = vunpack.c.l.b16 %v1308
    %v1437 = vunpack.c.l.b16 %v1309
    %v1438 = vunpack.c.l.b16 %v1310
    %v1439 = vunpack.c.l.b16 %v1311
    %v1440 = vunpack.c.l.b16 %v1312
    %v1441 = vunpack.c.l.b16 %v1313
    %v1442 = vunpack.c.l.b16 %v1314
    %v1443 = vunpack.c.l.b16 %v1315
    %v1444 = vunpack.c.l.b16 %v1316
    %v1445 = vunpack.c.l.b16 %v1317
    %v1446 = vunpack.c.l.b16 %v1318
    %v1447 = vunpack.c.l.b16 %v1319
    %v1448 = vunpack.c.l.b16 %v1320
    %v1449 = vunpack.c.l.b16 %v1321
    %v1450 = vunpack.c.l.b16 %v1322
    %v1451 = vunpack.c.l.b16 %v1323
    %v1452 = vunpack.c.l.b16 %v1324
    %v1453 = vunpack.c.l.b16 %v1325
    %v1454 = vunpack.c.l.b16 %v1326
    %v1455 = vunpack.c.l.b16 %v1327
    %v1456 = vunpack.c.l.b16 %v1328
    %v1457 = vunpack.c.l.b16 %v1329
    %v1458 = vunpack.c.l.b16 %v1330
    %v1459 = vunpack.c.l.b16 %v1331
    %v1460 = vunpack.c.l.b16 %v1332
    %v1461 = vunpack.c.l.b16 %v1333
    %v1462 = vunpack.c.l.b16 %v1334
    %v1463 = vunpack.c.l.b16 %v1335
    %v1464 = vunpack.c.l.b16 %v1336
    %v1465 = vunpack.c.l.b16 %v1337
    %v1466 = vpack.c.b16 %v1403, %v1402
    %v1467 = vpack.c.b16 %v1405, %v1404
    %v1468 = vpack.c.b16 %v1407, %v1406
    %v1469 = vpack.c.b16 %v1409, %v1408
    %v1470 = vpack.c.b16 %v1411, %v1410
    %v1471 = vpack.c.b16 %v1413, %v1412
    %v1472 = vpack.c.b16 %v1415, %v1414
    %v1473 = vpack.c.b16 %v1417, %v1416
    %v1474 = vpack.c.b16 %v1419, %v1418
    %v1475 = vpack.c.b16 %v1421, %v1420
    %v1476 = vpack.c.b16 %v1423, %v1422
    %v1477 = vpack.c.b16 %v1425, %v1424
    %v1478 = vpack.c.b16 %v1427, %v1426
    %v1479 = vpack.c.b16 %v1429, %v1428
    %v1480 = vpack.c.b16 %v1431, %v1430
    %v1481 = vpack.c.b16 %v1433, %v1432
    %v1482 = vpack.c.b16 %v1435, %v1434
    %v1483 = vpack.c.b16 %v1437, %v1436
    %v1484 = vpack.c.b16 %v1439, %v1438
    %v1485 = vpack.c.b16 %v1441, %v1440
    %v1486 = vpack.c.b16 %v1443, %v1442
    %v1487 = vpack.c.b16 %v1445, %v1444
    %v1488 = vpack.c.b16 %v1447, %v1446
    %v1489 = vpack.c.b16 %v1449, %v1448
    %v1490 = vpack.c.b16 %v1451, %v1450
    %v1491 = vpack.c.b16 %v1453, %v1452
    %v1492 = vpack.c.b16 %v1455, %v1454
    %v1493 = vpack.c.b16 %v1457, %v1456
    %v1494 = vpack.c.b16 %v1459, %v1458
    %v1495 = vpack.c.b16 %v1461, %v1460
    %v1496 = vpack.c.b16 %v1463, %v1462
    %v1497 = vpack.c.b16 %v1465, %v1464
    %1530 = vmatpush.bf16.msra.mxu0 %v1473
    %1531 = vmatpush.bf16.msra.mxu0 %v1472
    %1532 = vmatpush.bf16.msra.mxu0 %v1471
    %1533 = vmatpush.bf16.msra.mxu0 %v1470
    %1534 = vmatpush.bf16.msra.mxu0 %v1469
    %1535 = vmatpush.bf16.msra.mxu0 %v1468
    %1536 = vmatpush.bf16.msra.mxu0 %v1467
    %1537 = vmatpush.bf16.msra.mxu0 %v1466
    %1538 = vmatmul.bf16.gmra.mxu0 %v1270
    %v1539 = vpop.f32.mrf.mxu0
    %v1540 = vadd.f32 %v1104, %v1539
    %v1541 = vpop.f32.mrf.mxu0
    %v1542 = vadd.f32 %v1105, %v1541
    %1543 = vdwg.mxu0
    %1544 = vmatpush.bf16.msra.mxu0 %v1481
    %1545 = vmatpush.bf16.msra.mxu0 %v1480
    %1546 = vmatpush.bf16.msra.mxu0 %v1479
    %1547 = vmatpush.bf16.msra.mxu0 %v1478
    %1548 = vmatpush.bf16.msra.mxu0 %v1477
    %1549 = vmatpush.bf16.msra.mxu0 %v1476
    %1550 = vmatpush.bf16.msra.mxu0 %v1475
    %1551 = vmatpush.bf16.msra.mxu0 %v1474
    %1552 = vmatmul.bf16.gmra.mxu0 %v1271
    %v1553 = vpop.f32.mrf.mxu0
    %v1554 = vadd.f32 %v1540, %v1553
    %v1555 = vpop.f32.mrf.mxu0
    %v1556 = vadd.f32 %v1542, %v1555
    %1557 = vdwg.mxu0
    %1558 = vmatpush.bf16.msra.mxu0 %v1489
    %1559 = vmatpush.bf16.msra.mxu0 %v1488
    %1560 = vmatpush.bf16.msra.mxu0 %v1487
    %1561 = vmatpush.bf16.msra.mxu0 %v1486
    %1562 = vmatpush.bf16.msra.mxu0 %v1485
    %1563 = vmatpush.bf16.msra.mxu0 %v1484
    %1564 = vmatpush.bf16.msra.mxu0 %v1483
    %1565 = vmatpush.bf16.msra.mxu0 %v1482
    %1566 = vmatmul.bf16.gmra.mxu0 %v1272
    %v1567 = vpop.f32.mrf.mxu0
    %v1568 = vadd.f32 %v1554, %v1567
    %v1569 = vpop.f32.mrf.mxu0
    %v1570 = vadd.f32 %v1556, %v1569
    %1571 = vdwg.mxu0
    %1572 = vmatpush.bf16.msra.mxu0 %v1497
    %1573 = vmatpush.bf16.msra.mxu0 %v1496
    %1574 = vmatpush.bf16.msra.mxu0 %v1495
    %1575 = vmatpush.bf16.msra.mxu0 %v1494
    %1576 = vmatpush.bf16.msra.mxu0 %v1493
    %1577 = vmatpush.bf16.msra.mxu0 %v1492
    %1578 = vmatpush.bf16.msra.mxu0 %v1491
    %1579 = vmatpush.bf16.msra.mxu0 %v1490
    %1580 = vmatmul.bf16.gmra.mxu0 %v1273
    %v1581 = vpop.f32.mrf.mxu0
    %v1582 = vadd.f32 %v1568, %v1581
    %v1583 = vpop.f32.mrf.mxu0
    %v1584 = vadd.f32 %v1570, %v1583
    %1585 = vdwg.mxu0
    %v1586 = vsel %vm126, %v1582, 0.0
    %1587 = vadd.xlane.f32.xlu0 %v1586
    %v1588 = vpop.xlane.xlu0 %1587
    %v1589 = vsel %vm126, %v1584, 0.0
    %1590 = vadd.xlane.f32.xlu0 %v1589
    %v1591 = vpop.xlane.xlu0 %1590
    %v1592 = vmul.f32 %v1588, %v1067
    %v1593 = vmul.f32 %v1591, %v1067
    %v1594 = vsub.f32 %v1582, %v1592
    %v1595 = vsub.f32 %v1584, %v1593
    %v1596 = vmul.f32 %v1594, %v1594
    %v1597 = vmul.f32 %v1595, %v1595
    %v1598 = vsel %vm126, %v1596, 0.0
    %1599 = vadd.xlane.f32.xlu0 %v1598
    %v1600 = vpop.xlane.xlu0 %1599
    %v1601 = vsel %vm126, %v1597, 0.0
    %1602 = vadd.xlane.f32.xlu0 %v1601
    %v1603 = vpop.xlane.xlu0 %1602
    %v1604 = vmul.f32 %v1600, %v1067
    %v1605 = vmul.f32 %v1603, %v1067
    %v1606 = vadd.f32 %v1604, 1e-05
    %v1607 = vadd.f32 %v1605, 1e-05
    %v1608 = vrsqrt.pop %v1606
    %v1609 = vmul.f32 %v1608, %v1606
    %v1610 = vmul.f32 %v1609, %v1608
    %v1611 = vmul.f32 0.5, %v1610
    %v1612 = vsub.f32 1.5, %v1611
    %v1613 = vmul.f32 %v1608, %v1612
    %vm1614 = vweird.f32 %v1606
    %vm1615 = vweird.f32 %v1608
    %vm1616 = vmor %vm1614, %vm1615
    %v1617 = vsel %vm1616, %v1608, %v1613
    %v1618 = vrsqrt.pop %v1607
    %v1619 = vmul.f32 %v1618, %v1607
    %v1620 = vmul.f32 %v1619, %v1618
    %v1621 = vmul.f32 0.5, %v1620
    %v1622 = vsub.f32 1.5, %v1621
    %v1623 = vmul.f32 %v1618, %v1622
    %vm1624 = vweird.f32 %v1607
    %vm1625 = vweird.f32 %v1618
    %vm1626 = vmor %vm1624, %vm1625
    %v1627 = vsel %vm1626, %v1618, %v1623
    %v1628 = vmul.f32 %v1594, %v1617
    %v1629 = vmul.f32 %v1595, %v1627
    %v1630 = vpack.c.bf16 %v1629, %v1628
    %s1631 = scalar_lea.vmem %s2, 96
    %v1632 = vld [vmem:[%s1631] sm:$0xff]
    %v1633 = vld [vmem:[%s1631 + $0x8] sm:$0xf]
    %v1634 = vld [vmem:[%s1631 + $0xc] sm:$0xff]
    %v1635 = vld [vmem:[%s1631 + $0x14] sm:$0xf]
    %v1636 = vld [vmem:[%s1631 + $0x18] sm:$0xff]
    %v1637 = vld [vmem:[%s1631 + $0x20] sm:$0xf]
    %v1638 = vld [vmem:[%s1631 + $0x24] sm:$0xff]
    %v1639 = vld [vmem:[%s1631 + $0x2c] sm:$0xf]
    %v1640 = vld [vmem:[%s1631 + $0x30] sm:$0xff]
    %v1641 = vld [vmem:[%s1631 + $0x38] sm:$0xf]
    %v1642 = vld [vmem:[%s1631 + $0x3c] sm:$0xff]
    %v1643 = vld [vmem:[%s1631 + $0x44] sm:$0xf]
    %v1644 = vld [vmem:[%s1631 + $0x48] sm:$0xff]
    %v1645 = vld [vmem:[%s1631 + $0x50] sm:$0xf]
    %v1646 = vld [vmem:[%s1631 + $0x54] sm:$0xff]
    %v1647 = vld [vmem:[%s1631 + $0x5c] sm:$0xf]
    %v1664 = vunpack.c.l.b16 %v1632
    %v1665 = vunpack.c.h.b16 %v1632
    %v1666 = vunpack.c.l.b16 %v1633
    %v1667 = vunpack.c.l.b16 %v1634
    %v1668 = vunpack.c.h.b16 %v1634
    %v1669 = vunpack.c.l.b16 %v1635
    %v1670 = vunpack.c.l.b16 %v1636
    %v1671 = vunpack.c.h.b16 %v1636
    %v1672 = vunpack.c.l.b16 %v1637
    %v1673 = vunpack.c.l.b16 %v1638
    %v1674 = vunpack.c.h.b16 %v1638
    %v1675 = vunpack.c.l.b16 %v1639
    %v1676 = vunpack.c.l.b16 %v1640
    %v1677 = vunpack.c.h.b16 %v1640
    %v1678 = vunpack.c.l.b16 %v1641
    %v1679 = vunpack.c.l.b16 %v1642
    %v1680 = vunpack.c.h.b16 %v1642
    %v1681 = vunpack.c.l.b16 %v1643
    %v1682 = vunpack.c.l.b16 %v1644
    %v1683 = vunpack.c.h.b16 %v1644
    %v1684 = vunpack.c.l.b16 %v1645
    %v1685 = vunpack.c.l.b16 %v1646
    %v1686 = vunpack.c.h.b16 %v1646
    %v1687 = vunpack.c.l.b16 %v1647
    %v1688 = vpack.c.b16 %v1667, %v1664
    %v1689 = vpack.c.b16 %v1668, %v1665
    %v1690 = vpack.c.b16 %v1669, %v1666
    %v1691 = vpack.c.b16 %v1673, %v1670
    %v1692 = vpack.c.b16 %v1674, %v1671
    %v1693 = vpack.c.b16 %v1675, %v1672
    %v1694 = vpack.c.b16 %v1679, %v1676
    %v1695 = vpack.c.b16 %v1680, %v1677
    %v1696 = vpack.c.b16 %v1681, %v1678
    %v1697 = vpack.c.b16 %v1685, %v1682
    %v1698 = vpack.c.b16 %v1686, %v1683
    %v1699 = vpack.c.b16 %v1687, %v1684
    %v1713 = vsel %vm126, %v1630, 0
    %1715 = vmatpush.bf16.msra.mxu0 0
    %1716 = vmatpush.bf16.msra.mxu0 0
    %1717 = vmatpush.bf16.msra.mxu0 0
    %1718 = vmatpush.bf16.msra.mxu0 0
    %1719 = vmatpush.bf16.msra.mxu0 %v1697
    %1720 = vmatpush.bf16.msra.mxu0 %v1694
    %1721 = vmatpush.bf16.msra.mxu0 %v1691
    %1722 = vmatpush.bf16.msra.mxu0 %v1688
    %1723 = vmatmul.bf16.gmra.mxu0 %v1713
    %v1724 = vpop.f32.mrf.mxu0
    %v1725 = vadd.f32 0.0, %v1724
    %v1726 = vpop.f32.mrf.mxu0
    %v1727 = vadd.f32 0.0, %v1726
    %1728 = vdwg.mxu0
    %1729 = vmatpush.bf16.msra.mxu0 0
    %1730 = vmatpush.bf16.msra.mxu0 0
    %1731 = vmatpush.bf16.msra.mxu0 0
    %1732 = vmatpush.bf16.msra.mxu0 0
    %1733 = vmatpush.bf16.msra.mxu0 %v1698
    %1734 = vmatpush.bf16.msra.mxu0 %v1695
    %1735 = vmatpush.bf16.msra.mxu0 %v1692
    %1736 = vmatpush.bf16.msra.mxu0 %v1689
    %1737 = vmatmul.bf16.gmra.mxu0 %v1713
    %v1738 = vpop.f32.mrf.mxu0
    %v1739 = vadd.f32 0.0, %v1738
    %v1740 = vpop.f32.mrf.mxu0
    %v1741 = vadd.f32 0.0, %v1740
    %1742 = vdwg.mxu0
    %1743 = vmatpush.bf16.msra.mxu0 0
    %1744 = vmatpush.bf16.msra.mxu0 0
    %1745 = vmatpush.bf16.msra.mxu0 0
    %1746 = vmatpush.bf16.msra.mxu0 0
    %1747 = vmatpush.bf16.msra.mxu0 %v1699
    %1748 = vmatpush.bf16.msra.mxu0 %v1696
    %1749 = vmatpush.bf16.msra.mxu0 %v1693
    %1750 = vmatpush.bf16.msra.mxu0 %v1690
    %1751 = vmatmul.bf16.gmra.mxu0 %v1713
    %v1752 = vpop.f32.mrf.mxu0
    %v1753 = vadd.f32 0.0, %v1752
    %v1754 = vpop.f32.mrf.mxu0
    %v1755 = vadd.f32 0.0, %v1754
    %1756 = vdwg.mxu0
    %s1757 = scalar_lea.vmem %s3, 96
    %v1758 = vld [vmem:[%s1757] sm:$0xff]
    %v1759 = vld [vmem:[%s1757 + $0x8] sm:$0xf]
    %v1760 = vld [vmem:[%s1757 + $0xc] sm:$0xff]
    %v1761 = vld [vmem:[%s1757 + $0x14] sm:$0xf]
    %v1762 = vld [vmem:[%s1757 + $0x18] sm:$0xff]
    %v1763 = vld [vmem:[%s1757 + $0x20] sm:$0xf]
    %v1764 = vld [vmem:[%s1757 + $0x24] sm:$0xff]
    %v1765 = vld [vmem:[%s1757 + $0x2c] sm:$0xf]
    %v1766 = vld [vmem:[%s1757 + $0x30] sm:$0xff]
    %v1767 = vld [vmem:[%s1757 + $0x38] sm:$0xf]
    %v1768 = vld [vmem:[%s1757 + $0x3c] sm:$0xff]
    %v1769 = vld [vmem:[%s1757 + $0x44] sm:$0xf]
    %v1770 = vld [vmem:[%s1757 + $0x48] sm:$0xff]
    %v1771 = vld [vmem:[%s1757 + $0x50] sm:$0xf]
    %v1772 = vld [vmem:[%s1757 + $0x54] sm:$0xff]
    %v1773 = vld [vmem:[%s1757 + $0x5c] sm:$0xf]
    %v1790 = vunpack.c.l.b16 %v1758
    %v1791 = vunpack.c.h.b16 %v1758
    %v1792 = vunpack.c.l.b16 %v1759
    %v1793 = vunpack.c.l.b16 %v1760
    %v1794 = vunpack.c.h.b16 %v1760
    %v1795 = vunpack.c.l.b16 %v1761
    %v1796 = vunpack.c.l.b16 %v1762
    %v1797 = vunpack.c.h.b16 %v1762
    %v1798 = vunpack.c.l.b16 %v1763
    %v1799 = vunpack.c.l.b16 %v1764
    %v1800 = vunpack.c.h.b16 %v1764
    %v1801 = vunpack.c.l.b16 %v1765
    %v1802 = vunpack.c.l.b16 %v1766
    %v1803 = vunpack.c.h.b16 %v1766
    %v1804 = vunpack.c.l.b16 %v1767
    %v1805 = vunpack.c.l.b16 %v1768
    %v1806 = vunpack.c.h.b16 %v1768
    %v1807 = vunpack.c.l.b16 %v1769
    %v1808 = vunpack.c.l.b16 %v1770
    %v1809 = vunpack.c.h.b16 %v1770
    %v1810 = vunpack.c.l.b16 %v1771
    %v1811 = vunpack.c.l.b16 %v1772
    %v1812 = vunpack.c.h.b16 %v1772
    %v1813 = vunpack.c.l.b16 %v1773
    %v1814 = vpack.c.b16 %v1793, %v1790
    %v1815 = vpack.c.b16 %v1794, %v1791
    %v1816 = vpack.c.b16 %v1795, %v1792
    %v1817 = vpack.c.b16 %v1799, %v1796
    %v1818 = vpack.c.b16 %v1800, %v1797
    %v1819 = vpack.c.b16 %v1801, %v1798
    %v1820 = vpack.c.b16 %v1805, %v1802
    %v1821 = vpack.c.b16 %v1806, %v1803
    %v1822 = vpack.c.b16 %v1807, %v1804
    %v1823 = vpack.c.b16 %v1811, %v1808
    %v1824 = vpack.c.b16 %v1812, %v1809
    %v1825 = vpack.c.b16 %v1813, %v1810
    %1838 = vmatpush.bf16.msra.mxu0 0
    %1839 = vmatpush.bf16.msra.mxu0 0
    %1840 = vmatpush.bf16.msra.mxu0 0
    %1841 = vmatpush.bf16.msra.mxu0 0
    %1842 = vmatpush.bf16.msra.mxu0 %v1823
    %1843 = vmatpush.bf16.msra.mxu0 %v1820
    %1844 = vmatpush.bf16.msra.mxu0 %v1817
    %1845 = vmatpush.bf16.msra.mxu0 %v1814
    %1846 = vmatmul.bf16.gmra.mxu0 %v1713
    %v1847 = vpop.f32.mrf.mxu0
    %v1848 = vadd.f32 0.0, %v1847
    %v1849 = vpop.f32.mrf.mxu0
    %v1850 = vadd.f32 0.0, %v1849
    %1851 = vdwg.mxu0
    %1852 = vmatpush.bf16.msra.mxu0 0
    %1853 = vmatpush.bf16.msra.mxu0 0
    %1854 = vmatpush.bf16.msra.mxu0 0
    %1855 = vmatpush.bf16.msra.mxu0 0
    %1856 = vmatpush.bf16.msra.mxu0 %v1824
    %1857 = vmatpush.bf16.msra.mxu0 %v1821
    %1858 = vmatpush.bf16.msra.mxu0 %v1818
    %1859 = vmatpush.bf16.msra.mxu0 %v1815
    %1860 = vmatmul.bf16.gmra.mxu0 %v1713
    %v1861 = vpop.f32.mrf.mxu0
    %v1862 = vadd.f32 0.0, %v1861
    %v1863 = vpop.f32.mrf.mxu0
    %v1864 = vadd.f32 0.0, %v1863
    %1865 = vdwg.mxu0
    %1866 = vmatpush.bf16.msra.mxu0 0
    %1867 = vmatpush.bf16.msra.mxu0 0
    %1868 = vmatpush.bf16.msra.mxu0 0
    %1869 = vmatpush.bf16.msra.mxu0 0
    %1870 = vmatpush.bf16.msra.mxu0 %v1825
    %1871 = vmatpush.bf16.msra.mxu0 %v1822
    %1872 = vmatpush.bf16.msra.mxu0 %v1819
    %1873 = vmatpush.bf16.msra.mxu0 %v1816
    %1874 = vmatmul.bf16.gmra.mxu0 %v1713
    %v1875 = vpop.f32.mrf.mxu0
    %v1876 = vadd.f32 0.0, %v1875
    %v1877 = vpop.f32.mrf.mxu0
    %v1878 = vadd.f32 0.0, %v1877
    %1879 = vdwg.mxu0
    %s1880 = scalar_lea.vmem %s4, 96
    %v1881 = vld [vmem:[%s1880] sm:$0xff]
    %v1882 = vld [vmem:[%s1880 + $0x8] sm:$0xf]
    %v1883 = vld [vmem:[%s1880 + $0xc] sm:$0xff]
    %v1884 = vld [vmem:[%s1880 + $0x14] sm:$0xf]
    %v1885 = vld [vmem:[%s1880 + $0x18] sm:$0xff]
    %v1886 = vld [vmem:[%s1880 + $0x20] sm:$0xf]
    %v1887 = vld [vmem:[%s1880 + $0x24] sm:$0xff]
    %v1888 = vld [vmem:[%s1880 + $0x2c] sm:$0xf]
    %v1889 = vld [vmem:[%s1880 + $0x30] sm:$0xff]
    %v1890 = vld [vmem:[%s1880 + $0x38] sm:$0xf]
    %v1891 = vld [vmem:[%s1880 + $0x3c] sm:$0xff]
    %v1892 = vld [vmem:[%s1880 + $0x44] sm:$0xf]
    %v1893 = vld [vmem:[%s1880 + $0x48] sm:$0xff]
    %v1894 = vld [vmem:[%s1880 + $0x50] sm:$0xf]
    %v1895 = vld [vmem:[%s1880 + $0x54] sm:$0xff]
    %v1896 = vld [vmem:[%s1880 + $0x5c] sm:$0xf]
    %v1913 = vunpack.c.l.b16 %v1881
    %v1914 = vunpack.c.h.b16 %v1881
    %v1915 = vunpack.c.l.b16 %v1882
    %v1916 = vunpack.c.l.b16 %v1883
    %v1917 = vunpack.c.h.b16 %v1883
    %v1918 = vunpack.c.l.b16 %v1884
    %v1919 = vunpack.c.l.b16 %v1885
    %v1920 = vunpack.c.h.b16 %v1885
    %v1921 = vunpack.c.l.b16 %v1886
    %v1922 = vunpack.c.l.b16 %v1887
    %v1923 = vunpack.c.h.b16 %v1887
    %v1924 = vunpack.c.l.b16 %v1888
    %v1925 = vunpack.c.l.b16 %v1889
    %v1926 = vunpack.c.h.b16 %v1889
    %v1927 = vunpack.c.l.b16 %v1890
    %v1928 = vunpack.c.l.b16 %v1891
    %v1929 = vunpack.c.h.b16 %v1891
    %v1930 = vunpack.c.l.b16 %v1892
    %v1931 = vunpack.c.l.b16 %v1893
    %v1932 = vunpack.c.h.b16 %v1893
    %v1933 = vunpack.c.l.b16 %v1894
    %v1934 = vunpack.c.l.b16 %v1895
    %v1935 = vunpack.c.h.b16 %v1895
    %v1936 = vunpack.c.l.b16 %v1896
    %v1937 = vpack.c.b16 %v1916, %v1913
    %v1938 = vpack.c.b16 %v1917, %v1914
    %v1939 = vpack.c.b16 %v1918, %v1915
    %v1940 = vpack.c.b16 %v1922, %v1919
    %v1941 = vpack.c.b16 %v1923, %v1920
    %v1942 = vpack.c.b16 %v1924, %v1921
    %v1943 = vpack.c.b16 %v1928, %v1925
    %v1944 = vpack.c.b16 %v1929, %v1926
    %v1945 = vpack.c.b16 %v1930, %v1927
    %v1946 = vpack.c.b16 %v1934, %v1931
    %v1947 = vpack.c.b16 %v1935, %v1932
    %v1948 = vpack.c.b16 %v1936, %v1933
    %1961 = vmatpush.bf16.msra.mxu0 0
    %1962 = vmatpush.bf16.msra.mxu0 0
    %1963 = vmatpush.bf16.msra.mxu0 0
    %1964 = vmatpush.bf16.msra.mxu0 0
    %1965 = vmatpush.bf16.msra.mxu0 %v1946
    %1966 = vmatpush.bf16.msra.mxu0 %v1943
    %1967 = vmatpush.bf16.msra.mxu0 %v1940
    %1968 = vmatpush.bf16.msra.mxu0 %v1937
    %1969 = vmatmul.bf16.gmra.mxu0 %v1713
    %v1970 = vpop.f32.mrf.mxu0
    %v1971 = vadd.f32 0.0, %v1970
    %v1972 = vpop.f32.mrf.mxu0
    %v1973 = vadd.f32 0.0, %v1972
    %1974 = vdwg.mxu0
    %1975 = vmatpush.bf16.msra.mxu0 0
    %1976 = vmatpush.bf16.msra.mxu0 0
    %1977 = vmatpush.bf16.msra.mxu0 0
    %1978 = vmatpush.bf16.msra.mxu0 0
    %1979 = vmatpush.bf16.msra.mxu0 %v1947
    %1980 = vmatpush.bf16.msra.mxu0 %v1944
    %1981 = vmatpush.bf16.msra.mxu0 %v1941
    %1982 = vmatpush.bf16.msra.mxu0 %v1938
    %1983 = vmatmul.bf16.gmra.mxu0 %v1713
    %v1984 = vpop.f32.mrf.mxu0
    %v1985 = vadd.f32 0.0, %v1984
    %v1986 = vpop.f32.mrf.mxu0
    %v1987 = vadd.f32 0.0, %v1986
    %1988 = vdwg.mxu0
    %1989 = vmatpush.bf16.msra.mxu0 0
    %1990 = vmatpush.bf16.msra.mxu0 0
    %1991 = vmatpush.bf16.msra.mxu0 0
    %1992 = vmatpush.bf16.msra.mxu0 0
    %1993 = vmatpush.bf16.msra.mxu0 %v1948
    %1994 = vmatpush.bf16.msra.mxu0 %v1945
    %1995 = vmatpush.bf16.msra.mxu0 %v1942
    %1996 = vmatpush.bf16.msra.mxu0 %v1939
    %1997 = vmatmul.bf16.gmra.mxu0 %v1713
    %v1998 = vpop.f32.mrf.mxu0
    %v1999 = vadd.f32 0.0, %v1998
    %v2000 = vpop.f32.mrf.mxu0
    %v2001 = vadd.f32 0.0, %v2000
    %2002 = vdwg.mxu0
    %v2003 = vpack.c.bf16 %v1739, %v1725
    %v2004 = vpack.c.bf16 %v1753, %v1753
    %v2005 = vpack.c.bf16 %v1862, %v1848
    %v2006 = vpack.c.bf16 %v1876, %v1876
    %v2007 = vpack.c.bf16 %v1985, %v1971
    %v2008 = vpack.c.bf16 %v1999, %v1999
    %2009 = vmatpush.bf16.xpose.msra.mxu0 0
    %2010 = vmatpush.bf16.xpose.msra.mxu0 0
    %2011 = vmatpush.bf16.xpose.msra.mxu0 0
    %2012 = vmatpush.bf16.xpose.msra.mxu0 0
    %2013 = vmatpush.bf16.xpose.msra.mxu0 0
    %2014 = vmatpush.bf16.xpose.msra.mxu0 0
    %2015 = vmatpush.bf16.xpose.msra.mxu0 0
    %2016 = vmatpush.bf16.xpose.msra.mxu0 %v2005
    %2017 = vmatmul.bf16.gmra.mxu0 %v2003
    %v2018 = vpop.f32.mrf.mxu0
    %v2019 = vadd.f32 %v38, %v2018
    %v2020 = vpop.f32.mrf.mxu0
    %2021 = vdwg.mxu0
    %v2022 = vsel %vm435, %v2019, -inf
    %2023 = vmax.xlane.f32.xlu0 %v2022
    %v2024 = vpop.xlane.xlu0 %2023
    %v2025 = vsub.f32 %v2019, %v2024
    %v2026 = vmul.f32 %v2025, 1.442695
    %v2027 = vpow.pop %v2026
    %v2028 = vsel %vm435, %v2027, 0.0
    %2029 = vadd.xlane.f32.xlu0 %v2028
    %v2030 = vpop.xlane.xlu0 %2029
    %v2031 = vrcp.pop %v2030
    %v2032 = vmul.f32 %v2030, %v2031
    %v2033 = vsub.f32 1.0, %v2032
    %v2034 = vmul.f32 %v2031, %v2033
    %v2035 = vadd.f32 %v2031, %v2034
    %vm2036 = vweird.f32 %v2030
    %vm2037 = vweird.f32 %v2031
    %vm2038 = vmor %vm2036, %vm2037
    %v2039 = vsel %vm2038, %v2031, %v2035
    %v2040 = vand.u32 2147483647, %v2030
    %vm2041 = vcmp.eq.f32.partialorder %v2040, 8.507059e+37
    %v2042 = vand.u32 %v2030, 2147483648
    %v2043 = vor.u32 1.1754944e-38, %v2042
    %v2044 = vsel %vm2041, %v2043, %v2039
    %v2045 = vmul.f32 %v2027, %v2044
    %v2046 = vpack.c.bf16 %v2045, %v2045
    %v2048 = vsel %vm435, %v2046, 0
    %v2051 = vsel %vm464, %v2007, 0
    %2053 = vmatpush.bf16.msra.mxu0 0
    %2054 = vmatpush.bf16.msra.mxu0 0
    %2055 = vmatpush.bf16.msra.mxu0 0
    %2056 = vmatpush.bf16.msra.mxu0 0
    %2057 = vmatpush.bf16.msra.mxu0 0
    %2058 = vmatpush.bf16.msra.mxu0 0
    %2059 = vmatpush.bf16.msra.mxu0 0
    %2060 = vmatpush.bf16.msra.mxu0 %v2051
    %2061 = vmatmul.bf16.gmra.mxu0 %v2048
    %v2062 = vpop.f32.mrf.mxu0
    %v2063 = vadd.f32 0.0, %v2062
    %v2064 = vpop.f32.mrf.mxu0
    %2065 = vdwg.mxu0
    %v2067 = vunpack.c.h.b16 %v2003
    %v2068 = vpack.c.b16 %v2067, %v2067
    %v2071 = vunpack.c.h.b16 %v2005
    %v2072 = vpack.c.b16 %v2071, %v2071
    %2074 = vmatpush.bf16.xpose.msra.mxu0 0
    %2075 = vmatpush.bf16.xpose.msra.mxu0 0
    %2076 = vmatpush.bf16.xpose.msra.mxu0 0
    %2077 = vmatpush.bf16.xpose.msra.mxu0 0
    %2078 = vmatpush.bf16.xpose.msra.mxu0 0
    %2079 = vmatpush.bf16.xpose.msra.mxu0 0
    %2080 = vmatpush.bf16.xpose.msra.mxu0 0
    %2081 = vmatpush.bf16.xpose.msra.mxu0 %v2072
    %2082 = vmatmul.bf16.gmra.mxu0 %v2068
    %v2083 = vpop.f32.mrf.mxu0
    %v2084 = vadd.f32 %v38, %v2083
    %v2085 = vpop.f32.mrf.mxu0
    %2086 = vdwg.mxu0
    %v2087 = vsel %vm435, %v2084, -inf
    %2088 = vmax.xlane.f32.xlu0 %v2087
    %v2089 = vpop.xlane.xlu0 %2088
    %v2090 = vsub.f32 %v2084, %v2089
    %v2091 = vmul.f32 %v2090, 1.442695
    %v2092 = vpow.pop %v2091
    %v2093 = vsel %vm435, %v2092, 0.0
    %2094 = vadd.xlane.f32.xlu0 %v2093
    %v2095 = vpop.xlane.xlu0 %2094
    %v2096 = vrcp.pop %v2095
    %v2097 = vmul.f32 %v2095, %v2096
    %v2098 = vsub.f32 1.0, %v2097
    %v2099 = vmul.f32 %v2096, %v2098
    %v2100 = vadd.f32 %v2096, %v2099
    %vm2101 = vweird.f32 %v2095
    %vm2102 = vweird.f32 %v2096
    %vm2103 = vmor %vm2101, %vm2102
    %v2104 = vsel %vm2103, %v2096, %v2100
    %v2105 = vand.u32 2147483647, %v2095
    %vm2106 = vcmp.eq.f32.partialorder %v2105, 8.507059e+37
    %v2107 = vand.u32 %v2095, 2147483648
    %v2108 = vor.u32 1.1754944e-38, %v2107
    %v2109 = vsel %vm2106, %v2108, %v2104
    %v2110 = vmul.f32 %v2092, %v2109
    %v2111 = vpack.c.bf16 %v2110, %v2110
    %v2113 = vunpack.c.h.b16 %v2007
    %v2114 = vpack.c.b16 %v2113, %v2113
    %v2116 = vsel %vm435, %v2111, 0
    %v2119 = vsel %vm464, %v2114, 0
    %2121 = vmatpush.bf16.msra.mxu0 0
    %2122 = vmatpush.bf16.msra.mxu0 0
    %2123 = vmatpush.bf16.msra.mxu0 0
    %2124 = vmatpush.bf16.msra.mxu0 0
    %2125 = vmatpush.bf16.msra.mxu0 0
    %2126 = vmatpush.bf16.msra.mxu0 0
    %2127 = vmatpush.bf16.msra.mxu0 0
    %2128 = vmatpush.bf16.msra.mxu0 %v2119
    %2129 = vmatmul.bf16.gmra.mxu0 %v2116
    %v2130 = vpop.f32.mrf.mxu0
    %v2131 = vadd.f32 0.0, %v2130
    %v2132 = vpop.f32.mrf.mxu0
    %2133 = vdwg.mxu0
    %2134 = vmatpush.bf16.xpose.msra.mxu0 0
    %2135 = vmatpush.bf16.xpose.msra.mxu0 0
    %2136 = vmatpush.bf16.xpose.msra.mxu0 0
    %2137 = vmatpush.bf16.xpose.msra.mxu0 0
    %2138 = vmatpush.bf16.xpose.msra.mxu0 0
    %2139 = vmatpush.bf16.xpose.msra.mxu0 0
    %2140 = vmatpush.bf16.xpose.msra.mxu0 0
    %2141 = vmatpush.bf16.xpose.msra.mxu0 %v2006
    %2142 = vmatmul.bf16.gmra.mxu0 %v2004
    %v2143 = vpop.f32.mrf.mxu0
    %v2144 = vadd.f32 %v38, %v2143
    %v2145 = vpop.f32.mrf.mxu0
    %2146 = vdwg.mxu0
    %v2147 = vsel %vm435, %v2144, -inf
    %2148 = vmax.xlane.f32.xlu0 %v2147
    %v2149 = vpop.xlane.xlu0 %2148
    %v2150 = vsub.f32 %v2144, %v2149
    %v2151 = vmul.f32 %v2150, 1.442695
    %v2152 = vpow.pop %v2151
    %v2153 = vsel %vm435, %v2152, 0.0
    %2154 = vadd.xlane.f32.xlu0 %v2153
    %v2155 = vpop.xlane.xlu0 %2154
    %v2156 = vrcp.pop %v2155
    %v2157 = vmul.f32 %v2155, %v2156
    %v2158 = vsub.f32 1.0, %v2157
    %v2159 = vmul.f32 %v2156, %v2158
    %v2160 = vadd.f32 %v2156, %v2159
    %vm2161 = vweird.f32 %v2155
    %vm2162 = vweird.f32 %v2156
    %vm2163 = vmor %vm2161, %vm2162
    %v2164 = vsel %vm2163, %v2156, %v2160
    %v2165 = vand.u32 2147483647, %v2155
    %vm2166 = vcmp.eq.f32.partialorder %v2165, 8.507059e+37
    %v2167 = vand.u32 %v2155, 2147483648
    %v2168 = vor.u32 1.1754944e-38, %v2167
    %v2169 = vsel %vm2166, %v2168, %v2164
    %v2170 = vmul.f32 %v2152, %v2169
    %v2171 = vpack.c.bf16 %v2170, %v2170
    %v2173 = vsel %vm435, %v2171, 0
    %v2176 = vsel %vm464, %v2008, 0
    %2178 = vmatpush.bf16.msra.mxu0 0
    %2179 = vmatpush.bf16.msra.mxu0 0
    %2180 = vmatpush.bf16.msra.mxu0 0
    %2181 = vmatpush.bf16.msra.mxu0 0
    %2182 = vmatpush.bf16.msra.mxu0 0
    %2183 = vmatpush.bf16.msra.mxu0 0
    %2184 = vmatpush.bf16.msra.mxu0 0
    %2185 = vmatpush.bf16.msra.mxu0 %v2176
    %2186 = vmatmul.bf16.gmra.mxu0 %v2173
    %v2187 = vpop.f32.mrf.mxu0
    %v2188 = vadd.f32 0.0, %v2187
    %v2189 = vpop.f32.mrf.mxu0
    %2190 = vdwg.mxu0
    %2192 = vrot.lane.b32.xlu0 %v2110, 8
    %v2193 = vpop.permute.xlu0 %2192
    %2196 = vrot.lane.b32.xlu0 %v2170, 16
    %v2197 = vpop.permute.xlu0 %2196
    %v2199 = vsel %vm435, %v2045, %v2193
    %v2200 = vsel %vm615, %v2199, %v2197
    %v2201 = vpack.c.bf16 %v1741, %v1727
    %v2202 = vpack.c.bf16 %v1755, %v1755
    %v2203 = vpack.c.bf16 %v1864, %v1850
    %v2204 = vpack.c.bf16 %v1878, %v1878
    %v2205 = vpack.c.bf16 %v1987, %v1973
    %v2206 = vpack.c.bf16 %v2001, %v2001
    %2207 = vmatpush.bf16.xpose.msra.mxu0 0
    %2208 = vmatpush.bf16.xpose.msra.mxu0 0
    %2209 = vmatpush.bf16.xpose.msra.mxu0 0
    %2210 = vmatpush.bf16.xpose.msra.mxu0 0
    %2211 = vmatpush.bf16.xpose.msra.mxu0 0
    %2212 = vmatpush.bf16.xpose.msra.mxu0 0
    %2213 = vmatpush.bf16.xpose.msra.mxu0 0
    %2214 = vmatpush.bf16.xpose.msra.mxu0 %v2203
    %2215 = vmatmul.bf16.gmra.mxu0 %v2201
    %v2216 = vpop.f32.mrf.mxu0
    %v2217 = vadd.f32 %v43, %v2216
    %v2218 = vpop.f32.mrf.mxu0
    %2219 = vdwg.mxu0
    %v2220 = vsel %vm435, %v2217, -inf
    %2221 = vmax.xlane.f32.xlu0 %v2220
    %v2222 = vpop.xlane.xlu0 %2221
    %v2223 = vsub.f32 %v2217, %v2222
    %v2224 = vmul.f32 %v2223, 1.442695
    %v2225 = vpow.pop %v2224
    %v2226 = vsel %vm435, %v2225, 0.0
    %2227 = vadd.xlane.f32.xlu0 %v2226
    %v2228 = vpop.xlane.xlu0 %2227
    %v2229 = vrcp.pop %v2228
    %v2230 = vmul.f32 %v2228, %v2229
    %v2231 = vsub.f32 1.0, %v2230
    %v2232 = vmul.f32 %v2229, %v2231
    %v2233 = vadd.f32 %v2229, %v2232
    %vm2234 = vweird.f32 %v2228
    %vm2235 = vweird.f32 %v2229
    %vm2236 = vmor %vm2234, %vm2235
    %v2237 = vsel %vm2236, %v2229, %v2233
    %v2238 = vand.u32 2147483647, %v2228
    %vm2239 = vcmp.eq.f32.partialorder %v2238, 8.507059e+37
    %v2240 = vand.u32 %v2228, 2147483648
    %v2241 = vor.u32 1.1754944e-38, %v2240
    %v2242 = vsel %vm2239, %v2241, %v2237
    %v2243 = vmul.f32 %v2225, %v2242
    %v2244 = vpack.c.bf16 %v2243, %v2243
    %v2246 = vsel %vm435, %v2244, 0
    %v2249 = vsel %vm464, %v2205, 0
    %2251 = vmatpush.bf16.msra.mxu0 0
    %2252 = vmatpush.bf16.msra.mxu0 0
    %2253 = vmatpush.bf16.msra.mxu0 0
    %2254 = vmatpush.bf16.msra.mxu0 0
    %2255 = vmatpush.bf16.msra.mxu0 0
    %2256 = vmatpush.bf16.msra.mxu0 0
    %2257 = vmatpush.bf16.msra.mxu0 0
    %2258 = vmatpush.bf16.msra.mxu0 %v2249
    %2259 = vmatmul.bf16.gmra.mxu0 %v2246
    %v2260 = vpop.f32.mrf.mxu0
    %v2261 = vadd.f32 0.0, %v2260
    %v2262 = vpop.f32.mrf.mxu0
    %2263 = vdwg.mxu0
    %v2265 = vunpack.c.h.b16 %v2201
    %v2266 = vpack.c.b16 %v2265, %v2265
    %v2269 = vunpack.c.h.b16 %v2203
    %v2270 = vpack.c.b16 %v2269, %v2269
    %2272 = vmatpush.bf16.xpose.msra.mxu0 0
    %2273 = vmatpush.bf16.xpose.msra.mxu0 0
    %2274 = vmatpush.bf16.xpose.msra.mxu0 0
    %2275 = vmatpush.bf16.xpose.msra.mxu0 0
    %2276 = vmatpush.bf16.xpose.msra.mxu0 0
    %2277 = vmatpush.bf16.xpose.msra.mxu0 0
    %2278 = vmatpush.bf16.xpose.msra.mxu0 0
    %2279 = vmatpush.bf16.xpose.msra.mxu0 %v2270
    %2280 = vmatmul.bf16.gmra.mxu0 %v2266
    %v2281 = vpop.f32.mrf.mxu0
    %v2282 = vadd.f32 %v43, %v2281
    %v2283 = vpop.f32.mrf.mxu0
    %2284 = vdwg.mxu0
    %v2285 = vsel %vm435, %v2282, -inf
    %2286 = vmax.xlane.f32.xlu0 %v2285
    %v2287 = vpop.xlane.xlu0 %2286
    %v2288 = vsub.f32 %v2282, %v2287
    %v2289 = vmul.f32 %v2288, 1.442695
    %v2290 = vpow.pop %v2289
    %v2291 = vsel %vm435, %v2290, 0.0
    %2292 = vadd.xlane.f32.xlu0 %v2291
    %v2293 = vpop.xlane.xlu0 %2292
    %v2294 = vrcp.pop %v2293
    %v2295 = vmul.f32 %v2293, %v2294
    %v2296 = vsub.f32 1.0, %v2295
    %v2297 = vmul.f32 %v2294, %v2296
    %v2298 = vadd.f32 %v2294, %v2297
    %vm2299 = vweird.f32 %v2293
    %vm2300 = vweird.f32 %v2294
    %vm2301 = vmor %vm2299, %vm2300
    %v2302 = vsel %vm2301, %v2294, %v2298
    %v2303 = vand.u32 2147483647, %v2293
    %vm2304 = vcmp.eq.f32.partialorder %v2303, 8.507059e+37
    %v2305 = vand.u32 %v2293, 2147483648
    %v2306 = vor.u32 1.1754944e-38, %v2305
    %v2307 = vsel %vm2304, %v2306, %v2302
    %v2308 = vmul.f32 %v2290, %v2307
    %v2309 = vpack.c.bf16 %v2308, %v2308
    %v2311 = vunpack.c.h.b16 %v2205
    %v2312 = vpack.c.b16 %v2311, %v2311
    %v2314 = vsel %vm435, %v2309, 0
    %v2317 = vsel %vm464, %v2312, 0
    %2319 = vmatpush.bf16.msra.mxu0 0
    %2320 = vmatpush.bf16.msra.mxu0 0
    %2321 = vmatpush.bf16.msra.mxu0 0
    %2322 = vmatpush.bf16.msra.mxu0 0
    %2323 = vmatpush.bf16.msra.mxu0 0
    %2324 = vmatpush.bf16.msra.mxu0 0
    %2325 = vmatpush.bf16.msra.mxu0 0
    %2326 = vmatpush.bf16.msra.mxu0 %v2317
    %2327 = vmatmul.bf16.gmra.mxu0 %v2314
    %v2328 = vpop.f32.mrf.mxu0
    %v2329 = vadd.f32 0.0, %v2328
    %v2330 = vpop.f32.mrf.mxu0
    %2331 = vdwg.mxu0
    %2332 = vmatpush.bf16.xpose.msra.mxu0 0
    %2333 = vmatpush.bf16.xpose.msra.mxu0 0
    %2334 = vmatpush.bf16.xpose.msra.mxu0 0
    %2335 = vmatpush.bf16.xpose.msra.mxu0 0
    %2336 = vmatpush.bf16.xpose.msra.mxu0 0
    %2337 = vmatpush.bf16.xpose.msra.mxu0 0
    %2338 = vmatpush.bf16.xpose.msra.mxu0 0
    %2339 = vmatpush.bf16.xpose.msra.mxu0 %v2204
    %2340 = vmatmul.bf16.gmra.mxu0 %v2202
    %v2341 = vpop.f32.mrf.mxu0
    %v2342 = vadd.f32 %v43, %v2341
    %v2343 = vpop.f32.mrf.mxu0
    %2344 = vdwg.mxu0
    %v2345 = vsel %vm435, %v2342, -inf
    %2346 = vmax.xlane.f32.xlu0 %v2345
    %v2347 = vpop.xlane.xlu0 %2346
    %v2348 = vsub.f32 %v2342, %v2347
    %v2349 = vmul.f32 %v2348, 1.442695
    %v2350 = vpow.pop %v2349
    %v2351 = vsel %vm435, %v2350, 0.0
    %2352 = vadd.xlane.f32.xlu0 %v2351
    %v2353 = vpop.xlane.xlu0 %2352
    %v2354 = vrcp.pop %v2353
    %v2355 = vmul.f32 %v2353, %v2354
    %v2356 = vsub.f32 1.0, %v2355
    %v2357 = vmul.f32 %v2354, %v2356
    %v2358 = vadd.f32 %v2354, %v2357
    %vm2359 = vweird.f32 %v2353
    %vm2360 = vweird.f32 %v2354
    %vm2361 = vmor %vm2359, %vm2360
    %v2362 = vsel %vm2361, %v2354, %v2358
    %v2363 = vand.u32 2147483647, %v2353
    %vm2364 = vcmp.eq.f32.partialorder %v2363, 8.507059e+37
    %v2365 = vand.u32 %v2353, 2147483648
    %v2366 = vor.u32 1.1754944e-38, %v2365
    %v2367 = vsel %vm2364, %v2366, %v2362
    %v2368 = vmul.f32 %v2350, %v2367
    %v2369 = vpack.c.bf16 %v2368, %v2368
    %v2371 = vsel %vm435, %v2369, 0
    %v2374 = vsel %vm464, %v2206, 0
    %2376 = vmatpush.bf16.msra.mxu0 0
    %2377 = vmatpush.bf16.msra.mxu0 0
    %2378 = vmatpush.bf16.msra.mxu0 0
    %2379 = vmatpush.bf16.msra.mxu0 0
    %2380 = vmatpush.bf16.msra.mxu0 0
    %2381 = vmatpush.bf16.msra.mxu0 0
    %2382 = vmatpush.bf16.msra.mxu0 0
    %2383 = vmatpush.bf16.msra.mxu0 %v2374
    %2384 = vmatmul.bf16.gmra.mxu0 %v2371
    %v2385 = vpop.f32.mrf.mxu0
    %v2386 = vadd.f32 0.0, %v2385
    %v2387 = vpop.f32.mrf.mxu0
    %2388 = vdwg.mxu0
    %2390 = vrot.lane.b32.xlu0 %v2308, 8
    %v2391 = vpop.permute.xlu0 %2390
    %2394 = vrot.lane.b32.xlu0 %v2368, 16
    %v2395 = vpop.permute.xlu0 %2394
    %v2397 = vsel %vm435, %v2243, %v2391
    %v2398 = vsel %vm615, %v2397, %v2395
    %s2399 = scalar_lea.vmem [#allocation4], 16
    %2400 = vst.msk [vmem:[%s2399] sm:$0xff] %vm815, %v2200
    %2401 = vst.msk [vmem:[%s2399 + $0x8] sm:$0xff] %vm815, %v2398
    %v2402 = vpack.c.bf16 %v2261, %v2063
    %v2403 = vpack.c.bf16 %v2329, %v2131
    %v2404 = vpack.c.bf16 %v2386, %v2188
    %s2405 = scalar_lea.vmem %s5, 192
    %v2406 = vld [vmem:[%s2405] sm:$0xf]
    %v2407 = vld [vmem:[%s2405 + $0x4] sm:$0xf]
    %v2408 = vld [vmem:[%s2405 + $0x8] sm:$0xf]
    %v2409 = vld [vmem:[%s2405 + $0xc] sm:$0xf]
    %v2410 = vld [vmem:[%s2405 + $0x10] sm:$0xf]
    %v2411 = vld [vmem:[%s2405 + $0x14] sm:$0xf]
    %v2412 = vld [vmem:[%s2405 + $0x18] sm:$0xf]
    %v2413 = vld [vmem:[%s2405 + $0x1c] sm:$0xf]
    %v2414 = vld [vmem:[%s2405 + $0x20] sm:$0xf]
    %v2415 = vld [vmem:[%s2405 + $0x24] sm:$0xf]
    %v2416 = vld [vmem:[%s2405 + $0x28] sm:$0xf]
    %v2417 = vld [vmem:[%s2405 + $0x2c] sm:$0xf]
    %v2418 = vld [vmem:[%s2405 + $0x30] sm:$0xf]
    %v2419 = vld [vmem:[%s2405 + $0x34] sm:$0xf]
    %v2420 = vld [vmem:[%s2405 + $0x38] sm:$0xf]
    %v2421 = vld [vmem:[%s2405 + $0x3c] sm:$0xf]
    %v2422 = vld [vmem:[%s2405 + $0x40] sm:$0xf]
    %v2423 = vld [vmem:[%s2405 + $0x44] sm:$0xf]
    %v2424 = vld [vmem:[%s2405 + $0x48] sm:$0xf]
    %v2425 = vld [vmem:[%s2405 + $0x4c] sm:$0xf]
    %v2426 = vld [vmem:[%s2405 + $0x50] sm:$0xf]
    %v2427 = vld [vmem:[%s2405 + $0x54] sm:$0xf]
    %v2428 = vld [vmem:[%s2405 + $0x58] sm:$0xf]
    %v2429 = vld [vmem:[%s2405 + $0x5c] sm:$0xf]
    %v2430 = vld [vmem:[%s2405 + $0x60] sm:$0xf]
    %v2431 = vld [vmem:[%s2405 + $0x64] sm:$0xf]
    %v2432 = vld [vmem:[%s2405 + $0x68] sm:$0xf]
    %v2433 = vld [vmem:[%s2405 + $0x6c] sm:$0xf]
    %v2434 = vld [vmem:[%s2405 + $0x70] sm:$0xf]
    %v2435 = vld [vmem:[%s2405 + $0x74] sm:$0xf]
    %v2436 = vld [vmem:[%s2405 + $0x78] sm:$0xf]
    %v2437 = vld [vmem:[%s2405 + $0x7c] sm:$0xf]
    %v2438 = vld [vmem:[%s2405 + $0x80] sm:$0xf]
    %v2439 = vld [vmem:[%s2405 + $0x84] sm:$0xf]
    %v2440 = vld [vmem:[%s2405 + $0x88] sm:$0xf]
    %v2441 = vld [vmem:[%s2405 + $0x8c] sm:$0xf]
    %v2442 = vld [vmem:[%s2405 + $0x90] sm:$0xf]
    %v2443 = vld [vmem:[%s2405 + $0x94] sm:$0xf]
    %v2444 = vld [vmem:[%s2405 + $0x98] sm:$0xf]
    %v2445 = vld [vmem:[%s2405 + $0x9c] sm:$0xf]
    %v2446 = vld [vmem:[%s2405 + $0xa0] sm:$0xf]
    %v2447 = vld [vmem:[%s2405 + $0xa4] sm:$0xf]
    %v2448 = vld [vmem:[%s2405 + $0xa8] sm:$0xf]
    %v2449 = vld [vmem:[%s2405 + $0xac] sm:$0xf]
    %v2450 = vld [vmem:[%s2405 + $0xb0] sm:$0xf]
    %v2451 = vld [vmem:[%s2405 + $0xb4] sm:$0xf]
    %v2452 = vld [vmem:[%s2405 + $0xb8] sm:$0xf]
    %v2453 = vld [vmem:[%s2405 + $0xbc] sm:$0xf]
    %v2502 = vunpack.c.l.b16 %v2406
    %v2503 = vunpack.c.l.b16 %v2407
    %v2504 = vunpack.c.l.b16 %v2408
    %v2505 = vunpack.c.l.b16 %v2409
    %v2506 = vunpack.c.l.b16 %v2410
    %v2507 = vunpack.c.l.b16 %v2411
    %v2508 = vunpack.c.l.b16 %v2412
    %v2509 = vunpack.c.l.b16 %v2413
    %v2510 = vunpack.c.l.b16 %v2414
    %v2511 = vunpack.c.l.b16 %v2415
    %v2512 = vunpack.c.l.b16 %v2416
    %v2513 = vunpack.c.l.b16 %v2417
    %v2514 = vunpack.c.l.b16 %v2418
    %v2515 = vunpack.c.l.b16 %v2419
    %v2516 = vunpack.c.l.b16 %v2420
    %v2517 = vunpack.c.l.b16 %v2421
    %v2518 = vunpack.c.l.b16 %v2422
    %v2519 = vunpack.c.l.b16 %v2423
    %v2520 = vunpack.c.l.b16 %v2424
    %v2521 = vunpack.c.l.b16 %v2425
    %v2522 = vunpack.c.l.b16 %v2426
    %v2523 = vunpack.c.l.b16 %v2427
    %v2524 = vunpack.c.l.b16 %v2428
    %v2525 = vunpack.c.l.b16 %v2429
    %v2526 = vunpack.c.l.b16 %v2430
    %v2527 = vunpack.c.l.b16 %v2431
    %v2528 = vunpack.c.l.b16 %v2432
    %v2529 = vunpack.c.l.b16 %v2433
    %v2530 = vunpack.c.l.b16 %v2434
    %v2531 = vunpack.c.l.b16 %v2435
    %v2532 = vunpack.c.l.b16 %v2436
    %v2533 = vunpack.c.l.b16 %v2437
    %v2534 = vunpack.c.l.b16 %v2438
    %v2535 = vunpack.c.l.b16 %v2439
    %v2536 = vunpack.c.l.b16 %v2440
    %v2537 = vunpack.c.l.b16 %v2441
    %v2538 = vunpack.c.l.b16 %v2442
    %v2539 = vunpack.c.l.b16 %v2443
    %v2540 = vunpack.c.l.b16 %v2444
    %v2541 = vunpack.c.l.b16 %v2445
    %v2542 = vunpack.c.l.b16 %v2446
    %v2543 = vunpack.c.l.b16 %v2447
    %v2544 = vunpack.c.l.b16 %v2448
    %v2545 = vunpack.c.l.b16 %v2449
    %v2546 = vunpack.c.l.b16 %v2450
    %v2547 = vunpack.c.l.b16 %v2451
    %v2548 = vunpack.c.l.b16 %v2452
    %v2549 = vunpack.c.l.b16 %v2453
    %v2550 = vpack.c.b16 %v2503, %v2502
    %v2551 = vpack.c.b16 %v2505, %v2504
    %v2552 = vpack.c.b16 %v2507, %v2506
    %v2553 = vpack.c.b16 %v2509, %v2508
    %v2554 = vpack.c.b16 %v2511, %v2510
    %v2555 = vpack.c.b16 %v2513, %v2512
    %v2556 = vpack.c.b16 %v2515, %v2514
    %v2557 = vpack.c.b16 %v2517, %v2516
    %v2558 = vpack.c.b16 %v2519, %v2518
    %v2559 = vpack.c.b16 %v2521, %v2520
    %v2560 = vpack.c.b16 %v2523, %v2522
    %v2561 = vpack.c.b16 %v2525, %v2524
    %v2562 = vpack.c.b16 %v2527, %v2526
    %v2563 = vpack.c.b16 %v2529, %v2528
    %v2564 = vpack.c.b16 %v2531, %v2530
    %v2565 = vpack.c.b16 %v2533, %v2532
    %v2566 = vpack.c.b16 %v2535, %v2534
    %v2567 = vpack.c.b16 %v2537, %v2536
    %v2568 = vpack.c.b16 %v2539, %v2538
    %v2569 = vpack.c.b16 %v2541, %v2540
    %v2570 = vpack.c.b16 %v2543, %v2542
    %v2571 = vpack.c.b16 %v2545, %v2544
    %v2572 = vpack.c.b16 %v2547, %v2546
    %v2573 = vpack.c.b16 %v2549, %v2548
    %2598 = vmatpush.bf16.msra.mxu0 %v2557
    %2599 = vmatpush.bf16.msra.mxu0 %v2556
    %2600 = vmatpush.bf16.msra.mxu0 %v2555
    %2601 = vmatpush.bf16.msra.mxu0 %v2554
    %2602 = vmatpush.bf16.msra.mxu0 %v2553
    %2603 = vmatpush.bf16.msra.mxu0 %v2552
    %2604 = vmatpush.bf16.msra.mxu0 %v2551
    %2605 = vmatpush.bf16.msra.mxu0 %v2550
    %2606 = vmatmul.bf16.gmra.mxu0 %v2402
    %v2607 = vpop.f32.mrf.mxu0
    %v2608 = vadd.f32 %v1628, %v2607
    %v2609 = vpop.f32.mrf.mxu0
    %v2610 = vadd.f32 %v1629, %v2609
    %2611 = vdwg.mxu0
    %2612 = vmatpush.bf16.msra.mxu0 %v2565
    %2613 = vmatpush.bf16.msra.mxu0 %v2564
    %2614 = vmatpush.bf16.msra.mxu0 %v2563
    %2615 = vmatpush.bf16.msra.mxu0 %v2562
    %2616 = vmatpush.bf16.msra.mxu0 %v2561
    %2617 = vmatpush.bf16.msra.mxu0 %v2560
    %2618 = vmatpush.bf16.msra.mxu0 %v2559
    %2619 = vmatpush.bf16.msra.mxu0 %v2558
    %2620 = vmatmul.bf16.gmra.mxu0 %v2403
    %v2621 = vpop.f32.mrf.mxu0
    %v2622 = vadd.f32 %v2608, %v2621
    %v2623 = vpop.f32.mrf.mxu0
    %v2624 = vadd.f32 %v2610, %v2623
    %2625 = vdwg.mxu0
    %2626 = vmatpush.bf16.msra.mxu0 %v2573
    %2627 = vmatpush.bf16.msra.mxu0 %v2572
    %2628 = vmatpush.bf16.msra.mxu0 %v2571
    %2629 = vmatpush.bf16.msra.mxu0 %v2570
    %2630 = vmatpush.bf16.msra.mxu0 %v2569
    %2631 = vmatpush.bf16.msra.mxu0 %v2568
    %2632 = vmatpush.bf16.msra.mxu0 %v2567
    %2633 = vmatpush.bf16.msra.mxu0 %v2566
    %2634 = vmatmul.bf16.gmra.mxu0 %v2404
    %v2635 = vpop.f32.mrf.mxu0
    %v2636 = vadd.f32 %v2622, %v2635
    %v2637 = vpop.f32.mrf.mxu0
    %v2638 = vadd.f32 %v2624, %v2637
    %2639 = vdwg.mxu0
    %v2640 = vsel %vm126, %v2636, 0.0
    %2641 = vadd.xlane.f32.xlu0 %v2640
    %v2642 = vpop.xlane.xlu0 %2641
    %v2643 = vsel %vm126, %v2638, 0.0
    %2644 = vadd.xlane.f32.xlu0 %v2643
    %v2645 = vpop.xlane.xlu0 %2644
    %v2646 = vmul.f32 %v2642, %v1067
    %v2647 = vmul.f32 %v2645, %v1067
    %v2648 = vsub.f32 %v2636, %v2646
    %v2649 = vsub.f32 %v2638, %v2647
    %v2650 = vmul.f32 %v2648, %v2648
    %v2651 = vmul.f32 %v2649, %v2649
    %v2652 = vsel %vm126, %v2650, 0.0
    %2653 = vadd.xlane.f32.xlu0 %v2652
    %v2654 = vpop.xlane.xlu0 %2653
    %v2655 = vsel %vm126, %v2651, 0.0
    %2656 = vadd.xlane.f32.xlu0 %v2655
    %v2657 = vpop.xlane.xlu0 %2656
    %v2658 = vmul.f32 %v2654, %v1067
    %v2659 = vmul.f32 %v2657, %v1067
    %v2660 = vadd.f32 %v2658, 1e-05
    %v2661 = vadd.f32 %v2659, 1e-05
    %v2662 = vrsqrt.pop %v2660
    %v2663 = vmul.f32 %v2662, %v2660
    %v2664 = vmul.f32 %v2663, %v2662
    %v2665 = vmul.f32 0.5, %v2664
    %v2666 = vsub.f32 1.5, %v2665
    %v2667 = vmul.f32 %v2662, %v2666
    %vm2668 = vweird.f32 %v2660
    %vm2669 = vweird.f32 %v2662
    %vm2670 = vmor %vm2668, %vm2669
    %v2671 = vsel %vm2670, %v2662, %v2667
    %v2672 = vrsqrt.pop %v2661
    %v2673 = vmul.f32 %v2672, %v2661
    %v2674 = vmul.f32 %v2673, %v2672
    %v2675 = vmul.f32 0.5, %v2674
    %v2676 = vsub.f32 1.5, %v2675
    %v2677 = vmul.f32 %v2672, %v2676
    %vm2678 = vweird.f32 %v2661
    %vm2679 = vweird.f32 %v2672
    %vm2680 = vmor %vm2678, %vm2679
    %v2681 = vsel %vm2680, %v2672, %v2677
    %v2682 = vmul.f32 %v2648, %v2671
    %v2683 = vmul.f32 %v2649, %v2681
    %v2684 = vpack.c.bf16 %v2683, %v2682
    %s2685 = scalar_lea.vmem %s6, 128
    %v2686 = vld [vmem:[%s2685] sm:$0xff]
    %v2687 = vld [vmem:[%s2685 + $0x8] sm:$0xff]
    %v2688 = vld [vmem:[%s2685 + $0x10] sm:$0xff]
    %v2689 = vld [vmem:[%s2685 + $0x18] sm:$0xff]
    %v2690 = vld [vmem:[%s2685 + $0x20] sm:$0xff]
    %v2691 = vld [vmem:[%s2685 + $0x28] sm:$0xff]
    %v2692 = vld [vmem:[%s2685 + $0x30] sm:$0xff]
    %v2693 = vld [vmem:[%s2685 + $0x38] sm:$0xff]
    %v2694 = vld [vmem:[%s2685 + $0x40] sm:$0xff]
    %v2695 = vld [vmem:[%s2685 + $0x48] sm:$0xff]
    %v2696 = vld [vmem:[%s2685 + $0x50] sm:$0xff]
    %v2697 = vld [vmem:[%s2685 + $0x58] sm:$0xff]
    %v2698 = vld [vmem:[%s2685 + $0x60] sm:$0xff]
    %v2699 = vld [vmem:[%s2685 + $0x68] sm:$0xff]
    %v2700 = vld [vmem:[%s2685 + $0x70] sm:$0xff]
    %v2701 = vld [vmem:[%s2685 + $0x78] sm:$0xff]
    %v2718 = vunpack.c.l.b16 %v2686
    %v2719 = vunpack.c.h.b16 %v2686
    %v2720 = vunpack.c.l.b16 %v2687
    %v2721 = vunpack.c.h.b16 %v2687
    %v2722 = vunpack.c.l.b16 %v2688
    %v2723 = vunpack.c.h.b16 %v2688
    %v2724 = vunpack.c.l.b16 %v2689
    %v2725 = vunpack.c.h.b16 %v2689
    %v2726 = vunpack.c.l.b16 %v2690
    %v2727 = vunpack.c.h.b16 %v2690
    %v2728 = vunpack.c.l.b16 %v2691
    %v2729 = vunpack.c.h.b16 %v2691
    %v2730 = vunpack.c.l.b16 %v2692
    %v2731 = vunpack.c.h.b16 %v2692
    %v2732 = vunpack.c.l.b16 %v2693
    %v2733 = vunpack.c.h.b16 %v2693
    %v2734 = vunpack.c.l.b16 %v2694
    %v2735 = vunpack.c.h.b16 %v2694
    %v2736 = vunpack.c.l.b16 %v2695
    %v2737 = vunpack.c.h.b16 %v2695
    %v2738 = vunpack.c.l.b16 %v2696
    %v2739 = vunpack.c.h.b16 %v2696
    %v2740 = vunpack.c.l.b16 %v2697
    %v2741 = vunpack.c.h.b16 %v2697
    %v2742 = vunpack.c.l.b16 %v2698
    %v2743 = vunpack.c.h.b16 %v2698
    %v2744 = vunpack.c.l.b16 %v2699
    %v2745 = vunpack.c.h.b16 %v2699
    %v2746 = vunpack.c.l.b16 %v2700
    %v2747 = vunpack.c.h.b16 %v2700
    %v2748 = vunpack.c.l.b16 %v2701
    %v2749 = vunpack.c.h.b16 %v2701
    %v2750 = vpack.c.b16 %v2722, %v2718
    %v2751 = vpack.c.b16 %v2723, %v2719
    %v2752 = vpack.c.b16 %v2724, %v2720
    %v2753 = vpack.c.b16 %v2725, %v2721
    %v2754 = vpack.c.b16 %v2730, %v2726
    %v2755 = vpack.c.b16 %v2731, %v2727
    %v2756 = vpack.c.b16 %v2732, %v2728
    %v2757 = vpack.c.b16 %v2733, %v2729
    %v2758 = vpack.c.b16 %v2738, %v2734
    %v2759 = vpack.c.b16 %v2739, %v2735
    %v2760 = vpack.c.b16 %v2740, %v2736
    %v2761 = vpack.c.b16 %v2741, %v2737
    %v2762 = vpack.c.b16 %v2746, %v2742
    %v2763 = vpack.c.b16 %v2747, %v2743
    %v2764 = vpack.c.b16 %v2748, %v2744
    %v2765 = vpack.c.b16 %v2749, %v2745
    %v2783 = vsel %vm126, %v2684, 0
    %2785 = vmatpush.bf16.msra.mxu0 0
    %2786 = vmatpush.bf16.msra.mxu0 0
    %2787 = vmatpush.bf16.msra.mxu0 0
    %2788 = vmatpush.bf16.msra.mxu0 0
    %2789 = vmatpush.bf16.msra.mxu0 %v2762
    %2790 = vmatpush.bf16.msra.mxu0 %v2758
    %2791 = vmatpush.bf16.msra.mxu0 %v2754
    %2792 = vmatpush.bf16.msra.mxu0 %v2750
    %2793 = vmatmul.bf16.gmra.mxu0 %v2783
    %v2794 = vpop.f32.mrf.mxu0
    %v2795 = vadd.f32 0.0, %v2794
    %v2796 = vpop.f32.mrf.mxu0
    %v2797 = vadd.f32 0.0, %v2796
    %2798 = vdwg.mxu0
    %2799 = vmatpush.bf16.msra.mxu0 0
    %2800 = vmatpush.bf16.msra.mxu0 0
    %2801 = vmatpush.bf16.msra.mxu0 0
    %2802 = vmatpush.bf16.msra.mxu0 0
    %2803 = vmatpush.bf16.msra.mxu0 %v2763
    %2804 = vmatpush.bf16.msra.mxu0 %v2759
    %2805 = vmatpush.bf16.msra.mxu0 %v2755
    %2806 = vmatpush.bf16.msra.mxu0 %v2751
    %2807 = vmatmul.bf16.gmra.mxu0 %v2783
    %v2808 = vpop.f32.mrf.mxu0
    %v2809 = vadd.f32 0.0, %v2808
    %v2810 = vpop.f32.mrf.mxu0
    %v2811 = vadd.f32 0.0, %v2810
    %2812 = vdwg.mxu0
    %2813 = vmatpush.bf16.msra.mxu0 0
    %2814 = vmatpush.bf16.msra.mxu0 0
    %2815 = vmatpush.bf16.msra.mxu0 0
    %2816 = vmatpush.bf16.msra.mxu0 0
    %2817 = vmatpush.bf16.msra.mxu0 %v2764
    %2818 = vmatpush.bf16.msra.mxu0 %v2760
    %2819 = vmatpush.bf16.msra.mxu0 %v2756
    %2820 = vmatpush.bf16.msra.mxu0 %v2752
    %2821 = vmatmul.bf16.gmra.mxu0 %v2783
    %v2822 = vpop.f32.mrf.mxu0
    %v2823 = vadd.f32 0.0, %v2822
    %v2824 = vpop.f32.mrf.mxu0
    %v2825 = vadd.f32 0.0, %v2824
    %2826 = vdwg.mxu0
    %2827 = vmatpush.bf16.msra.mxu0 0
    %2828 = vmatpush.bf16.msra.mxu0 0
    %2829 = vmatpush.bf16.msra.mxu0 0
    %2830 = vmatpush.bf16.msra.mxu0 0
    %2831 = vmatpush.bf16.msra.mxu0 %v2765
    %2832 = vmatpush.bf16.msra.mxu0 %v2761
    %2833 = vmatpush.bf16.msra.mxu0 %v2757
    %2834 = vmatpush.bf16.msra.mxu0 %v2753
    %2835 = vmatmul.bf16.gmra.mxu0 %v2783
    %v2836 = vpop.f32.mrf.mxu0
    %v2837 = vadd.f32 0.0, %v2836
    %v2838 = vpop.f32.mrf.mxu0
    %v2839 = vadd.f32 0.0, %v2838
    %2840 = vdwg.mxu0
    %v2841 = vmax.f32 %v2795, 0.0
    %v2842 = vmax.f32 %v2809, 0.0
    %v2843 = vmax.f32 %v2823, 0.0
    %v2844 = vmax.f32 %v2837, 0.0
    %v2845 = vmax.f32 %v2797, 0.0
    %v2846 = vmax.f32 %v2811, 0.0
    %v2847 = vmax.f32 %v2825, 0.0
    %v2848 = vmax.f32 %v2839, 0.0
    %v2849 = vpack.c.bf16 %v2845, %v2841
    %v2850 = vpack.c.bf16 %v2846, %v2842
    %v2851 = vpack.c.bf16 %v2847, %v2843
    %v2852 = vpack.c.bf16 %v2848, %v2844
    %s2853 = scalar_lea.vmem %s7, 256
    %v2854 = vld [vmem:[%s2853] sm:$0xf]
    %v2855 = vld [vmem:[%s2853 + $0x4] sm:$0xf]
    %v2856 = vld [vmem:[%s2853 + $0x8] sm:$0xf]
    %v2857 = vld [vmem:[%s2853 + $0xc] sm:$0xf]
    %v2858 = vld [vmem:[%s2853 + $0x10] sm:$0xf]
    %v2859 = vld [vmem:[%s2853 + $0x14] sm:$0xf]
    %v2860 = vld [vmem:[%s2853 + $0x18] sm:$0xf]
    %v2861 = vld [vmem:[%s2853 + $0x1c] sm:$0xf]
    %v2862 = vld [vmem:[%s2853 + $0x20] sm:$0xf]
    %v2863 = vld [vmem:[%s2853 + $0x24] sm:$0xf]
    %v2864 = vld [vmem:[%s2853 + $0x28] sm:$0xf]
    %v2865 = vld [vmem:[%s2853 + $0x2c] sm:$0xf]
    %v2866 = vld [vmem:[%s2853 + $0x30] sm:$0xf]
    %v2867 = vld [vmem:[%s2853 + $0x34] sm:$0xf]
    %v2868 = vld [vmem:[%s2853 + $0x38] sm:$0xf]
    %v2869 = vld [vmem:[%s2853 + $0x3c] sm:$0xf]
    %v2870 = vld [vmem:[%s2853 + $0x40] sm:$0xf]
    %v2871 = vld [vmem:[%s2853 + $0x44] sm:$0xf]
    %v2872 = vld [vmem:[%s2853 + $0x48] sm:$0xf]
    %v2873 = vld [vmem:[%s2853 + $0x4c] sm:$0xf]
    %v2874 = vld [vmem:[%s2853 + $0x50] sm:$0xf]
    %v2875 = vld [vmem:[%s2853 + $0x54] sm:$0xf]
    %v2876 = vld [vmem:[%s2853 + $0x58] sm:$0xf]
    %v2877 = vld [vmem:[%s2853 + $0x5c] sm:$0xf]
    %v2878 = vld [vmem:[%s2853 + $0x60] sm:$0xf]
    %v2879 = vld [vmem:[%s2853 + $0x64] sm:$0xf]
    %v2880 = vld [vmem:[%s2853 + $0x68] sm:$0xf]
    %v2881 = vld [vmem:[%s2853 + $0x6c] sm:$0xf]
    %v2882 = vld [vmem:[%s2853 + $0x70] sm:$0xf]
    %v2883 = vld [vmem:[%s2853 + $0x74] sm:$0xf]
    %v2884 = vld [vmem:[%s2853 + $0x78] sm:$0xf]
    %v2885 = vld [vmem:[%s2853 + $0x7c] sm:$0xf]
    %v2886 = vld [vmem:[%s2853 + $0x80] sm:$0xf]
    %v2887 = vld [vmem:[%s2853 + $0x84] sm:$0xf]
    %v2888 = vld [vmem:[%s2853 + $0x88] sm:$0xf]
    %v2889 = vld [vmem:[%s2853 + $0x8c] sm:$0xf]
    %v2890 = vld [vmem:[%s2853 + $0x90] sm:$0xf]
    %v2891 = vld [vmem:[%s2853 + $0x94] sm:$0xf]
    %v2892 = vld [vmem:[%s2853 + $0x98] sm:$0xf]
    %v2893 = vld [vmem:[%s2853 + $0x9c] sm:$0xf]
    %v2894 = vld [vmem:[%s2853 + $0xa0] sm:$0xf]
    %v2895 = vld [vmem:[%s2853 + $0xa4] sm:$0xf]
    %v2896 = vld [vmem:[%s2853 + $0xa8] sm:$0xf]
    %v2897 = vld [vmem:[%s2853 + $0xac] sm:$0xf]
    %v2898 = vld [vmem:[%s2853 + $0xb0] sm:$0xf]
    %v2899 = vld [vmem:[%s2853 + $0xb4] sm:$0xf]
    %v2900 = vld [vmem:[%s2853 + $0xb8] sm:$0xf]
    %v2901 = vld [vmem:[%s2853 + $0xbc] sm:$0xf]
    %v2902 = vld [vmem:[%s2853 + $0xc0] sm:$0xf]
    %v2903 = vld [vmem:[%s2853 + $0xc4] sm:$0xf]
    %v2904 = vld [vmem:[%s2853 + $0xc8] sm:$0xf]
    %v2905 = vld [vmem:[%s2853 + $0xcc] sm:$0xf]
    %v2906 = vld [vmem:[%s2853 + $0xd0] sm:$0xf]
    %v2907 = vld [vmem:[%s2853 + $0xd4] sm:$0xf]
    %v2908 = vld [vmem:[%s2853 + $0xd8] sm:$0xf]
    %v2909 = vld [vmem:[%s2853 + $0xdc] sm:$0xf]
    %v2910 = vld [vmem:[%s2853 + $0xe0] sm:$0xf]
    %v2911 = vld [vmem:[%s2853 + $0xe4] sm:$0xf]
    %v2912 = vld [vmem:[%s2853 + $0xe8] sm:$0xf]
    %v2913 = vld [vmem:[%s2853 + $0xec] sm:$0xf]
    %v2914 = vld [vmem:[%s2853 + $0xf0] sm:$0xf]
    %v2915 = vld [vmem:[%s2853 + $0xf4] sm:$0xf]
    %v2916 = vld [vmem:[%s2853 + $0xf8] sm:$0xf]
    %v2917 = vld [vmem:[%s2853 + $0xfc] sm:$0xf]
    %v2982 = vunpack.c.l.b16 %v2854
    %v2983 = vunpack.c.l.b16 %v2855
    %v2984 = vunpack.c.l.b16 %v2856
    %v2985 = vunpack.c.l.b16 %v2857
    %v2986 = vunpack.c.l.b16 %v2858
    %v2987 = vunpack.c.l.b16 %v2859
    %v2988 = vunpack.c.l.b16 %v2860
    %v2989 = vunpack.c.l.b16 %v2861
    %v2990 = vunpack.c.l.b16 %v2862
    %v2991 = vunpack.c.l.b16 %v2863
    %v2992 = vunpack.c.l.b16 %v2864
    %v2993 = vunpack.c.l.b16 %v2865
    %v2994 = vunpack.c.l.b16 %v2866
    %v2995 = vunpack.c.l.b16 %v2867
    %v2996 = vunpack.c.l.b16 %v2868
    %v2997 = vunpack.c.l.b16 %v2869
    %v2998 = vunpack.c.l.b16 %v2870
    %v2999 = vunpack.c.l.b16 %v2871
    %v3000 = vunpack.c.l.b16 %v2872
    %v3001 = vunpack.c.l.b16 %v2873
    %v3002 = vunpack.c.l.b16 %v2874
    %v3003 = vunpack.c.l.b16 %v2875
    %v3004 = vunpack.c.l.b16 %v2876
    %v3005 = vunpack.c.l.b16 %v2877
    %v3006 = vunpack.c.l.b16 %v2878
    %v3007 = vunpack.c.l.b16 %v2879
    %v3008 = vunpack.c.l.b16 %v2880
    %v3009 = vunpack.c.l.b16 %v2881
    %v3010 = vunpack.c.l.b16 %v2882
    %v3011 = vunpack.c.l.b16 %v2883
    %v3012 = vunpack.c.l.b16 %v2884
    %v3013 = vunpack.c.l.b16 %v2885
    %v3014 = vunpack.c.l.b16 %v2886
    %v3015 = vunpack.c.l.b16 %v2887
    %v3016 = vunpack.c.l.b16 %v2888
    %v3017 = vunpack.c.l.b16 %v2889
    %v3018 = vunpack.c.l.b16 %v2890
    %v3019 = vunpack.c.l.b16 %v2891
    %v3020 = vunpack.c.l.b16 %v2892
    %v3021 = vunpack.c.l.b16 %v2893
    %v3022 = vunpack.c.l.b16 %v2894
    %v3023 = vunpack.c.l.b16 %v2895
    %v3024 = vunpack.c.l.b16 %v2896
    %v3025 = vunpack.c.l.b16 %v2897
    %v3026 = vunpack.c.l.b16 %v2898
    %v3027 = vunpack.c.l.b16 %v2899
    %v3028 = vunpack.c.l.b16 %v2900
    %v3029 = vunpack.c.l.b16 %v2901
    %v3030 = vunpack.c.l.b16 %v2902
    %v3031 = vunpack.c.l.b16 %v2903
    %v3032 = vunpack.c.l.b16 %v2904
    %v3033 = vunpack.c.l.b16 %v2905
    %v3034 = vunpack.c.l.b16 %v2906
    %v3035 = vunpack.c.l.b16 %v2907
    %v3036 = vunpack.c.l.b16 %v2908
    %v3037 = vunpack.c.l.b16 %v2909
    %v3038 = vunpack.c.l.b16 %v2910
    %v3039 = vunpack.c.l.b16 %v2911
    %v3040 = vunpack.c.l.b16 %v2912
    %v3041 = vunpack.c.l.b16 %v2913
    %v3042 = vunpack.c.l.b16 %v2914
    %v3043 = vunpack.c.l.b16 %v2915
    %v3044 = vunpack.c.l.b16 %v2916
    %v3045 = vunpack.c.l.b16 %v2917
    %v3046 = vpack.c.b16 %v2983, %v2982
    %v3047 = vpack.c.b16 %v2985, %v2984
    %v3048 = vpack.c.b16 %v2987, %v2986
    %v3049 = vpack.c.b16 %v2989, %v2988
    %v3050 = vpack.c.b16 %v2991, %v2990
    %v3051 = vpack.c.b16 %v2993, %v2992
    %v3052 = vpack.c.b16 %v2995, %v2994
    %v3053 = vpack.c.b16 %v2997, %v2996
    %v3054 = vpack.c.b16 %v2999, %v2998
    %v3055 = vpack.c.b16 %v3001, %v3000
    %v3056 = vpack.c.b16 %v3003, %v3002
    %v3057 = vpack.c.b16 %v3005, %v3004
    %v3058 = vpack.c.b16 %v3007, %v3006
    %v3059 = vpack.c.b16 %v3009, %v3008
    %v3060 = vpack.c.b16 %v3011, %v3010
    %v3061 = vpack.c.b16 %v3013, %v3012
    %v3062 = vpack.c.b16 %v3015, %v3014
    %v3063 = vpack.c.b16 %v3017, %v3016
    %v3064 = vpack.c.b16 %v3019, %v3018
    %v3065 = vpack.c.b16 %v3021, %v3020
    %v3066 = vpack.c.b16 %v3023, %v3022
    %v3067 = vpack.c.b16 %v3025, %v3024
    %v3068 = vpack.c.b16 %v3027, %v3026
    %v3069 = vpack.c.b16 %v3029, %v3028
    %v3070 = vpack.c.b16 %v3031, %v3030
    %v3071 = vpack.c.b16 %v3033, %v3032
    %v3072 = vpack.c.b16 %v3035, %v3034
    %v3073 = vpack.c.b16 %v3037, %v3036
    %v3074 = vpack.c.b16 %v3039, %v3038
    %v3075 = vpack.c.b16 %v3041, %v3040
    %v3076 = vpack.c.b16 %v3043, %v3042
    %v3077 = vpack.c.b16 %v3045, %v3044
    %3110 = vmatpush.bf16.msra.mxu0 %v3053
    %3111 = vmatpush.bf16.msra.mxu0 %v3052
    %3112 = vmatpush.bf16.msra.mxu0 %v3051
    %3113 = vmatpush.bf16.msra.mxu0 %v3050
    %3114 = vmatpush.bf16.msra.mxu0 %v3049
    %3115 = vmatpush.bf16.msra.mxu0 %v3048
    %3116 = vmatpush.bf16.msra.mxu0 %v3047
    %3117 = vmatpush.bf16.msra.mxu0 %v3046
    %3118 = vmatmul.bf16.gmra.mxu0 %v2849
    %v3119 = vpop.f32.mrf.mxu0
    %v3120 = vadd.f32 %v2682, %v3119
    %v3121 = vpop.f32.mrf.mxu0
    %v3122 = vadd.f32 %v2683, %v3121
    %3123 = vdwg.mxu0
    %3124 = vmatpush.bf16.msra.mxu0 %v3061
    %3125 = vmatpush.bf16.msra.mxu0 %v3060
    %3126 = vmatpush.bf16.msra.mxu0 %v3059
    %3127 = vmatpush.bf16.msra.mxu0 %v3058
    %3128 = vmatpush.bf16.msra.mxu0 %v3057
    %3129 = vmatpush.bf16.msra.mxu0 %v3056
    %3130 = vmatpush.bf16.msra.mxu0 %v3055
    %3131 = vmatpush.bf16.msra.mxu0 %v3054
    %3132 = vmatmul.bf16.gmra.mxu0 %v2850
    %v3133 = vpop.f32.mrf.mxu0
    %v3134 = vadd.f32 %v3120, %v3133
    %v3135 = vpop.f32.mrf.mxu0
    %v3136 = vadd.f32 %v3122, %v3135
    %3137 = vdwg.mxu0
    %3138 = vmatpush.bf16.msra.mxu0 %v3069
    %3139 = vmatpush.bf16.msra.mxu0 %v3068
    %3140 = vmatpush.bf16.msra.mxu0 %v3067
    %3141 = vmatpush.bf16.msra.mxu0 %v3066
    %3142 = vmatpush.bf16.msra.mxu0 %v3065
    %3143 = vmatpush.bf16.msra.mxu0 %v3064
    %3144 = vmatpush.bf16.msra.mxu0 %v3063
    %3145 = vmatpush.bf16.msra.mxu0 %v3062
    %3146 = vmatmul.bf16.gmra.mxu0 %v2851
    %v3147 = vpop.f32.mrf.mxu0
    %v3148 = vadd.f32 %v3134, %v3147
    %v3149 = vpop.f32.mrf.mxu0
    %v3150 = vadd.f32 %v3136, %v3149
    %3151 = vdwg.mxu0
    %3152 = vmatpush.bf16.msra.mxu0 %v3077
    %3153 = vmatpush.bf16.msra.mxu0 %v3076
    %3154 = vmatpush.bf16.msra.mxu0 %v3075
    %3155 = vmatpush.bf16.msra.mxu0 %v3074
    %3156 = vmatpush.bf16.msra.mxu0 %v3073
    %3157 = vmatpush.bf16.msra.mxu0 %v3072
    %3158 = vmatpush.bf16.msra.mxu0 %v3071
    %3159 = vmatpush.bf16.msra.mxu0 %v3070
    %3160 = vmatmul.bf16.gmra.mxu0 %v2852
    %v3161 = vpop.f32.mrf.mxu0
    %v3162 = vadd.f32 %v3148, %v3161
    %v3163 = vpop.f32.mrf.mxu0
    %v3164 = vadd.f32 %v3150, %v3163
    %3165 = vdwg.mxu0
    %v3166 = vsel %vm126, %v3162, 0.0
    %3167 = vadd.xlane.f32.xlu0 %v3166
    %v3168 = vpop.xlane.xlu0 %3167
    %v3169 = vsel %vm126, %v3164, 0.0
    %3170 = vadd.xlane.f32.xlu0 %v3169
    %v3171 = vpop.xlane.xlu0 %3170
    %v3172 = vmul.f32 %v3168, %v1067
    %v3173 = vmul.f32 %v3171, %v1067
    %v3174 = vsub.f32 %v3162, %v3172
    %v3175 = vsub.f32 %v3164, %v3173
    %v3176 = vmul.f32 %v3174, %v3174
    %v3177 = vmul.f32 %v3175, %v3175
    %v3178 = vsel %vm126, %v3176, 0.0
    %3179 = vadd.xlane.f32.xlu0 %v3178
    %v3180 = vpop.xlane.xlu0 %3179
    %v3181 = vsel %vm126, %v3177, 0.0
    %3182 = vadd.xlane.f32.xlu0 %v3181
    %v3183 = vpop.xlane.xlu0 %3182
    %v3184 = vmul.f32 %v3180, %v1067
    %v3185 = vmul.f32 %v3183, %v1067
    %v3186 = vadd.f32 %v3184, 1e-05
    %v3187 = vadd.f32 %v3185, 1e-05
    %v3188 = vrsqrt.pop %v3186
    %v3189 = vmul.f32 %v3188, %v3186
    %v3190 = vmul.f32 %v3189, %v3188
    %v3191 = vmul.f32 0.5, %v3190
    %v3192 = vsub.f32 1.5, %v3191
    %v3193 = vmul.f32 %v3188, %v3192
    %vm3194 = vweird.f32 %v3186
    %vm3195 = vweird.f32 %v3188
    %vm3196 = vmor %vm3194, %vm3195
    %v3197 = vsel %vm3196, %v3188, %v3193
    %v3198 = vrsqrt.pop %v3187
    %v3199 = vmul.f32 %v3198, %v3187
    %v3200 = vmul.f32 %v3199, %v3198
    %v3201 = vmul.f32 0.5, %v3200
    %v3202 = vsub.f32 1.5, %v3201
    %v3203 = vmul.f32 %v3198, %v3202
    %vm3204 = vweird.f32 %v3187
    %vm3205 = vweird.f32 %v3198
    %vm3206 = vmor %vm3204, %vm3205
    %v3207 = vsel %vm3206, %v3198, %v3203
    %v3208 = vmul.f32 %v3174, %v3197
    %v3209 = vmul.f32 %v3175, %v3207
    %v3210 = vpack.c.bf16 %v3209, %v3208
    %s3211 = scalar_lea.vmem %s2, 192
    %v3212 = vld [vmem:[%s3211] sm:$0xff]
    %v3213 = vld [vmem:[%s3211 + $0x8] sm:$0xf]
    %v3214 = vld [vmem:[%s3211 + $0xc] sm:$0xff]
    %v3215 = vld [vmem:[%s3211 + $0x14] sm:$0xf]
    %v3216 = vld [vmem:[%s3211 + $0x18] sm:$0xff]
    %v3217 = vld [vmem:[%s3211 + $0x20] sm:$0xf]
    %v3218 = vld [vmem:[%s3211 + $0x24] sm:$0xff]
    %v3219 = vld [vmem:[%s3211 + $0x2c] sm:$0xf]
    %v3220 = vld [vmem:[%s3211 + $0x30] sm:$0xff]
    %v3221 = vld [vmem:[%s3211 + $0x38] sm:$0xf]
    %v3222 = vld [vmem:[%s3211 + $0x3c] sm:$0xff]
    %v3223 = vld [vmem:[%s3211 + $0x44] sm:$0xf]
    %v3224 = vld [vmem:[%s3211 + $0x48] sm:$0xff]
    %v3225 = vld [vmem:[%s3211 + $0x50] sm:$0xf]
    %v3226 = vld [vmem:[%s3211 + $0x54] sm:$0xff]
    %v3227 = vld [vmem:[%s3211 + $0x5c] sm:$0xf]
    %v3244 = vunpack.c.l.b16 %v3212
    %v3245 = vunpack.c.h.b16 %v3212
    %v3246 = vunpack.c.l.b16 %v3213
    %v3247 = vunpack.c.l.b16 %v3214
    %v3248 = vunpack.c.h.b16 %v3214
    %v3249 = vunpack.c.l.b16 %v3215
    %v3250 = vunpack.c.l.b16 %v3216
    %v3251 = vunpack.c.h.b16 %v3216
    %v3252 = vunpack.c.l.b16 %v3217
    %v3253 = vunpack.c.l.b16 %v3218
    %v3254 = vunpack.c.h.b16 %v3218
    %v3255 = vunpack.c.l.b16 %v3219
    %v3256 = vunpack.c.l.b16 %v3220
    %v3257 = vunpack.c.h.b16 %v3220
    %v3258 = vunpack.c.l.b16 %v3221
    %v3259 = vunpack.c.l.b16 %v3222
    %v3260 = vunpack.c.h.b16 %v3222
    %v3261 = vunpack.c.l.b16 %v3223
    %v3262 = vunpack.c.l.b16 %v3224
    %v3263 = vunpack.c.h.b16 %v3224
    %v3264 = vunpack.c.l.b16 %v3225
    %v3265 = vunpack.c.l.b16 %v3226
    %v3266 = vunpack.c.h.b16 %v3226
    %v3267 = vunpack.c.l.b16 %v3227
    %v3268 = vpack.c.b16 %v3247, %v3244
    %v3269 = vpack.c.b16 %v3248, %v3245
    %v3270 = vpack.c.b16 %v3249, %v3246
    %v3271 = vpack.c.b16 %v3253, %v3250
    %v3272 = vpack.c.b16 %v3254, %v3251
    %v3273 = vpack.c.b16 %v3255, %v3252
    %v3274 = vpack.c.b16 %v3259, %v3256
    %v3275 = vpack.c.b16 %v3260, %v3257
    %v3276 = vpack.c.b16 %v3261, %v3258
    %v3277 = vpack.c.b16 %v3265, %v3262
    %v3278 = vpack.c.b16 %v3266, %v3263
    %v3279 = vpack.c.b16 %v3267, %v3264
    %v3293 = vsel %vm126, %v3210, 0
    %3295 = vmatpush.bf16.msra.mxu0 0
    %3296 = vmatpush.bf16.msra.mxu0 0
    %3297 = vmatpush.bf16.msra.mxu0 0
    %3298 = vmatpush.bf16.msra.mxu0 0
    %3299 = vmatpush.bf16.msra.mxu0 %v3277
    %3300 = vmatpush.bf16.msra.mxu0 %v3274
    %3301 = vmatpush.bf16.msra.mxu0 %v3271
    %3302 = vmatpush.bf16.msra.mxu0 %v3268
    %3303 = vmatmul.bf16.gmra.mxu0 %v3293
    %v3304 = vpop.f32.mrf.mxu0
    %v3305 = vadd.f32 0.0, %v3304
    %v3306 = vpop.f32.mrf.mxu0
    %v3307 = vadd.f32 0.0, %v3306
    %3308 = vdwg.mxu0
    %3309 = vmatpush.bf16.msra.mxu0 0
    %3310 = vmatpush.bf16.msra.mxu0 0
    %3311 = vmatpush.bf16.msra.mxu0 0
    %3312 = vmatpush.bf16.msra.mxu0 0
    %3313 = vmatpush.bf16.msra.mxu0 %v3278
    %3314 = vmatpush.bf16.msra.mxu0 %v3275
    %3315 = vmatpush.bf16.msra.mxu0 %v3272
    %3316 = vmatpush.bf16.msra.mxu0 %v3269
    %3317 = vmatmul.bf16.gmra.mxu0 %v3293
    %v3318 = vpop.f32.mrf.mxu0
    %v3319 = vadd.f32 0.0, %v3318
    %v3320 = vpop.f32.mrf.mxu0
    %v3321 = vadd.f32 0.0, %v3320
    %3322 = vdwg.mxu0
    %3323 = vmatpush.bf16.msra.mxu0 0
    %3324 = vmatpush.bf16.msra.mxu0 0
    %3325 = vmatpush.bf16.msra.mxu0 0
    %3326 = vmatpush.bf16.msra.mxu0 0
    %3327 = vmatpush.bf16.msra.mxu0 %v3279
    %3328 = vmatpush.bf16.msra.mxu0 %v3276
    %3329 = vmatpush.bf16.msra.mxu0 %v3273
    %3330 = vmatpush.bf16.msra.mxu0 %v3270
    %3331 = vmatmul.bf16.gmra.mxu0 %v3293
    %v3332 = vpop.f32.mrf.mxu0
    %v3333 = vadd.f32 0.0, %v3332
    %v3334 = vpop.f32.mrf.mxu0
    %v3335 = vadd.f32 0.0, %v3334
    %3336 = vdwg.mxu0
    %s3337 = scalar_lea.vmem %s3, 192
    %v3338 = vld [vmem:[%s3337] sm:$0xff]
    %v3339 = vld [vmem:[%s3337 + $0x8] sm:$0xf]
    %v3340 = vld [vmem:[%s3337 + $0xc] sm:$0xff]
    %v3341 = vld [vmem:[%s3337 + $0x14] sm:$0xf]
    %v3342 = vld [vmem:[%s3337 + $0x18] sm:$0xff]
    %v3343 = vld [vmem:[%s3337 + $0x20] sm:$0xf]
    %v3344 = vld [vmem:[%s3337 + $0x24] sm:$0xff]
    %v3345 = vld [vmem:[%s3337 + $0x2c] sm:$0xf]
    %v3346 = vld [vmem:[%s3337 + $0x30] sm:$0xff]
    %v3347 = vld [vmem:[%s3337 + $0x38] sm:$0xf]
    %v3348 = vld [vmem:[%s3337 + $0x3c] sm:$0xff]
    %v3349 = vld [vmem:[%s3337 + $0x44] sm:$0xf]
    %v3350 = vld [vmem:[%s3337 + $0x48] sm:$0xff]
    %v3351 = vld [vmem:[%s3337 + $0x50] sm:$0xf]
    %v3352 = vld [vmem:[%s3337 + $0x54] sm:$0xff]
    %v3353 = vld [vmem:[%s3337 + $0x5c] sm:$0xf]
    %v3370 = vunpack.c.l.b16 %v3338
    %v3371 = vunpack.c.h.b16 %v3338
    %v3372 = vunpack.c.l.b16 %v3339
    %v3373 = vunpack.c.l.b16 %v3340
    %v3374 = vunpack.c.h.b16 %v3340
    %v3375 = vunpack.c.l.b16 %v3341
    %v3376 = vunpack.c.l.b16 %v3342
    %v3377 = vunpack.c.h.b16 %v3342
    %v3378 = vunpack.c.l.b16 %v3343
    %v3379 = vunpack.c.l.b16 %v3344
    %v3380 = vunpack.c.h.b16 %v3344
    %v3381 = vunpack.c.l.b16 %v3345
    %v3382 = vunpack.c.l.b16 %v3346
    %v3383 = vunpack.c.h.b16 %v3346
    %v3384 = vunpack.c.l.b16 %v3347
    %v3385 = vunpack.c.l.b16 %v3348
    %v3386 = vunpack.c.h.b16 %v3348
    %v3387 = vunpack.c.l.b16 %v3349
    %v3388 = vunpack.c.l.b16 %v3350
    %v3389 = vunpack.c.h.b16 %v3350
    %v3390 = vunpack.c.l.b16 %v3351
    %v3391 = vunpack.c.l.b16 %v3352
    %v3392 = vunpack.c.h.b16 %v3352
    %v3393 = vunpack.c.l.b16 %v3353
    %v3394 = vpack.c.b16 %v3373, %v3370
    %v3395 = vpack.c.b16 %v3374, %v3371
    %v3396 = vpack.c.b16 %v3375, %v3372
    %v3397 = vpack.c.b16 %v3379, %v3376
    %v3398 = vpack.c.b16 %v3380, %v3377
    %v3399 = vpack.c.b16 %v3381, %v3378
    %v3400 = vpack.c.b16 %v3385, %v3382
    %v3401 = vpack.c.b16 %v3386, %v3383
    %v3402 = vpack.c.b16 %v3387, %v3384
    %v3403 = vpack.c.b16 %v3391, %v3388
    %v3404 = vpack.c.b16 %v3392, %v3389
    %v3405 = vpack.c.b16 %v3393, %v3390
    %3418 = vmatpush.bf16.msra.mxu0 0
    %3419 = vmatpush.bf16.msra.mxu0 0
    %3420 = vmatpush.bf16.msra.mxu0 0
    %3421 = vmatpush.bf16.msra.mxu0 0
    %3422 = vmatpush.bf16.msra.mxu0 %v3403
    %3423 = vmatpush.bf16.msra.mxu0 %v3400
    %3424 = vmatpush.bf16.msra.mxu0 %v3397
    %3425 = vmatpush.bf16.msra.mxu0 %v3394
    %3426 = vmatmul.bf16.gmra.mxu0 %v3293
    %v3427 = vpop.f32.mrf.mxu0
    %v3428 = vadd.f32 0.0, %v3427
    %v3429 = vpop.f32.mrf.mxu0
    %v3430 = vadd.f32 0.0, %v3429
    %3431 = vdwg.mxu0
    %3432 = vmatpush.bf16.msra.mxu0 0
    %3433 = vmatpush.bf16.msra.mxu0 0
    %3434 = vmatpush.bf16.msra.mxu0 0
    %3435 = vmatpush.bf16.msra.mxu0 0
    %3436 = vmatpush.bf16.msra.mxu0 %v3404
    %3437 = vmatpush.bf16.msra.mxu0 %v3401
    %3438 = vmatpush.bf16.msra.mxu0 %v3398
    %3439 = vmatpush.bf16.msra.mxu0 %v3395
    %3440 = vmatmul.bf16.gmra.mxu0 %v3293
    %v3441 = vpop.f32.mrf.mxu0
    %v3442 = vadd.f32 0.0, %v3441
    %v3443 = vpop.f32.mrf.mxu0
    %v3444 = vadd.f32 0.0, %v3443
    %3445 = vdwg.mxu0
    %3446 = vmatpush.bf16.msra.mxu0 0
    %3447 = vmatpush.bf16.msra.mxu0 0
    %3448 = vmatpush.bf16.msra.mxu0 0
    %3449 = vmatpush.bf16.msra.mxu0 0
    %3450 = vmatpush.bf16.msra.mxu0 %v3405
    %3451 = vmatpush.bf16.msra.mxu0 %v3402
    %3452 = vmatpush.bf16.msra.mxu0 %v3399
    %3453 = vmatpush.bf16.msra.mxu0 %v3396
    %3454 = vmatmul.bf16.gmra.mxu0 %v3293
    %v3455 = vpop.f32.mrf.mxu0
    %v3456 = vadd.f32 0.0, %v3455
    %v3457 = vpop.f32.mrf.mxu0
    %v3458 = vadd.f32 0.0, %v3457
    %3459 = vdwg.mxu0
    %s3460 = scalar_lea.vmem %s4, 192
    %v3461 = vld [vmem:[%s3460] sm:$0xff]
    %v3462 = vld [vmem:[%s3460 + $0x8] sm:$0xf]
    %v3463 = vld [vmem:[%s3460 + $0xc] sm:$0xff]
    %v3464 = vld [vmem:[%s3460 + $0x14] sm:$0xf]
    %v3465 = vld [vmem:[%s3460 + $0x18] sm:$0xff]
    %v3466 = vld [vmem:[%s3460 + $0x20] sm:$0xf]
    %v3467 = vld [vmem:[%s3460 + $0x24] sm:$0xff]
    %v3468 = vld [vmem:[%s3460 + $0x2c] sm:$0xf]
    %v3469 = vld [vmem:[%s3460 + $0x30] sm:$0xff]
    %v3470 = vld [vmem:[%s3460 + $0x38] sm:$0xf]
    %v3471 = vld [vmem:[%s3460 + $0x3c] sm:$0xff]
    %v3472 = vld [vmem:[%s3460 + $0x44] sm:$0xf]
    %v3473 = vld [vmem:[%s3460 + $0x48] sm:$0xff]
    %v3474 = vld [vmem:[%s3460 + $0x50] sm:$0xf]
    %v3475 = vld [vmem:[%s3460 + $0x54] sm:$0xff]
    %v3476 = vld [vmem:[%s3460 + $0x5c] sm:$0xf]
    %v3493 = vunpack.c.l.b16 %v3461
    %v3494 = vunpack.c.h.b16 %v3461
    %v3495 = vunpack.c.l.b16 %v3462
    %v3496 = vunpack.c.l.b16 %v3463
    %v3497 = vunpack.c.h.b16 %v3463
    %v3498 = vunpack.c.l.b16 %v3464
    %v3499 = vunpack.c.l.b16 %v3465
    %v3500 = vunpack.c.h.b16 %v3465
    %v3501 = vunpack.c.l.b16 %v3466
    %v3502 = vunpack.c.l.b16 %v3467
    %v3503 = vunpack.c.h.b16 %v3467
    %v3504 = vunpack.c.l.b16 %v3468
    %v3505 = vunpack.c.l.b16 %v3469
    %v3506 = vunpack.c.h.b16 %v3469
    %v3507 = vunpack.c.l.b16 %v3470
    %v3508 = vunpack.c.l.b16 %v3471
    %v3509 = vunpack.c.h.b16 %v3471
    %v3510 = vunpack.c.l.b16 %v3472
    %v3511 = vunpack.c.l.b16 %v3473
    %v3512 = vunpack.c.h.b16 %v3473
    %v3513 = vunpack.c.l.b16 %v3474
    %v3514 = vunpack.c.l.b16 %v3475
    %v3515 = vunpack.c.h.b16 %v3475
    %v3516 = vunpack.c.l.b16 %v3476
    %v3517 = vpack.c.b16 %v3496, %v3493
    %v3518 = vpack.c.b16 %v3497, %v3494
    %v3519 = vpack.c.b16 %v3498, %v3495
    %v3520 = vpack.c.b16 %v3502, %v3499
    %v3521 = vpack.c.b16 %v3503, %v3500
    %v3522 = vpack.c.b16 %v3504, %v3501
    %v3523 = vpack.c.b16 %v3508, %v3505
    %v3524 = vpack.c.b16 %v3509, %v3506
    %v3525 = vpack.c.b16 %v3510, %v3507
    %v3526 = vpack.c.b16 %v3514, %v3511
    %v3527 = vpack.c.b16 %v3515, %v3512
    %v3528 = vpack.c.b16 %v3516, %v3513
    %3541 = vmatpush.bf16.msra.mxu0 0
    %3542 = vmatpush.bf16.msra.mxu0 0
    %3543 = vmatpush.bf16.msra.mxu0 0
    %3544 = vmatpush.bf16.msra.mxu0 0
    %3545 = vmatpush.bf16.msra.mxu0 %v3526
    %3546 = vmatpush.bf16.msra.mxu0 %v3523
    %3547 = vmatpush.bf16.msra.mxu0 %v3520
    %3548 = vmatpush.bf16.msra.mxu0 %v3517
    %3549 = vmatmul.bf16.gmra.mxu0 %v3293
    %v3550 = vpop.f32.mrf.mxu0
    %v3551 = vadd.f32 0.0, %v3550
    %v3552 = vpop.f32.mrf.mxu0
    %v3553 = vadd.f32 0.0, %v3552
    %3554 = vdwg.mxu0
    %3555 = vmatpush.bf16.msra.mxu0 0
    %3556 = vmatpush.bf16.msra.mxu0 0
    %3557 = vmatpush.bf16.msra.mxu0 0
    %3558 = vmatpush.bf16.msra.mxu0 0
    %3559 = vmatpush.bf16.msra.mxu0 %v3527
    %3560 = vmatpush.bf16.msra.mxu0 %v3524
    %3561 = vmatpush.bf16.msra.mxu0 %v3521
    %3562 = vmatpush.bf16.msra.mxu0 %v3518
    %3563 = vmatmul.bf16.gmra.mxu0 %v3293
    %v3564 = vpop.f32.mrf.mxu0
    %v3565 = vadd.f32 0.0, %v3564
    %v3566 = vpop.f32.mrf.mxu0
    %v3567 = vadd.f32 0.0, %v3566
    %3568 = vdwg.mxu0
    %3569 = vmatpush.bf16.msra.mxu0 0
    %3570 = vmatpush.bf16.msra.mxu0 0
    %3571 = vmatpush.bf16.msra.mxu0 0
    %3572 = vmatpush.bf16.msra.mxu0 0
    %3573 = vmatpush.bf16.msra.mxu0 %v3528
    %3574 = vmatpush.bf16.msra.mxu0 %v3525
    %3575 = vmatpush.bf16.msra.mxu0 %v3522
    %3576 = vmatpush.bf16.msra.mxu0 %v3519
    %3577 = vmatmul.bf16.gmra.mxu0 %v3293
    %v3578 = vpop.f32.mrf.mxu0
    %v3579 = vadd.f32 0.0, %v3578
    %v3580 = vpop.f32.mrf.mxu0
    %v3581 = vadd.f32 0.0, %v3580
    %3582 = vdwg.mxu0
    %v3583 = vpack.c.bf16 %v3319, %v3305
    %v3584 = vpack.c.bf16 %v3333, %v3333
    %v3585 = vpack.c.bf16 %v3442, %v3428
    %v3586 = vpack.c.bf16 %v3456, %v3456
    %v3587 = vpack.c.bf16 %v3565, %v3551
    %v3588 = vpack.c.bf16 %v3579, %v3579
    %3589 = vmatpush.bf16.xpose.msra.mxu0 0
    %3590 = vmatpush.bf16.xpose.msra.mxu0 0
    %3591 = vmatpush.bf16.xpose.msra.mxu0 0
    %3592 = vmatpush.bf16.xpose.msra.mxu0 0
    %3593 = vmatpush.bf16.xpose.msra.mxu0 0
    %3594 = vmatpush.bf16.xpose.msra.mxu0 0
    %3595 = vmatpush.bf16.xpose.msra.mxu0 0
    %3596 = vmatpush.bf16.xpose.msra.mxu0 %v3585
    %3597 = vmatmul.bf16.gmra.mxu0 %v3583
    %v3598 = vpop.f32.mrf.mxu0
    %v3599 = vadd.f32 %v38, %v3598
    %v3600 = vpop.f32.mrf.mxu0
    %3601 = vdwg.mxu0
    %v3602 = vsel %vm435, %v3599, -inf
    %3603 = vmax.xlane.f32.xlu0 %v3602
    %v3604 = vpop.xlane.xlu0 %3603
    %v3605 = vsub.f32 %v3599, %v3604
    %v3606 = vmul.f32 %v3605, 1.442695
    %v3607 = vpow.pop %v3606
    %v3608 = vsel %vm435, %v3607, 0.0
    %3609 = vadd.xlane.f32.xlu0 %v3608
    %v3610 = vpop.xlane.xlu0 %3609
    %v3611 = vrcp.pop %v3610
    %v3612 = vmul.f32 %v3610, %v3611
    %v3613 = vsub.f32 1.0, %v3612
    %v3614 = vmul.f32 %v3611, %v3613
    %v3615 = vadd.f32 %v3611, %v3614
    %vm3616 = vweird.f32 %v3610
    %vm3617 = vweird.f32 %v3611
    %vm3618 = vmor %vm3616, %vm3617
    %v3619 = vsel %vm3618, %v3611, %v3615
    %v3620 = vand.u32 2147483647, %v3610
    %vm3621 = vcmp.eq.f32.partialorder %v3620, 8.507059e+37
    %v3622 = vand.u32 %v3610, 2147483648
    %v3623 = vor.u32 1.1754944e-38, %v3622
    %v3624 = vsel %vm3621, %v3623, %v3619
    %v3625 = vmul.f32 %v3607, %v3624
    %v3626 = vpack.c.bf16 %v3625, %v3625
    %v3628 = vsel %vm435, %v3626, 0
    %v3631 = vsel %vm464, %v3587, 0
    %3633 = vmatpush.bf16.msra.mxu0 0
    %3634 = vmatpush.bf16.msra.mxu0 0
    %3635 = vmatpush.bf16.msra.mxu0 0
    %3636 = vmatpush.bf16.msra.mxu0 0
    %3637 = vmatpush.bf16.msra.mxu0 0
    %3638 = vmatpush.bf16.msra.mxu0 0
    %3639 = vmatpush.bf16.msra.mxu0 0
    %3640 = vmatpush.bf16.msra.mxu0 %v3631
    %3641 = vmatmul.bf16.gmra.mxu0 %v3628
    %v3642 = vpop.f32.mrf.mxu0
    %v3643 = vadd.f32 0.0, %v3642
    %v3644 = vpop.f32.mrf.mxu0
    %3645 = vdwg.mxu0
    %v3647 = vunpack.c.h.b16 %v3583
    %v3648 = vpack.c.b16 %v3647, %v3647
    %v3651 = vunpack.c.h.b16 %v3585
    %v3652 = vpack.c.b16 %v3651, %v3651
    %3654 = vmatpush.bf16.xpose.msra.mxu0 0
    %3655 = vmatpush.bf16.xpose.msra.mxu0 0
    %3656 = vmatpush.bf16.xpose.msra.mxu0 0
    %3657 = vmatpush.bf16.xpose.msra.mxu0 0
    %3658 = vmatpush.bf16.xpose.msra.mxu0 0
    %3659 = vmatpush.bf16.xpose.msra.mxu0 0
    %3660 = vmatpush.bf16.xpose.msra.mxu0 0
    %3661 = vmatpush.bf16.xpose.msra.mxu0 %v3652
    %3662 = vmatmul.bf16.gmra.mxu0 %v3648
    %v3663 = vpop.f32.mrf.mxu0
    %v3664 = vadd.f32 %v38, %v3663
    %v3665 = vpop.f32.mrf.mxu0
    %3666 = vdwg.mxu0
    %v3667 = vsel %vm435, %v3664, -inf
    %3668 = vmax.xlane.f32.xlu0 %v3667
    %v3669 = vpop.xlane.xlu0 %3668
    %v3670 = vsub.f32 %v3664, %v3669
    %v3671 = vmul.f32 %v3670, 1.442695
    %v3672 = vpow.pop %v3671
    %v3673 = vsel %vm435, %v3672, 0.0
    %3674 = vadd.xlane.f32.xlu0 %v3673
    %v3675 = vpop.xlane.xlu0 %3674
    %v3676 = vrcp.pop %v3675
    %v3677 = vmul.f32 %v3675, %v3676
    %v3678 = vsub.f32 1.0, %v3677
    %v3679 = vmul.f32 %v3676, %v3678
    %v3680 = vadd.f32 %v3676, %v3679
    %vm3681 = vweird.f32 %v3675
    %vm3682 = vweird.f32 %v3676
    %vm3683 = vmor %vm3681, %vm3682
    %v3684 = vsel %vm3683, %v3676, %v3680
    %v3685 = vand.u32 2147483647, %v3675
    %vm3686 = vcmp.eq.f32.partialorder %v3685, 8.507059e+37
    %v3687 = vand.u32 %v3675, 2147483648
    %v3688 = vor.u32 1.1754944e-38, %v3687
    %v3689 = vsel %vm3686, %v3688, %v3684
    %v3690 = vmul.f32 %v3672, %v3689
    %v3691 = vpack.c.bf16 %v3690, %v3690
    %v3693 = vunpack.c.h.b16 %v3587
    %v3694 = vpack.c.b16 %v3693, %v3693
    %v3696 = vsel %vm435, %v3691, 0
    %v3699 = vsel %vm464, %v3694, 0
    %3701 = vmatpush.bf16.msra.mxu0 0
    %3702 = vmatpush.bf16.msra.mxu0 0
    %3703 = vmatpush.bf16.msra.mxu0 0
    %3704 = vmatpush.bf16.msra.mxu0 0
    %3705 = vmatpush.bf16.msra.mxu0 0
    %3706 = vmatpush.bf16.msra.mxu0 0
    %3707 = vmatpush.bf16.msra.mxu0 0
    %3708 = vmatpush.bf16.msra.mxu0 %v3699
    %3709 = vmatmul.bf16.gmra.mxu0 %v3696
    %v3710 = vpop.f32.mrf.mxu0
    %v3711 = vadd.f32 0.0, %v3710
    %v3712 = vpop.f32.mrf.mxu0
    %3713 = vdwg.mxu0
    %3714 = vmatpush.bf16.xpose.msra.mxu0 0
    %3715 = vmatpush.bf16.xpose.msra.mxu0 0
    %3716 = vmatpush.bf16.xpose.msra.mxu0 0
    %3717 = vmatpush.bf16.xpose.msra.mxu0 0
    %3718 = vmatpush.bf16.xpose.msra.mxu0 0
    %3719 = vmatpush.bf16.xpose.msra.mxu0 0
    %3720 = vmatpush.bf16.xpose.msra.mxu0 0
    %3721 = vmatpush.bf16.xpose.msra.mxu0 %v3586
    %3722 = vmatmul.bf16.gmra.mxu0 %v3584
    %v3723 = vpop.f32.mrf.mxu0
    %v3724 = vadd.f32 %v38, %v3723
    %v3725 = vpop.f32.mrf.mxu0
    %3726 = vdwg.mxu0
    %v3727 = vsel %vm435, %v3724, -inf
    %3728 = vmax.xlane.f32.xlu0 %v3727
    %v3729 = vpop.xlane.xlu0 %3728
    %v3730 = vsub.f32 %v3724, %v3729
    %v3731 = vmul.f32 %v3730, 1.442695
    %v3732 = vpow.pop %v3731
    %v3733 = vsel %vm435, %v3732, 0.0
    %3734 = vadd.xlane.f32.xlu0 %v3733
    %v3735 = vpop.xlane.xlu0 %3734
    %v3736 = vrcp.pop %v3735
    %v3737 = vmul.f32 %v3735, %v3736
    %v3738 = vsub.f32 1.0, %v3737
    %v3739 = vmul.f32 %v3736, %v3738
    %v3740 = vadd.f32 %v3736, %v3739
    %vm3741 = vweird.f32 %v3735
    %vm3742 = vweird.f32 %v3736
    %vm3743 = vmor %vm3741, %vm3742
    %v3744 = vsel %vm3743, %v3736, %v3740
    %v3745 = vand.u32 2147483647, %v3735
    %vm3746 = vcmp.eq.f32.partialorder %v3745, 8.507059e+37
    %v3747 = vand.u32 %v3735, 2147483648
    %v3748 = vor.u32 1.1754944e-38, %v3747
    %v3749 = vsel %vm3746, %v3748, %v3744
    %v3750 = vmul.f32 %v3732, %v3749
    %v3751 = vpack.c.bf16 %v3750, %v3750
    %v3753 = vsel %vm435, %v3751, 0
    %v3756 = vsel %vm464, %v3588, 0
    %3758 = vmatpush.bf16.msra.mxu0 0
    %3759 = vmatpush.bf16.msra.mxu0 0
    %3760 = vmatpush.bf16.msra.mxu0 0
    %3761 = vmatpush.bf16.msra.mxu0 0
    %3762 = vmatpush.bf16.msra.mxu0 0
    %3763 = vmatpush.bf16.msra.mxu0 0
    %3764 = vmatpush.bf16.msra.mxu0 0
    %3765 = vmatpush.bf16.msra.mxu0 %v3756
    %3766 = vmatmul.bf16.gmra.mxu0 %v3753
    %v3767 = vpop.f32.mrf.mxu0
    %v3768 = vadd.f32 0.0, %v3767
    %v3769 = vpop.f32.mrf.mxu0
    %3770 = vdwg.mxu0
    %3772 = vrot.lane.b32.xlu0 %v3690, 8
    %v3773 = vpop.permute.xlu0 %3772
    %3776 = vrot.lane.b32.xlu0 %v3750, 16
    %v3777 = vpop.permute.xlu0 %3776
    %v3779 = vsel %vm435, %v3625, %v3773
    %v3780 = vsel %vm615, %v3779, %v3777
    %v3781 = vpack.c.bf16 %v3321, %v3307
    %v3782 = vpack.c.bf16 %v3335, %v3335
    %v3783 = vpack.c.bf16 %v3444, %v3430
    %v3784 = vpack.c.bf16 %v3458, %v3458
    %v3785 = vpack.c.bf16 %v3567, %v3553
    %v3786 = vpack.c.bf16 %v3581, %v3581
    %3787 = vmatpush.bf16.xpose.msra.mxu0 0
    %3788 = vmatpush.bf16.xpose.msra.mxu0 0
    %3789 = vmatpush.bf16.xpose.msra.mxu0 0
    %3790 = vmatpush.bf16.xpose.msra.mxu0 0
    %3791 = vmatpush.bf16.xpose.msra.mxu0 0
    %3792 = vmatpush.bf16.xpose.msra.mxu0 0
    %3793 = vmatpush.bf16.xpose.msra.mxu0 0
    %3794 = vmatpush.bf16.xpose.msra.mxu0 %v3783
    %3795 = vmatmul.bf16.gmra.mxu0 %v3781
    %v3796 = vpop.f32.mrf.mxu0
    %v3797 = vadd.f32 %v43, %v3796
    %v3798 = vpop.f32.mrf.mxu0
    %3799 = vdwg.mxu0
    %v3800 = vsel %vm435, %v3797, -inf
    %3801 = vmax.xlane.f32.xlu0 %v3800
    %v3802 = vpop.xlane.xlu0 %3801
    %v3803 = vsub.f32 %v3797, %v3802
    %v3804 = vmul.f32 %v3803, 1.442695
    %v3805 = vpow.pop %v3804
    %v3806 = vsel %vm435, %v3805, 0.0
    %3807 = vadd.xlane.f32.xlu0 %v3806
    %v3808 = vpop.xlane.xlu0 %3807
    %v3809 = vrcp.pop %v3808
    %v3810 = vmul.f32 %v3808, %v3809
    %v3811 = vsub.f32 1.0, %v3810
    %v3812 = vmul.f32 %v3809, %v3811
    %v3813 = vadd.f32 %v3809, %v3812
    %vm3814 = vweird.f32 %v3808
    %vm3815 = vweird.f32 %v3809
    %vm3816 = vmor %vm3814, %vm3815
    %v3817 = vsel %vm3816, %v3809, %v3813
    %v3818 = vand.u32 2147483647, %v3808
    %vm3819 = vcmp.eq.f32.partialorder %v3818, 8.507059e+37
    %v3820 = vand.u32 %v3808, 2147483648
    %v3821 = vor.u32 1.1754944e-38, %v3820
    %v3822 = vsel %vm3819, %v3821, %v3817
    %v3823 = vmul.f32 %v3805, %v3822
    %v3824 = vpack.c.bf16 %v3823, %v3823
    %v3826 = vsel %vm435, %v3824, 0
    %v3829 = vsel %vm464, %v3785, 0
    %3831 = vmatpush.bf16.msra.mxu0 0
    %3832 = vmatpush.bf16.msra.mxu0 0
    %3833 = vmatpush.bf16.msra.mxu0 0
    %3834 = vmatpush.bf16.msra.mxu0 0
    %3835 = vmatpush.bf16.msra.mxu0 0
    %3836 = vmatpush.bf16.msra.mxu0 0
    %3837 = vmatpush.bf16.msra.mxu0 0
    %3838 = vmatpush.bf16.msra.mxu0 %v3829
    %3839 = vmatmul.bf16.gmra.mxu0 %v3826
    %v3840 = vpop.f32.mrf.mxu0
    %v3841 = vadd.f32 0.0, %v3840
    %v3842 = vpop.f32.mrf.mxu0
    %3843 = vdwg.mxu0
    %v3845 = vunpack.c.h.b16 %v3781
    %v3846 = vpack.c.b16 %v3845, %v3845
    %v3849 = vunpack.c.h.b16 %v3783
    %v3850 = vpack.c.b16 %v3849, %v3849
    %3852 = vmatpush.bf16.xpose.msra.mxu0 0
    %3853 = vmatpush.bf16.xpose.msra.mxu0 0
    %3854 = vmatpush.bf16.xpose.msra.mxu0 0
    %3855 = vmatpush.bf16.xpose.msra.mxu0 0
    %3856 = vmatpush.bf16.xpose.msra.mxu0 0
    %3857 = vmatpush.bf16.xpose.msra.mxu0 0
    %3858 = vmatpush.bf16.xpose.msra.mxu0 0
    %3859 = vmatpush.bf16.xpose.msra.mxu0 %v3850
    %3860 = vmatmul.bf16.gmra.mxu0 %v3846
    %v3861 = vpop.f32.mrf.mxu0
    %v3862 = vadd.f32 %v43, %v3861
    %v3863 = vpop.f32.mrf.mxu0
    %3864 = vdwg.mxu0
    %v3865 = vsel %vm435, %v3862, -inf
    %3866 = vmax.xlane.f32.xlu0 %v3865
    %v3867 = vpop.xlane.xlu0 %3866
    %v3868 = vsub.f32 %v3862, %v3867
    %v3869 = vmul.f32 %v3868, 1.442695
    %v3870 = vpow.pop %v3869
    %v3871 = vsel %vm435, %v3870, 0.0
    %3872 = vadd.xlane.f32.xlu0 %v3871
    %v3873 = vpop.xlane.xlu0 %3872
    %v3874 = vrcp.pop %v3873
    %v3875 = vmul.f32 %v3873, %v3874
    %v3876 = vsub.f32 1.0, %v3875
    %v3877 = vmul.f32 %v3874, %v3876
    %v3878 = vadd.f32 %v3874, %v3877
    %vm3879 = vweird.f32 %v3873
    %vm3880 = vweird.f32 %v3874
    %vm3881 = vmor %vm3879, %vm3880
    %v3882 = vsel %vm3881, %v3874, %v3878
    %v3883 = vand.u32 2147483647, %v3873
    %vm3884 = vcmp.eq.f32.partialorder %v3883, 8.507059e+37
    %v3885 = vand.u32 %v3873, 2147483648
    %v3886 = vor.u32 1.1754944e-38, %v3885
    %v3887 = vsel %vm3884, %v3886, %v3882
    %v3888 = vmul.f32 %v3870, %v3887
    %v3889 = vpack.c.bf16 %v3888, %v3888
    %v3891 = vunpack.c.h.b16 %v3785
    %v3892 = vpack.c.b16 %v3891, %v3891
    %v3894 = vsel %vm435, %v3889, 0
    %v3897 = vsel %vm464, %v3892, 0
    %3899 = vmatpush.bf16.msra.mxu0 0
    %3900 = vmatpush.bf16.msra.mxu0 0
    %3901 = vmatpush.bf16.msra.mxu0 0
    %3902 = vmatpush.bf16.msra.mxu0 0
    %3903 = vmatpush.bf16.msra.mxu0 0
    %3904 = vmatpush.bf16.msra.mxu0 0
    %3905 = vmatpush.bf16.msra.mxu0 0
    %3906 = vmatpush.bf16.msra.mxu0 %v3897
    %3907 = vmatmul.bf16.gmra.mxu0 %v3894
    %v3908 = vpop.f32.mrf.mxu0
    %v3909 = vadd.f32 0.0, %v3908
    %v3910 = vpop.f32.mrf.mxu0
    %3911 = vdwg.mxu0
    %3912 = vmatpush.bf16.xpose.msra.mxu0 0
    %3913 = vmatpush.bf16.xpose.msra.mxu0 0
    %3914 = vmatpush.bf16.xpose.msra.mxu0 0
    %3915 = vmatpush.bf16.xpose.msra.mxu0 0
    %3916 = vmatpush.bf16.xpose.msra.mxu0 0
    %3917 = vmatpush.bf16.xpose.msra.mxu0 0
    %3918 = vmatpush.bf16.xpose.msra.mxu0 0
    %3919 = vmatpush.bf16.xpose.msra.mxu0 %v3784
    %3920 = vmatmul.bf16.gmra.mxu0 %v3782
    %v3921 = vpop.f32.mrf.mxu0
    %v3922 = vadd.f32 %v43, %v3921
    %v3923 = vpop.f32.mrf.mxu0
    %3924 = vdwg.mxu0
    %v3925 = vsel %vm435, %v3922, -inf
    %3926 = vmax.xlane.f32.xlu0 %v3925
    %v3927 = vpop.xlane.xlu0 %3926
    %v3928 = vsub.f32 %v3922, %v3927
    %v3929 = vmul.f32 %v3928, 1.442695
    %v3930 = vpow.pop %v3929
    %v3931 = vsel %vm435, %v3930, 0.0
    %3932 = vadd.xlane.f32.xlu0 %v3931
    %v3933 = vpop.xlane.xlu0 %3932
    %v3934 = vrcp.pop %v3933
    %v3935 = vmul.f32 %v3933, %v3934
    %v3936 = vsub.f32 1.0, %v3935
    %v3937 = vmul.f32 %v3934, %v3936
    %v3938 = vadd.f32 %v3934, %v3937
    %vm3939 = vweird.f32 %v3933
    %vm3940 = vweird.f32 %v3934
    %vm3941 = vmor %vm3939, %vm3940
    %v3942 = vsel %vm3941, %v3934, %v3938
    %v3943 = vand.u32 2147483647, %v3933
    %vm3944 = vcmp.eq.f32.partialorder %v3943, 8.507059e+37
    %v3945 = vand.u32 %v3933, 2147483648
    %v3946 = vor.u32 1.1754944e-38, %v3945
    %v3947 = vsel %vm3944, %v3946, %v3942
    %v3948 = vmul.f32 %v3930, %v3947
    %v3949 = vpack.c.bf16 %v3948, %v3948
    %v3951 = vsel %vm435, %v3949, 0
    %v3954 = vsel %vm464, %v3786, 0
    %3956 = vmatpush.bf16.msra.mxu0 0
    %3957 = vmatpush.bf16.msra.mxu0 0
    %3958 = vmatpush.bf16.msra.mxu0 0
    %3959 = vmatpush.bf16.msra.mxu0 0
    %3960 = vmatpush.bf16.msra.mxu0 0
    %3961 = vmatpush.bf16.msra.mxu0 0
    %3962 = vmatpush.bf16.msra.mxu0 0
    %3963 = vmatpush.bf16.msra.mxu0 %v3954
    %3964 = vmatmul.bf16.gmra.mxu0 %v3951
    %v3965 = vpop.f32.mrf.mxu0
    %v3966 = vadd.f32 0.0, %v3965
    %v3967 = vpop.f32.mrf.mxu0
    %3968 = vdwg.mxu0
    %3970 = vrot.lane.b32.xlu0 %v3888, 8
    %v3971 = vpop.permute.xlu0 %3970
    %3974 = vrot.lane.b32.xlu0 %v3948, 16
    %v3975 = vpop.permute.xlu0 %3974
    %v3977 = vsel %vm435, %v3823, %v3971
    %v3978 = vsel %vm615, %v3977, %v3975
    %s3979 = scalar_lea.vmem [#allocation4], 32
    %3980 = vst.msk [vmem:[%s3979] sm:$0xff] %vm815, %v3780
    %3981 = vst.msk [vmem:[%s3979 + $0x8] sm:$0xff] %vm815, %v3978
    %v3982 = vpack.c.bf16 %v3841, %v3643
    %v3983 = vpack.c.bf16 %v3909, %v3711
    %v3984 = vpack.c.bf16 %v3966, %v3768
    %s3985 = scalar_lea.vmem %s5, 384
    %v3986 = vld [vmem:[%s3985] sm:$0xf]
    %v3987 = vld [vmem:[%s3985 + $0x4] sm:$0xf]
    %v3988 = vld [vmem:[%s3985 + $0x8] sm:$0xf]
    %v3989 = vld [vmem:[%s3985 + $0xc] sm:$0xf]
    %v3990 = vld [vmem:[%s3985 + $0x10] sm:$0xf]
    %v3991 = vld [vmem:[%s3985 + $0x14] sm:$0xf]
    %v3992 = vld [vmem:[%s3985 + $0x18] sm:$0xf]
    %v3993 = vld [vmem:[%s3985 + $0x1c] sm:$0xf]
    %v3994 = vld [vmem:[%s3985 + $0x20] sm:$0xf]
    %v3995 = vld [vmem:[%s3985 + $0x24] sm:$0xf]
    %v3996 = vld [vmem:[%s3985 + $0x28] sm:$0xf]
    %v3997 = vld [vmem:[%s3985 + $0x2c] sm:$0xf]
    %v3998 = vld [vmem:[%s3985 + $0x30] sm:$0xf]
    %v3999 = vld [vmem:[%s3985 + $0x34] sm:$0xf]
    %v4000 = vld [vmem:[%s3985 + $0x38] sm:$0xf]
    %v4001 = vld [vmem:[%s3985 + $0x3c] sm:$0xf]
    %v4002 = vld [vmem:[%s3985 + $0x40] sm:$0xf]
    %v4003 = vld [vmem:[%s3985 + $0x44] sm:$0xf]
    %v4004 = vld [vmem:[%s3985 + $0x48] sm:$0xf]
    %v4005 = vld [vmem:[%s3985 + $0x4c] sm:$0xf]
    %v4006 = vld [vmem:[%s3985 + $0x50] sm:$0xf]
    %v4007 = vld [vmem:[%s3985 + $0x54] sm:$0xf]
    %v4008 = vld [vmem:[%s3985 + $0x58] sm:$0xf]
    %v4009 = vld [vmem:[%s3985 + $0x5c] sm:$0xf]
    %v4010 = vld [vmem:[%s3985 + $0x60] sm:$0xf]
    %v4011 = vld [vmem:[%s3985 + $0x64] sm:$0xf]
    %v4012 = vld [vmem:[%s3985 + $0x68] sm:$0xf]
    %v4013 = vld [vmem:[%s3985 + $0x6c] sm:$0xf]
    %v4014 = vld [vmem:[%s3985 + $0x70] sm:$0xf]
    %v4015 = vld [vmem:[%s3985 + $0x74] sm:$0xf]
    %v4016 = vld [vmem:[%s3985 + $0x78] sm:$0xf]
    %v4017 = vld [vmem:[%s3985 + $0x7c] sm:$0xf]
    %v4018 = vld [vmem:[%s3985 + $0x80] sm:$0xf]
    %v4019 = vld [vmem:[%s3985 + $0x84] sm:$0xf]
    %v4020 = vld [vmem:[%s3985 + $0x88] sm:$0xf]
    %v4021 = vld [vmem:[%s3985 + $0x8c] sm:$0xf]
    %v4022 = vld [vmem:[%s3985 + $0x90] sm:$0xf]
    %v4023 = vld [vmem:[%s3985 + $0x94] sm:$0xf]
    %v4024 = vld [vmem:[%s3985 + $0x98] sm:$0xf]
    %v4025 = vld [vmem:[%s3985 + $0x9c] sm:$0xf]
    %v4026 = vld [vmem:[%s3985 + $0xa0] sm:$0xf]
    %v4027 = vld [vmem:[%s3985 + $0xa4] sm:$0xf]
    %v4028 = vld [vmem:[%s3985 + $0xa8] sm:$0xf]
    %v4029 = vld [vmem:[%s3985 + $0xac] sm:$0xf]
    %v4030 = vld [vmem:[%s3985 + $0xb0] sm:$0xf]
    %v4031 = vld [vmem:[%s3985 + $0xb4] sm:$0xf]
    %v4032 = vld [vmem:[%s3985 + $0xb8] sm:$0xf]
    %v4033 = vld [vmem:[%s3985 + $0xbc] sm:$0xf]
    %v4082 = vunpack.c.l.b16 %v3986
    %v4083 = vunpack.c.l.b16 %v3987
    %v4084 = vunpack.c.l.b16 %v3988
    %v4085 = vunpack.c.l.b16 %v3989
    %v4086 = vunpack.c.l.b16 %v3990
    %v4087 = vunpack.c.l.b16 %v3991
    %v4088 = vunpack.c.l.b16 %v3992
    %v4089 = vunpack.c.l.b16 %v3993
    %v4090 = vunpack.c.l.b16 %v3994
    %v4091 = vunpack.c.l.b16 %v3995
    %v4092 = vunpack.c.l.b16 %v3996
    %v4093 = vunpack.c.l.b16 %v3997
    %v4094 = vunpack.c.l.b16 %v3998
    %v4095 = vunpack.c.l.b16 %v3999
    %v4096 = vunpack.c.l.b16 %v4000
    %v4097 = vunpack.c.l.b16 %v4001
    %v4098 = vunpack.c.l.b16 %v4002
    %v4099 = vunpack.c.l.b16 %v4003
    %v4100 = vunpack.c.l.b16 %v4004
    %v4101 = vunpack.c.l.b16 %v4005
    %v4102 = vunpack.c.l.b16 %v4006
    %v4103 = vunpack.c.l.b16 %v4007
    %v4104 = vunpack.c.l.b16 %v4008
    %v4105 = vunpack.c.l.b16 %v4009
    %v4106 = vunpack.c.l.b16 %v4010
    %v4107 = vunpack.c.l.b16 %v4011
    %v4108 = vunpack.c.l.b16 %v4012
    %v4109 = vunpack.c.l.b16 %v4013
    %v4110 = vunpack.c.l.b16 %v4014
    %v4111 = vunpack.c.l.b16 %v4015
    %v4112 = vunpack.c.l.b16 %v4016
    %v4113 = vunpack.c.l.b16 %v4017
    %v4114 = vunpack.c.l.b16 %v4018
    %v4115 = vunpack.c.l.b16 %v4019
    %v4116 = vunpack.c.l.b16 %v4020
    %v4117 = vunpack.c.l.b16 %v4021
    %v4118 = vunpack.c.l.b16 %v4022
    %v4119 = vunpack.c.l.b16 %v4023
    %v4120 = vunpack.c.l.b16 %v4024
    %v4121 = vunpack.c.l.b16 %v4025
    %v4122 = vunpack.c.l.b16 %v4026
    %v4123 = vunpack.c.l.b16 %v4027
    %v4124 = vunpack.c.l.b16 %v4028
    %v4125 = vunpack.c.l.b16 %v4029
    %v4126 = vunpack.c.l.b16 %v4030
    %v4127 = vunpack.c.l.b16 %v4031
    %v4128 = vunpack.c.l.b16 %v4032
    %v4129 = vunpack.c.l.b16 %v4033
    %v4130 = vpack.c.b16 %v4083, %v4082
    %v4131 = vpack.c.b16 %v4085, %v4084
    %v4132 = vpack.c.b16 %v4087, %v4086
    %v4133 = vpack.c.b16 %v4089, %v4088
    %v4134 = vpack.c.b16 %v4091, %v4090
    %v4135 = vpack.c.b16 %v4093, %v4092
    %v4136 = vpack.c.b16 %v4095, %v4094
    %v4137 = vpack.c.b16 %v4097, %v4096
    %v4138 = vpack.c.b16 %v4099, %v4098
    %v4139 = vpack.c.b16 %v4101, %v4100
    %v4140 = vpack.c.b16 %v4103, %v4102
    %v4141 = vpack.c.b16 %v4105, %v4104
    %v4142 = vpack.c.b16 %v4107, %v4106
    %v4143 = vpack.c.b16 %v4109, %v4108
    %v4144 = vpack.c.b16 %v4111, %v4110
    %v4145 = vpack.c.b16 %v4113, %v4112
    %v4146 = vpack.c.b16 %v4115, %v4114
    %v4147 = vpack.c.b16 %v4117, %v4116
    %v4148 = vpack.c.b16 %v4119, %v4118
    %v4149 = vpack.c.b16 %v4121, %v4120
    %v4150 = vpack.c.b16 %v4123, %v4122
    %v4151 = vpack.c.b16 %v4125, %v4124
    %v4152 = vpack.c.b16 %v4127, %v4126
    %v4153 = vpack.c.b16 %v4129, %v4128
    %4178 = vmatpush.bf16.msra.mxu0 %v4137
    %4179 = vmatpush.bf16.msra.mxu0 %v4136
    %4180 = vmatpush.bf16.msra.mxu0 %v4135
    %4181 = vmatpush.bf16.msra.mxu0 %v4134
    %4182 = vmatpush.bf16.msra.mxu0 %v4133
    %4183 = vmatpush.bf16.msra.mxu0 %v4132
    %4184 = vmatpush.bf16.msra.mxu0 %v4131
    %4185 = vmatpush.bf16.msra.mxu0 %v4130
    %4186 = vmatmul.bf16.gmra.mxu0 %v3982
    %v4187 = vpop.f32.mrf.mxu0
    %v4188 = vadd.f32 %v3208, %v4187
    %v4189 = vpop.f32.mrf.mxu0
    %v4190 = vadd.f32 %v3209, %v4189
    %4191 = vdwg.mxu0
    %4192 = vmatpush.bf16.msra.mxu0 %v4145
    %4193 = vmatpush.bf16.msra.mxu0 %v4144
    %4194 = vmatpush.bf16.msra.mxu0 %v4143
    %4195 = vmatpush.bf16.msra.mxu0 %v4142
    %4196 = vmatpush.bf16.msra.mxu0 %v4141
    %4197 = vmatpush.bf16.msra.mxu0 %v4140
    %4198 = vmatpush.bf16.msra.mxu0 %v4139
    %4199 = vmatpush.bf16.msra.mxu0 %v4138
    %4200 = vmatmul.bf16.gmra.mxu0 %v3983
    %v4201 = vpop.f32.mrf.mxu0
    %v4202 = vadd.f32 %v4188, %v4201
    %v4203 = vpop.f32.mrf.mxu0
    %v4204 = vadd.f32 %v4190, %v4203
    %4205 = vdwg.mxu0
    %4206 = vmatpush.bf16.msra.mxu0 %v4153
    %4207 = vmatpush.bf16.msra.mxu0 %v4152
    %4208 = vmatpush.bf16.msra.mxu0 %v4151
    %4209 = vmatpush.bf16.msra.mxu0 %v4150
    %4210 = vmatpush.bf16.msra.mxu0 %v4149
    %4211 = vmatpush.bf16.msra.mxu0 %v4148
    %4212 = vmatpush.bf16.msra.mxu0 %v4147
    %4213 = vmatpush.bf16.msra.mxu0 %v4146
    %4214 = vmatmul.bf16.gmra.mxu0 %v3984
    %v4215 = vpop.f32.mrf.mxu0
    %v4216 = vadd.f32 %v4202, %v4215
    %v4217 = vpop.f32.mrf.mxu0
    %v4218 = vadd.f32 %v4204, %v4217
    %4219 = vdwg.mxu0
    %v4220 = vsel %vm126, %v4216, 0.0
    %4221 = vadd.xlane.f32.xlu0 %v4220
    %v4222 = vpop.xlane.xlu0 %4221
    %v4223 = vsel %vm126, %v4218, 0.0
    %4224 = vadd.xlane.f32.xlu0 %v4223
    %v4225 = vpop.xlane.xlu0 %4224
    %v4226 = vmul.f32 %v4222, %v1067
    %v4227 = vmul.f32 %v4225, %v1067
    %v4228 = vsub.f32 %v4216, %v4226
    %v4229 = vsub.f32 %v4218, %v4227
    %v4230 = vmul.f32 %v4228, %v4228
    %v4231 = vmul.f32 %v4229, %v4229
    %v4232 = vsel %vm126, %v4230, 0.0
    %4233 = vadd.xlane.f32.xlu0 %v4232
    %v4234 = vpop.xlane.xlu0 %4233
    %v4235 = vsel %vm126, %v4231, 0.0
    %4236 = vadd.xlane.f32.xlu0 %v4235
    %v4237 = vpop.xlane.xlu0 %4236
    %v4238 = vmul.f32 %v4234, %v1067
    %v4239 = vmul.f32 %v4237, %v1067
    %v4240 = vadd.f32 %v4238, 1e-05
    %v4241 = vadd.f32 %v4239, 1e-05
    %v4242 = vrsqrt.pop %v4240
    %v4243 = vmul.f32 %v4242, %v4240
    %v4244 = vmul.f32 %v4243, %v4242
    %v4245 = vmul.f32 0.5, %v4244
    %v4246 = vsub.f32 1.5, %v4245
    %v4247 = vmul.f32 %v4242, %v4246
    %vm4248 = vweird.f32 %v4240
    %vm4249 = vweird.f32 %v4242
    %vm4250 = vmor %vm4248, %vm4249
    %v4251 = vsel %vm4250, %v4242, %v4247
    %v4252 = vrsqrt.pop %v4241
    %v4253 = vmul.f32 %v4252, %v4241
    %v4254 = vmul.f32 %v4253, %v4252
    %v4255 = vmul.f32 0.5, %v4254
    %v4256 = vsub.f32 1.5, %v4255
    %v4257 = vmul.f32 %v4252, %v4256
    %vm4258 = vweird.f32 %v4241
    %vm4259 = vweird.f32 %v4252
    %vm4260 = vmor %vm4258, %vm4259
    %v4261 = vsel %vm4260, %v4252, %v4257
    %v4262 = vmul.f32 %v4228, %v4251
    %v4263 = vmul.f32 %v4229, %v4261
    %v4264 = vpack.c.bf16 %v4263, %v4262
    %s4265 = scalar_lea.vmem %s6, 256
    %v4266 = vld [vmem:[%s4265] sm:$0xff]
    %v4267 = vld [vmem:[%s4265 + $0x8] sm:$0xff]
    %v4268 = vld [vmem:[%s4265 + $0x10] sm:$0xff]
    %v4269 = vld [vmem:[%s4265 + $0x18] sm:$0xff]
    %v4270 = vld [vmem:[%s4265 + $0x20] sm:$0xff]
    %v4271 = vld [vmem:[%s4265 + $0x28] sm:$0xff]
    %v4272 = vld [vmem:[%s4265 + $0x30] sm:$0xff]
    %v4273 = vld [vmem:[%s4265 + $0x38] sm:$0xff]
    %v4274 = vld [vmem:[%s4265 + $0x40] sm:$0xff]
    %v4275 = vld [vmem:[%s4265 + $0x48] sm:$0xff]
    %v4276 = vld [vmem:[%s4265 + $0x50] sm:$0xff]
    %v4277 = vld [vmem:[%s4265 + $0x58] sm:$0xff]
    %v4278 = vld [vmem:[%s4265 + $0x60] sm:$0xff]
    %v4279 = vld [vmem:[%s4265 + $0x68] sm:$0xff]
    %v4280 = vld [vmem:[%s4265 + $0x70] sm:$0xff]
    %v4281 = vld [vmem:[%s4265 + $0x78] sm:$0xff]
    %v4298 = vunpack.c.l.b16 %v4266
    %v4299 = vunpack.c.h.b16 %v4266
    %v4300 = vunpack.c.l.b16 %v4267
    %v4301 = vunpack.c.h.b16 %v4267
    %v4302 = vunpack.c.l.b16 %v4268
    %v4303 = vunpack.c.h.b16 %v4268
    %v4304 = vunpack.c.l.b16 %v4269
    %v4305 = vunpack.c.h.b16 %v4269
    %v4306 = vunpack.c.l.b16 %v4270
    %v4307 = vunpack.c.h.b16 %v4270
    %v4308 = vunpack.c.l.b16 %v4271
    %v4309 = vunpack.c.h.b16 %v4271
    %v4310 = vunpack.c.l.b16 %v4272
    %v4311 = vunpack.c.h.b16 %v4272
    %v4312 = vunpack.c.l.b16 %v4273
    %v4313 = vunpack.c.h.b16 %v4273
    %v4314 = vunpack.c.l.b16 %v4274
    %v4315 = vunpack.c.h.b16 %v4274
    %v4316 = vunpack.c.l.b16 %v4275
    %v4317 = vunpack.c.h.b16 %v4275
    %v4318 = vunpack.c.l.b16 %v4276
    %v4319 = vunpack.c.h.b16 %v4276
    %v4320 = vunpack.c.l.b16 %v4277
    %v4321 = vunpack.c.h.b16 %v4277
    %v4322 = vunpack.c.l.b16 %v4278
    %v4323 = vunpack.c.h.b16 %v4278
    %v4324 = vunpack.c.l.b16 %v4279
    %v4325 = vunpack.c.h.b16 %v4279
    %v4326 = vunpack.c.l.b16 %v4280
    %v4327 = vunpack.c.h.b16 %v4280
    %v4328 = vunpack.c.l.b16 %v4281
    %v4329 = vunpack.c.h.b16 %v4281
    %v4330 = vpack.c.b16 %v4302, %v4298
    %v4331 = vpack.c.b16 %v4303, %v4299
    %v4332 = vpack.c.b16 %v4304, %v4300
    %v4333 = vpack.c.b16 %v4305, %v4301
    %v4334 = vpack.c.b16 %v4310, %v4306
    %v4335 = vpack.c.b16 %v4311, %v4307
    %v4336 = vpack.c.b16 %v4312, %v4308
    %v4337 = vpack.c.b16 %v4313, %v4309
    %v4338 = vpack.c.b16 %v4318, %v4314
    %v4339 = vpack.c.b16 %v4319, %v4315
    %v4340 = vpack.c.b16 %v4320, %v4316
    %v4341 = vpack.c.b16 %v4321, %v4317
    %v4342 = vpack.c.b16 %v4326, %v4322
    %v4343 = vpack.c.b16 %v4327, %v4323
    %v4344 = vpack.c.b16 %v4328, %v4324
    %v4345 = vpack.c.b16 %v4329, %v4325
    %v4363 = vsel %vm126, %v4264, 0
    %4365 = vmatpush.bf16.msra.mxu0 0
    %4366 = vmatpush.bf16.msra.mxu0 0
    %4367 = vmatpush.bf16.msra.mxu0 0
    %4368 = vmatpush.bf16.msra.mxu0 0
    %4369 = vmatpush.bf16.msra.mxu0 %v4342
    %4370 = vmatpush.bf16.msra.mxu0 %v4338
    %4371 = vmatpush.bf16.msra.mxu0 %v4334
    %4372 = vmatpush.bf16.msra.mxu0 %v4330
    %4373 = vmatmul.bf16.gmra.mxu0 %v4363
    %v4374 = vpop.f32.mrf.mxu0
    %v4375 = vadd.f32 0.0, %v4374
    %v4376 = vpop.f32.mrf.mxu0
    %v4377 = vadd.f32 0.0, %v4376
    %4378 = vdwg.mxu0
    %4379 = vmatpush.bf16.msra.mxu0 0
    %4380 = vmatpush.bf16.msra.mxu0 0
    %4381 = vmatpush.bf16.msra.mxu0 0
    %4382 = vmatpush.bf16.msra.mxu0 0
    %4383 = vmatpush.bf16.msra.mxu0 %v4343
    %4384 = vmatpush.bf16.msra.mxu0 %v4339
    %4385 = vmatpush.bf16.msra.mxu0 %v4335
    %4386 = vmatpush.bf16.msra.mxu0 %v4331
    %4387 = vmatmul.bf16.gmra.mxu0 %v4363
    %v4388 = vpop.f32.mrf.mxu0
    %v4389 = vadd.f32 0.0, %v4388
    %v4390 = vpop.f32.mrf.mxu0
    %v4391 = vadd.f32 0.0, %v4390
    %4392 = vdwg.mxu0
    %4393 = vmatpush.bf16.msra.mxu0 0
    %4394 = vmatpush.bf16.msra.mxu0 0
    %4395 = vmatpush.bf16.msra.mxu0 0
    %4396 = vmatpush.bf16.msra.mxu0 0
    %4397 = vmatpush.bf16.msra.mxu0 %v4344
    %4398 = vmatpush.bf16.msra.mxu0 %v4340
    %4399 = vmatpush.bf16.msra.mxu0 %v4336
    %4400 = vmatpush.bf16.msra.mxu0 %v4332
    %4401 = vmatmul.bf16.gmra.mxu0 %v4363
    %v4402 = vpop.f32.mrf.mxu0
    %v4403 = vadd.f32 0.0, %v4402
    %v4404 = vpop.f32.mrf.mxu0
    %v4405 = vadd.f32 0.0, %v4404
    %4406 = vdwg.mxu0
    %4407 = vmatpush.bf16.msra.mxu0 0
    %4408 = vmatpush.bf16.msra.mxu0 0
    %4409 = vmatpush.bf16.msra.mxu0 0
    %4410 = vmatpush.bf16.msra.mxu0 0
    %4411 = vmatpush.bf16.msra.mxu0 %v4345
    %4412 = vmatpush.bf16.msra.mxu0 %v4341
    %4413 = vmatpush.bf16.msra.mxu0 %v4337
    %4414 = vmatpush.bf16.msra.mxu0 %v4333
    %4415 = vmatmul.bf16.gmra.mxu0 %v4363
    %v4416 = vpop.f32.mrf.mxu0
    %v4417 = vadd.f32 0.0, %v4416
    %v4418 = vpop.f32.mrf.mxu0
    %v4419 = vadd.f32 0.0, %v4418
    %4420 = vdwg.mxu0
    %v4421 = vmax.f32 %v4375, 0.0
    %v4422 = vmax.f32 %v4389, 0.0
    %v4423 = vmax.f32 %v4403, 0.0
    %v4424 = vmax.f32 %v4417, 0.0
    %v4425 = vmax.f32 %v4377, 0.0
    %v4426 = vmax.f32 %v4391, 0.0
    %v4427 = vmax.f32 %v4405, 0.0
    %v4428 = vmax.f32 %v4419, 0.0
    %v4429 = vpack.c.bf16 %v4425, %v4421
    %v4430 = vpack.c.bf16 %v4426, %v4422
    %v4431 = vpack.c.bf16 %v4427, %v4423
    %v4432 = vpack.c.bf16 %v4428, %v4424
    %s4433 = scalar_lea.vmem %s7, 512
    %v4434 = vld [vmem:[%s4433] sm:$0xf]
    %v4435 = vld [vmem:[%s4433 + $0x4] sm:$0xf]
    %v4436 = vld [vmem:[%s4433 + $0x8] sm:$0xf]
    %v4437 = vld [vmem:[%s4433 + $0xc] sm:$0xf]
    %v4438 = vld [vmem:[%s4433 + $0x10] sm:$0xf]
    %v4439 = vld [vmem:[%s4433 + $0x14] sm:$0xf]
    %v4440 = vld [vmem:[%s4433 + $0x18] sm:$0xf]
    %v4441 = vld [vmem:[%s4433 + $0x1c] sm:$0xf]
    %v4442 = vld [vmem:[%s4433 + $0x20] sm:$0xf]
    %v4443 = vld [vmem:[%s4433 + $0x24] sm:$0xf]
    %v4444 = vld [vmem:[%s4433 + $0x28] sm:$0xf]
    %v4445 = vld [vmem:[%s4433 + $0x2c] sm:$0xf]
    %v4446 = vld [vmem:[%s4433 + $0x30] sm:$0xf]
    %v4447 = vld [vmem:[%s4433 + $0x34] sm:$0xf]
    %v4448 = vld [vmem:[%s4433 + $0x38] sm:$0xf]
    %v4449 = vld [vmem:[%s4433 + $0x3c] sm:$0xf]
    %v4450 = vld [vmem:[%s4433 + $0x40] sm:$0xf]
    %v4451 = vld [vmem:[%s4433 + $0x44] sm:$0xf]
    %v4452 = vld [vmem:[%s4433 + $0x48] sm:$0xf]
    %v4453 = vld [vmem:[%s4433 + $0x4c] sm:$0xf]
    %v4454 = vld [vmem:[%s4433 + $0x50] sm:$0xf]
    %v4455 = vld [vmem:[%s4433 + $0x54] sm:$0xf]
    %v4456 = vld [vmem:[%s4433 + $0x58] sm:$0xf]
    %v4457 = vld [vmem:[%s4433 + $0x5c] sm:$0xf]
    %v4458 = vld [vmem:[%s4433 + $0x60] sm:$0xf]
    %v4459 = vld [vmem:[%s4433 + $0x64] sm:$0xf]
    %v4460 = vld [vmem:[%s4433 + $0x68] sm:$0xf]
    %v4461 = vld [vmem:[%s4433 + $0x6c] sm:$0xf]
    %v4462 = vld [vmem:[%s4433 + $0x70] sm:$0xf]
    %v4463 = vld [vmem:[%s4433 + $0x74] sm:$0xf]
    %v4464 = vld [vmem:[%s4433 + $0x78] sm:$0xf]
    %v4465 = vld [vmem:[%s4433 + $0x7c] sm:$0xf]
    %v4466 = vld [vmem:[%s4433 + $0x80] sm:$0xf]
    %v4467 = vld [vmem:[%s4433 + $0x84] sm:$0xf]
    %v4468 = vld [vmem:[%s4433 + $0x88] sm:$0xf]
    %v4469 = vld [vmem:[%s4433 + $0x8c] sm:$0xf]
    %v4470 = vld [vmem:[%s4433 + $0x90] sm:$0xf]
    %v4471 = vld [vmem:[%s4433 + $0x94] sm:$0xf]
    %v4472 = vld [vmem:[%s4433 + $0x98] sm:$0xf]
    %v4473 = vld [vmem:[%s4433 + $0x9c] sm:$0xf]
    %v4474 = vld [vmem:[%s4433 + $0xa0] sm:$0xf]
    %v4475 = vld [vmem:[%s4433 + $0xa4] sm:$0xf]
    %v4476 = vld [vmem:[%s4433 + $0xa8] sm:$0xf]
    %v4477 = vld [vmem:[%s4433 + $0xac] sm:$0xf]
    %v4478 = vld [vmem:[%s4433 + $0xb0] sm:$0xf]
    %v4479 = vld [vmem:[%s4433 + $0xb4] sm:$0xf]
    %v4480 = vld [vmem:[%s4433 + $0xb8] sm:$0xf]
    %v4481 = vld [vmem:[%s4433 + $0xbc] sm:$0xf]
    %v4482 = vld [vmem:[%s4433 + $0xc0] sm:$0xf]
    %v4483 = vld [vmem:[%s4433 + $0xc4] sm:$0xf]
    %v4484 = vld [vmem:[%s4433 + $0xc8] sm:$0xf]
    %v4485 = vld [vmem:[%s4433 + $0xcc] sm:$0xf]
    %v4486 = vld [vmem:[%s4433 + $0xd0] sm:$0xf]
    %v4487 = vld [vmem:[%s4433 + $0xd4] sm:$0xf]
    %v4488 = vld [vmem:[%s4433 + $0xd8] sm:$0xf]
    %v4489 = vld [vmem:[%s4433 + $0xdc] sm:$0xf]
    %v4490 = vld [vmem:[%s4433 + $0xe0] sm:$0xf]
    %v4491 = vld [vmem:[%s4433 + $0xe4] sm:$0xf]
    %v4492 = vld [vmem:[%s4433 + $0xe8] sm:$0xf]
    %v4493 = vld [vmem:[%s4433 + $0xec] sm:$0xf]
    %v4494 = vld [vmem:[%s4433 + $0xf0] sm:$0xf]
    %v4495 = vld [vmem:[%s4433 + $0xf4] sm:$0xf]
    %v4496 = vld [vmem:[%s4433 + $0xf8] sm:$0xf]
    %v4497 = vld [vmem:[%s4433 + $0xfc] sm:$0xf]
    %v4562 = vunpack.c.l.b16 %v4434
    %v4563 = vunpack.c.l.b16 %v4435
    %v4564 = vunpack.c.l.b16 %v4436
    %v4565 = vunpack.c.l.b16 %v4437
    %v4566 = vunpack.c.l.b16 %v4438
    %v4567 = vunpack.c.l.b16 %v4439
    %v4568 = vunpack.c.l.b16 %v4440
    %v4569 = vunpack.c.l.b16 %v4441
    %v4570 = vunpack.c.l.b16 %v4442
    %v4571 = vunpack.c.l.b16 %v4443
    %v4572 = vunpack.c.l.b16 %v4444
    %v4573 = vunpack.c.l.b16 %v4445
    %v4574 = vunpack.c.l.b16 %v4446
    %v4575 = vunpack.c.l.b16 %v4447
    %v4576 = vunpack.c.l.b16 %v4448
    %v4577 = vunpack.c.l.b16 %v4449
    %v4578 = vunpack.c.l.b16 %v4450
    %v4579 = vunpack.c.l.b16 %v4451
    %v4580 = vunpack.c.l.b16 %v4452
    %v4581 = vunpack.c.l.b16 %v4453
    %v4582 = vunpack.c.l.b16 %v4454
    %v4583 = vunpack.c.l.b16 %v4455
    %v4584 = vunpack.c.l.b16 %v4456
    %v4585 = vunpack.c.l.b16 %v4457
    %v4586 = vunpack.c.l.b16 %v4458
    %v4587 = vunpack.c.l.b16 %v4459
    %v4588 = vunpack.c.l.b16 %v4460
    %v4589 = vunpack.c.l.b16 %v4461
    %v4590 = vunpack.c.l.b16 %v4462
    %v4591 = vunpack.c.l.b16 %v4463
    %v4592 = vunpack.c.l.b16 %v4464
    %v4593 = vunpack.c.l.b16 %v4465
    %v4594 = vunpack.c.l.b16 %v4466
    %v4595 = vunpack.c.l.b16 %v4467
    %v4596 = vunpack.c.l.b16 %v4468
    %v4597 = vunpack.c.l.b16 %v4469
    %v4598 = vunpack.c.l.b16 %v4470
    %v4599 = vunpack.c.l.b16 %v4471
    %v4600 = vunpack.c.l.b16 %v4472
    %v4601 = vunpack.c.l.b16 %v4473
    %v4602 = vunpack.c.l.b16 %v4474
    %v4603 = vunpack.c.l.b16 %v4475
    %v4604 = vunpack.c.l.b16 %v4476
    %v4605 = vunpack.c.l.b16 %v4477
    %v4606 = vunpack.c.l.b16 %v4478
    %v4607 = vunpack.c.l.b16 %v4479
    %v4608 = vunpack.c.l.b16 %v4480
    %v4609 = vunpack.c.l.b16 %v4481
    %v4610 = vunpack.c.l.b16 %v4482
    %v4611 = vunpack.c.l.b16 %v4483
    %v4612 = vunpack.c.l.b16 %v4484
    %v4613 = vunpack.c.l.b16 %v4485
    %v4614 = vunpack.c.l.b16 %v4486
    %v4615 = vunpack.c.l.b16 %v4487
    %v4616 = vunpack.c.l.b16 %v4488
    %v4617 = vunpack.c.l.b16 %v4489
    %v4618 = vunpack.c.l.b16 %v4490
    %v4619 = vunpack.c.l.b16 %v4491
    %v4620 = vunpack.c.l.b16 %v4492
    %v4621 = vunpack.c.l.b16 %v4493
    %v4622 = vunpack.c.l.b16 %v4494
    %v4623 = vunpack.c.l.b16 %v4495
    %v4624 = vunpack.c.l.b16 %v4496
    %v4625 = vunpack.c.l.b16 %v4497
    %v4626 = vpack.c.b16 %v4563, %v4562
    %v4627 = vpack.c.b16 %v4565, %v4564
    %v4628 = vpack.c.b16 %v4567, %v4566
    %v4629 = vpack.c.b16 %v4569, %v4568
    %v4630 = vpack.c.b16 %v4571, %v4570
    %v4631 = vpack.c.b16 %v4573, %v4572
    %v4632 = vpack.c.b16 %v4575, %v4574
    %v4633 = vpack.c.b16 %v4577, %v4576
    %v4634 = vpack.c.b16 %v4579, %v4578
    %v4635 = vpack.c.b16 %v4581, %v4580
    %v4636 = vpack.c.b16 %v4583, %v4582
    %v4637 = vpack.c.b16 %v4585, %v4584
    %v4638 = vpack.c.b16 %v4587, %v4586
    %v4639 = vpack.c.b16 %v4589, %v4588
    %v4640 = vpack.c.b16 %v4591, %v4590
    %v4641 = vpack.c.b16 %v4593, %v4592
    %v4642 = vpack.c.b16 %v4595, %v4594
    %v4643 = vpack.c.b16 %v4597, %v4596
    %v4644 = vpack.c.b16 %v4599, %v4598
    %v4645 = vpack.c.b16 %v4601, %v4600
    %v4646 = vpack.c.b16 %v4603, %v4602
    %v4647 = vpack.c.b16 %v4605, %v4604
    %v4648 = vpack.c.b16 %v4607, %v4606
    %v4649 = vpack.c.b16 %v4609, %v4608
    %v4650 = vpack.c.b16 %v4611, %v4610
    %v4651 = vpack.c.b16 %v4613, %v4612
    %v4652 = vpack.c.b16 %v4615, %v4614
    %v4653 = vpack.c.b16 %v4617, %v4616
    %v4654 = vpack.c.b16 %v4619, %v4618
    %v4655 = vpack.c.b16 %v4621, %v4620
    %v4656 = vpack.c.b16 %v4623, %v4622
    %v4657 = vpack.c.b16 %v4625, %v4624
    %4690 = vmatpush.bf16.msra.mxu0 %v4633
    %4691 = vmatpush.bf16.msra.mxu0 %v4632
    %4692 = vmatpush.bf16.msra.mxu0 %v4631
    %4693 = vmatpush.bf16.msra.mxu0 %v4630
    %4694 = vmatpush.bf16.msra.mxu0 %v4629
    %4695 = vmatpush.bf16.msra.mxu0 %v4628
    %4696 = vmatpush.bf16.msra.mxu0 %v4627
    %4697 = vmatpush.bf16.msra.mxu0 %v4626
    %4698 = vmatmul.bf16.gmra.mxu0 %v4429
    %v4699 = vpop.f32.mrf.mxu0
    %v4700 = vadd.f32 %v4262, %v4699
    %v4701 = vpop.f32.mrf.mxu0
    %v4702 = vadd.f32 %v4263, %v4701
    %4703 = vdwg.mxu0
    %4704 = vmatpush.bf16.msra.mxu0 %v4641
    %4705 = vmatpush.bf16.msra.mxu0 %v4640
    %4706 = vmatpush.bf16.msra.mxu0 %v4639
    %4707 = vmatpush.bf16.msra.mxu0 %v4638
    %4708 = vmatpush.bf16.msra.mxu0 %v4637
    %4709 = vmatpush.bf16.msra.mxu0 %v4636
    %4710 = vmatpush.bf16.msra.mxu0 %v4635
    %4711 = vmatpush.bf16.msra.mxu0 %v4634
    %4712 = vmatmul.bf16.gmra.mxu0 %v4430
    %v4713 = vpop.f32.mrf.mxu0
    %v4714 = vadd.f32 %v4700, %v4713
    %v4715 = vpop.f32.mrf.mxu0
    %v4716 = vadd.f32 %v4702, %v4715
    %4717 = vdwg.mxu0
    %4718 = vmatpush.bf16.msra.mxu0 %v4649
    %4719 = vmatpush.bf16.msra.mxu0 %v4648
    %4720 = vmatpush.bf16.msra.mxu0 %v4647
    %4721 = vmatpush.bf16.msra.mxu0 %v4646
    %4722 = vmatpush.bf16.msra.mxu0 %v4645
    %4723 = vmatpush.bf16.msra.mxu0 %v4644
    %4724 = vmatpush.bf16.msra.mxu0 %v4643
    %4725 = vmatpush.bf16.msra.mxu0 %v4642
    %4726 = vmatmul.bf16.gmra.mxu0 %v4431
    %v4727 = vpop.f32.mrf.mxu0
    %v4728 = vadd.f32 %v4714, %v4727
    %v4729 = vpop.f32.mrf.mxu0
    %v4730 = vadd.f32 %v4716, %v4729
    %4731 = vdwg.mxu0
    %4732 = vmatpush.bf16.msra.mxu0 %v4657
    %4733 = vmatpush.bf16.msra.mxu0 %v4656
    %4734 = vmatpush.bf16.msra.mxu0 %v4655
    %4735 = vmatpush.bf16.msra.mxu0 %v4654
    %4736 = vmatpush.bf16.msra.mxu0 %v4653
    %4737 = vmatpush.bf16.msra.mxu0 %v4652
    %4738 = vmatpush.bf16.msra.mxu0 %v4651
    %4739 = vmatpush.bf16.msra.mxu0 %v4650
    %4740 = vmatmul.bf16.gmra.mxu0 %v4432
    %v4741 = vpop.f32.mrf.mxu0
    %v4742 = vadd.f32 %v4728, %v4741
    %v4743 = vpop.f32.mrf.mxu0
    %v4744 = vadd.f32 %v4730, %v4743
    %4745 = vdwg.mxu0
    %v4746 = vsel %vm126, %v4742, 0.0
    %4747 = vadd.xlane.f32.xlu0 %v4746
    %v4748 = vpop.xlane.xlu0 %4747
    %v4749 = vsel %vm126, %v4744, 0.0
    %4750 = vadd.xlane.f32.xlu0 %v4749
    %v4751 = vpop.xlane.xlu0 %4750
    %v4752 = vmul.f32 %v4748, %v1067
    %v4753 = vmul.f32 %v4751, %v1067
    %v4754 = vsub.f32 %v4742, %v4752
    %v4755 = vsub.f32 %v4744, %v4753
    %v4756 = vmul.f32 %v4754, %v4754
    %v4757 = vmul.f32 %v4755, %v4755
    %v4758 = vsel %vm126, %v4756, 0.0
    %4759 = vadd.xlane.f32.xlu0 %v4758
    %v4760 = vpop.xlane.xlu0 %4759
    %v4761 = vsel %vm126, %v4757, 0.0
    %4762 = vadd.xlane.f32.xlu0 %v4761
    %v4763 = vpop.xlane.xlu0 %4762
    %v4764 = vmul.f32 %v4760, %v1067
    %v4765 = vmul.f32 %v4763, %v1067
    %v4766 = vadd.f32 %v4764, 1e-05
    %v4767 = vadd.f32 %v4765, 1e-05
    %v4768 = vrsqrt.pop %v4766
    %v4769 = vmul.f32 %v4768, %v4766
    %v4770 = vmul.f32 %v4769, %v4768
    %v4771 = vmul.f32 0.5, %v4770
    %v4772 = vsub.f32 1.5, %v4771
    %v4773 = vmul.f32 %v4768, %v4772
    %vm4774 = vweird.f32 %v4766
    %vm4775 = vweird.f32 %v4768
    %vm4776 = vmor %vm4774, %vm4775
    %v4777 = vsel %vm4776, %v4768, %v4773
    %v4778 = vrsqrt.pop %v4767
    %v4779 = vmul.f32 %v4778, %v4767
    %v4780 = vmul.f32 %v4779, %v4778
    %v4781 = vmul.f32 0.5, %v4780
    %v4782 = vsub.f32 1.5, %v4781
    %v4783 = vmul.f32 %v4778, %v4782
    %vm4784 = vweird.f32 %v4767
    %vm4785 = vweird.f32 %v4778
    %vm4786 = vmor %vm4784, %vm4785
    %v4787 = vsel %vm4786, %v4778, %v4783
    %v4788 = vmul.f32 %v4754, %v4777
    %v4789 = vmul.f32 %v4755, %v4787
    %4790 = vst.msk [vmem:[#allocation2] sm:$0xff] %vm126, %v4788
    %4791 = vst.msk [vmem:[#allocation2 + $0x8] sm:$0xff] %vm126, %v4789
    // Predicated region
    $region34: #{tpu_custom_call.1} parent=1 // pred_check
      _
    $region35: #{tpu_custom_call.1} parent=1 // pred_check_branch
      %4793 = sbr.rel (0) target = $region37
    $region36: #{tpu_custom_call.1} parent=1 // pred_region
      %4795 = vsyncadd [#allocation3], 0
      %s4796 = sshll.u32 [#allocation2], 4
      %s4797 = int_to_ptr.vmem [resolvable:$true] %s4796
      %s4798 = sshll.u32 %s8, 4
      %s4799 = int_to_ptr.hbm [resolvable:$true] %s4798
      %4804 = dma.vmem_to_hbm [thread:$0]  %s4797, 256, %s4799, [#allocation3], 128, 128, 8
    $region37: #{tpu_custom_call.1} parent=1 // pred_fallthru
      _
    // Predicated region
    $region38: #{tpu_custom_call.1} parent=1 // pred_check
      _
    $region39: #{tpu_custom_call.1} parent=1 // pred_check_branch
      %4806 = sbr.rel (0) target = $region41
    $region40: #{tpu_custom_call.1} parent=1 // pred_region
      %4808 = vsyncadd [#allocation5], 0
      %s4809 = sshll.u32 [#allocation4], 4
      %s4810 = int_to_ptr.vmem [resolvable:$true] %s4809
      %s4811 = sshll.u32 %s9, 4
      %s4812 = int_to_ptr.hbm [resolvable:$true] %s4811
      %4817 = dma.vmem_to_hbm [thread:$0]  %s4810, 768, %s4812, [#allocation5], 128, 128, 8
    $region41: #{tpu_custom_call.1} parent=1 // pred_fallthru
      _
    // Predicated region
    $region42: #{tpu_custom_call.1} parent=1 // pred_check
      _
    $region43: #{tpu_custom_call.1} parent=1 // pred_check_branch
      %4819 = sbr.rel (0) target = $region45
    $region44: #{tpu_custom_call.1} parent=1 // pred_region
      %4821 = dma.done [#allocation3], 256
    $region45: #{tpu_custom_call.1} parent=1 // pred_fallthru
      _
    // Predicated region
    $region46: #{tpu_custom_call.1} parent=1 // pred_check
      _
    $region47: #{tpu_custom_call.1} parent=1 // pred_check_branch
      %4823 = sbr.rel (0) target = $region49
    $region48: #{tpu_custom_call.1} parent=1 // pred_region
      %4825 = dma.done [#allocation5], 768
    $region49: #{tpu_custom_call.1} parent=1 // pred_fallthru
      _
    %4826 = vsyncpa [#allocation3], 1
    %4827 = vsyncpa [#allocation5], 1

</llo_original>
